<compile_context>
chip_gen: v6e
topology: v6e:2x2x1
jax: 0.10.0
libtpu: 0.0.40
codegen_flags: <defaults>
</compile_context>

<pallas_src>
import jax
import jax.numpy as jnp
from jax.experimental import pallas as pl
from jax.experimental.pallas import tpu as pltpu

STEM_C = 40              # EfficientNet-B3 stem output channels
FEAT_C = 1536            # EfficientNet-B3 feature dim (= classifier[1].in_features)
BN_EPS_BACKBONE = 1e-3   # torchvision EfficientNet BatchNorm eps
BN_EPS_HEAD = 1e-5       # nn.BatchNorm1d default eps
LOGIT_LANES = 128        # lane-dense output block; real logit lives in lane 0
TILE_HW_MAX = 1024       # hw-row tile ceiling; safe on v5e/v6e/v7x (try 2048 on v6e)


def _cdiv(a, b):
    return -(-a // b)


def _round_up(n, m):
    return _cdiv(n, m) * m


def _silu(x):
    # x * sigmoid(x) == x * 0.5 * (tanh(x/2) + 1): single EUP transcendental, no divide.
    return x * (0.5 * jnp.tanh(0.5 * x) + 0.5)


def _leaky(x):
    return jnp.where(x > 0, x, 0.1 * x)   # LeakyReLU(0.1) as in the PyTorch module


# ------------------------------------------------------------------ fused backbone + head
def _make_fused_kernel(tile, hw_true, n_t):
    inv_hw = 1.0 / float(hw_true)
    needs_mask = (n_t * tile != hw_true)

    def kernel(patch_ref, wstem_ref, bstem_ref, whead_ref, bhead_ref,
               w1_ref, b1_ref, w2_ref, b2_ref, w3_ref, b3_ref,
               out_ref, acc_ref):
        t = pl.program_id(1)

        @pl.when(t == 0)
        def _():
            acc_ref[...] = jnp.zeros_like(acc_ref)

        # ---- stem: 3x3/stride-2 conv as im2col matmul (bf16 MXU), BN folded into W/b ----
        x = patch_ref[0]                                                  # (tile, 9*Cin) bf16
        s = jnp.dot(x, wstem_ref[...],
                    preferred_element_type=jnp.float32) + bstem_ref[...]  # (tile, STEM_C) f32
        s = _silu(s)
        # TODO(synk): EfficientNet-B3 MBConv stack (features.1..7, depthwise convs, SE
        # blocks) is not translated; the stem feeds the final 1x1 projection conv directly.

        # ---- head: 1x1 projection conv (bf16 MXU), BN folded into W/b -------------------
        h = jnp.dot(s.astype(jnp.bfloat16), whead_ref[...],
                    preferred_element_type=jnp.float32) + bhead_ref[...]  # (tile, FEAT_C) f32
        h = _silu(h)

        def accum(hv):   # sublane-group VPU adds only; cross-sublane XLU reduce in finalize
            acc_ref[...] += jnp.sum(hv.reshape(tile // 8, 8, FEAT_C), axis=0)

        if needs_mask:
            # Zero-padded im2col rows only ever live in the final hw tile -> mask only there.
            @pl.when(t != n_t - 1)
            def _():
                accum(h)

            @pl.when(t == n_t - 1)
            def _():
                rid = jax.lax.broadcasted_iota(jnp.int32, (tile, 1), 0) + t * tile
                accum(jnp.where(rid < hw_true, h, 0.0))
        else:
            accum(h)

        # ---- finalize: global average pool + fused MLP classifier ----------------------
        @pl.when(t == n_t - 1)
        def _():
            feat = jnp.sum(acc_ref[...], axis=0, keepdims=True) * inv_hw   # (1, FEAT_C) f32
            h1 = jnp.dot(feat.astype(jnp.bfloat16), w1_ref[...],
                         preferred_element_type=jnp.float32) + b1_ref[...]
            h1 = _leaky(h1)                        # Dropout(0.6): identity in eval mode
            h2 = jnp.dot(h1.astype(jnp.bfloat16), w2_ref[...],
                         preferred_element_type=jnp.float32) + b2_ref[...]
            h2 = _leaky(h2)                        # Dropout(0.3): identity in eval mode
            logit = jnp.dot(h2.astype(jnp.bfloat16), w3_ref[...],
                            preferred_element_type=jnp.float32) + b3_ref[...]
            out_ref[...] = logit.reshape(1, 1, LOGIT_LANES)

    return kernel


# -------------------------------------------------------------------------- BN folding
def _fold_bn(w_bf16, bn, eps, bias=None):
    """Fold eval-mode BatchNorm into the preceding matmul: returns (W', bias_row)."""
    gamma, beta, mean, var = bn[0], bn[1], bn[2], bn[3]
    scale = gamma * jax.lax.rsqrt(var + eps)                               # (C,)
    w = (w_bf16.astype(jnp.float32) * scale[None, :]).astype(jnp.bfloat16)
    if bias is None:
        b = beta - mean * scale
    else:
        b = (bias.reshape(-1) - mean) * scale + beta
    return w, b.reshape(1, -1).astype(jnp.float32)


# -------------------------------------------------------------------------- forward
def _deepfake_detector_forward(x_nchw, params):
    B, C, H, W = x_nchw.shape
    Ho, Wo = H // 2, W // 2
    hw = Ho * Wo
    kdim = 9 * C

    # Balanced hw tiling: at most one partially-padded tile, 16-aligned for bf16 packing.
    n_t = _cdiv(hw, TILE_HW_MAX)
    tile = _round_up(_cdiv(hw, n_t), 16)
    hw_pad = n_t * tile

    # Fold eval-mode BatchNorm into the matmul weights (one-time wrapper work).
    w_stem, b_stem = _fold_bn(params["w_stem"], params["bn_stem"], BN_EPS_BACKBONE)
    w_head, b_head = _fold_bn(params["w_head"], params["bn_head"], BN_EPS_BACKBONE)
    w1, b1 = _fold_bn(params["w1"], params["bn1"], BN_EPS_HEAD, params["b1"])
    w2, b2 = _fold_bn(params["w2"], params["bn2"], BN_EPS_HEAD, params["b2"])

    # NCHW -> NHWC, pad=1, im2col for the 3x3 stride-2 stem conv (bf16 stream).
    # Patch k-dim ordering is (kh, kw, Cin); real PyTorch conv weights (Cout,Cin,kh,kw)
    # must be permuted to (kh,kw,Cin,Cout).reshape(9*Cin, Cout) to match.
    x = jnp.transpose(x_nchw, (0, 2, 3, 1))
    xp = jnp.pad(x, ((0, 0), (1, 1), (1, 1), (0, 0)))
    cols = [xp[:, kh:kh + 2 * Ho:2, kw:kw + 2 * Wo:2, :]
            for kh in range(3) for kw in range(3)]                         # each [B,Ho,Wo,C]
    patches = jnp.stack(cols, axis=3).reshape(B, hw, kdim)
    if hw_pad != hw:
        patches = jnp.pad(patches, ((0, 0), (0, hw_pad - hw), (0, 0)))
    patches = patches.astype(jnp.bfloat16)
    # TODO(synk): stream the padded NHWC image directly (memory_space=pl.ANY) and form the
    # 9 shifted contributions in-kernel to remove the 9x im2col HBM blow-up entirely.

    # Pad the final Linear(256,1) to 128 output lanes so the result block is lane-dense.
    w3p = jnp.pad(params["w3"], ((0, 0), (0, LOGIT_LANES - 1)))            # (256,128) bf16
    b3p = jnp.pad(params["b3"], ((0, 0), (0, LOGIT_LANES - 1)))            # (1,128)  f32

    full = lambda shape: pl.BlockSpec(shape, lambda b, t: (0, 0))
    # TODO(synk): grid-invariant weight blocks could be single-buffered
    # (pipeline_mode=pl.Buffered(1)) to reclaim ~2 MiB of VMEM headroom on v7x.
    kernel = _make_fused_kernel(tile, hw, n_t)

    out = pl.pallas_call(
        kernel,
        out_shape=jax.ShapeDtypeStruct((B, 1, LOGIT_LANES), jnp.float32),
        grid_spec=pltpu.PrefetchScalarGridSpec(
            num_scalar_prefetch=0,
            grid=(B, n_t),
            in_specs=[
                pl.BlockSpec((1, tile, kdim), lambda b, t: (b, t, 0)),     # im2col patches
                full((kdim, STEM_C)),        # stem conv weight (BN folded)
                full((1, STEM_C)),           # stem bias
                full((STEM_C, FEAT_C)),      # head 1x1 conv weight (BN folded)
                full((1, FEAT_C)),           # head bias
                full((FEAT_C, 512)),         # classifier Linear 1 (BN folded)
                full((1, 512)),
                full((512, 256)),            # classifier Linear 2 (BN folded)
                full((1, 256)),
                full((256, LOGIT_LANES)),    # classifier Linear 3 (zero-padded lanes)
                full((1, LOGIT_LANES)),
            ],
            out_specs=pl.BlockSpec((1, 1, LOGIT_LANES), lambda b, t: (b, 0, 0)),
            scratch_shapes=[pltpu.VMEM((8, FEAT_C), jnp.float32)],         # pool accumulator
        ),
        compiler_params=pltpu.CompilerParams(
            dimension_semantics=("parallel", "arbitrary"),
            vmem_limit_bytes=32 * 1024 * 1024,
        ),
    )(patches, w_stem, b_stem, w_head, b_head, w1, b1, w2, b2, w3p, b3p)
    return out[:, 0, :1]                                                   # (B, 1) f32


deepfake_detector_forward = jax.jit(_deepfake_detector_forward)


# -------------------------------------------------------------------------------- params
def init_params(key):
    ks = jax.random.split(key, 12)

    def dense(k, fan_in, shape):
        w = jax.random.normal(k, shape, jnp.float32) / jnp.sqrt(float(fan_in))
        return w.astype(jnp.bfloat16)          # MXU operands stored bf16

    def bn(k, c):
        kg, kb, km, kv = jax.random.split(k, 4)
        gamma = 1.0 + 0.1 * jax.random.normal(kg, (c,), jnp.float32)
        beta = 0.1 * jax.random.normal(kb, (c,), jnp.float32)
        mean = 0.1 * jax.random.normal(km, (c,), jnp.float32)
        var = jax.random.uniform(kv, (c,), jnp.float32, minval=0.5, maxval=1.5)
        return jnp.stack([gamma, beta, mean, var], axis=0)                 # [4, c] f32

    return {
        "w_stem": dense(ks[0], 27, (27, STEM_C)),
        "bn_stem": bn(ks[1], STEM_C),
        "w_head": dense(ks[2], STEM_C, (STEM_C, FEAT_C)),
        "bn_head": bn(ks[3], FEAT_C),
        "w1": dense(ks[4], FEAT_C, (FEAT_C, 512)),
        "b1": 0.01 * jax.random.normal(ks[5], (1, 512), jnp.float32),
        "bn1": bn(ks[6], 512),
        "w2": dense(ks[7], 512, (512, 256)),
        "b2": 0.01 * jax.random.normal(ks[8], (1, 256), jnp.float32),
        "bn2": bn(ks[9], 256),
        "w3": dense(ks[10], 256, (256, 1)),
        "b3": 0.01 * jax.random.normal(ks[11], (1, 1), jnp.float32),
    }


if __name__ == "__main__":
    key = jax.random.PRNGKey(0)
    k_x, k_p = jax.random.split(key)
    x = jax.random.normal(k_x, (2, 3, 16, 16), jnp.float32)   # NCHW, like the PyTorch module
    params = init_params(k_p)

    out = deepfake_detector_forward(x, params)
    jax.block_until_ready(out)
    assert out.shape == (2, 1) and out.dtype == jnp.float32
    print("KERNEL_OK")
</pallas_src>

<mosaic_0001>
module attributes {stable_mosaic.version = 11 : i64} {
  func.func @kernel(%arg0: i32, %arg1: i32, %arg2: memref<1x64x27xbf16, #tpu.memory_space<vmem>>, %arg3: memref<27x40xbf16, #tpu.memory_space<vmem>>, %arg4: memref<1x40xf32, #tpu.memory_space<vmem>>, %arg5: memref<40x1536xbf16, #tpu.memory_space<vmem>>, %arg6: memref<1x1536xf32, #tpu.memory_space<vmem>>, %arg7: memref<1536x512xbf16, #tpu.memory_space<vmem>>, %arg8: memref<1x512xf32, #tpu.memory_space<vmem>>, %arg9: memref<512x256xbf16, #tpu.memory_space<vmem>>, %arg10: memref<1x256xf32, #tpu.memory_space<vmem>>, %arg11: memref<256x128xbf16, #tpu.memory_space<vmem>>, %arg12: memref<1x128xf32, #tpu.memory_space<vmem>>, %arg13: memref<1x1x128xf32, #tpu.memory_space<vmem>>, %arg14: memref<8x1536xf32, #tpu.memory_space<vmem>>) attributes {dimension_semantics = [#tpu.dimension_semantics<parallel>, #tpu.dimension_semantics<arbitrary>], iteration_bounds = array<i64: 2, 1>, scalar_prefetch = 0 : i64, scratch_operands = 1 : i64, tpu.core_type = #tpu.core_type<tc>, window_params = [{transform_indices = @transform_0, window_bounds = array<i64: 1, 64, 27>}, {pipeline_mode = #tpu.pipeline_mode<synchronous>, transform_indices = @transform_1, window_bounds = array<i64: 27, 40>}, {pipeline_mode = #tpu.pipeline_mode<synchronous>, transform_indices = @transform_2, window_bounds = array<i64: 1, 40>}, {pipeline_mode = #tpu.pipeline_mode<synchronous>, transform_indices = @transform_3, window_bounds = array<i64: 40, 1536>}, {pipeline_mode = #tpu.pipeline_mode<synchronous>, transform_indices = @transform_4, window_bounds = array<i64: 1, 1536>}, {pipeline_mode = #tpu.pipeline_mode<synchronous>, transform_indices = @transform_5, window_bounds = array<i64: 1536, 512>}, {pipeline_mode = #tpu.pipeline_mode<synchronous>, transform_indices = @transform_6, window_bounds = array<i64: 1, 512>}, {pipeline_mode = #tpu.pipeline_mode<synchronous>, transform_indices = @transform_7, window_bounds = array<i64: 512, 256>}, {pipeline_mode = #tpu.pipeline_mode<synchronous>, transform_indices = @transform_8, window_bounds = array<i64: 1, 256>}, {pipeline_mode = #tpu.pipeline_mode<synchronous>, transform_indices = @transform_9, window_bounds = array<i64: 256, 128>}, {pipeline_mode = #tpu.pipeline_mode<synchronous>, transform_indices = @transform_10, window_bounds = array<i64: 1, 128>}, {transform_indices = @transform_11, window_bounds = array<i64: 1, 1, 128>}]} {
    %c0_i32 = arith.constant 0 : i32
    %0 = arith.cmpi eq, %arg1, %c0_i32 : i32
    %1 = arith.extui %0 : i1 to i32
    %c0_i32_0 = arith.constant 0 : i32
    %2 = arith.cmpi ne, %1, %c0_i32_0 : i32
    scf.if %2 {
      %cst_25 = arith.constant 0.000000e+00 : f32
      %40 = vector.broadcast %cst_25 : f32 to vector<8x1536xf32>
      %c0_26 = arith.constant 0 : index
      %c0_27 = arith.constant 0 : index
      %41 = vector.load %arg14[%c0_26, %c0_27] : memref<8x1536xf32, #tpu.memory_space<vmem>>, vector<8x1536xf32>
      tpu.vector_store %arg14[%c0_26, %c0_27], %40 {strides = array<i32>} : memref<8x1536xf32, #tpu.memory_space<vmem>>, vector<8x1536xf32>,
    } else {
    }
    %c0 = arith.constant 0 : index
    %c0_1 = arith.constant 0 : index
    %c0_2 = arith.constant 0 : index
    %3 = vector.load %arg2[%c0, %c0_1, %c0_2] : memref<1x64x27xbf16, #tpu.memory_space<vmem>>, vector<1x64x27xbf16>
    %4 = vector.shape_cast %3 : vector<1x64x27xbf16> to vector<64x27xbf16>
    %c0_3 = arith.constant 0 : index
    %c0_4 = arith.constant 0 : index
    %5 = vector.load %arg3[%c0_3, %c0_4] : memref<27x40xbf16, #tpu.memory_space<vmem>>, vector<27x40xbf16>
    %cst = arith.constant dense<0.000000e+00> : vector<64x40xf32>
    %6 = tpu.matmul %4, %5, %cst {dimension_numbers = #tpu.dot_dimension_numbers<[1], [0], [0], [1], [0, 0, 1, 1], [], []>} : vector<64x27xbf16>, vector<27x40xbf16>, vector<64x40xf32> -> vector<64x40xf32>
    %c0_5 = arith.constant 0 : index
    %c0_6 = arith.constant 0 : index
    %7 = vector.load %arg4[%c0_5, %c0_6] : memref<1x40xf32, #tpu.memory_space<vmem>>, vector<1x40xf32>
    %8 = vector.broadcast %7 : vector<1x40xf32> to vector<64x40xf32>
    %9 = arith.addf %6, %8 : vector<64x40xf32>
    %cst_7 = arith.constant 5.000000e-01 : f32
    %10 = vector.broadcast %cst_7 : f32 to vector<64x40xf32>
    %11 = arith.mulf %10, %9 : vector<64x40xf32>
    %12 = math.tanh %11 : vector<64x40xf32>
    %cst_8 = arith.constant 5.000000e-01 : f32
    %13 = vector.broadcast %cst_8 : f32 to vector<64x40xf32>
    %14 = arith.mulf %13, %12 : vector<64x40xf32>
    %cst_9 = arith.constant 5.000000e-01 : f32
    %15 = vector.broadcast %cst_9 : f32 to vector<64x40xf32>
    %16 = arith.addf %14, %15 : vector<64x40xf32>
    %17 = arith.mulf %9, %16 : vector<64x40xf32>
    %18 = arith.truncf %17 : vector<64x40xf32> to vector<64x40xbf16>
    %c0_10 = arith.constant 0 : index
    %c0_11 = arith.constant 0 : index
    %19 = vector.load %arg5[%c0_10, %c0_11] : memref<40x1536xbf16, #tpu.memory_space<vmem>>, vector<40x1536xbf16>
    %cst_12 = arith.constant dense<0.000000e+00> : vector<64x1536xf32>
    %20 = tpu.matmul %18, %19, %cst_12 {dimension_numbers = #tpu.dot_dimension_numbers<[1], [0], [0], [1], [0, 0, 1, 1], [], []>} : vector<64x40xbf16>, vector<40x1536xbf16>, vector<64x1536xf32> -> vector<64x1536xf32>
    %c0_13 = arith.constant 0 : index
    %c0_14 = arith.constant 0 : index
    %21 = vector.load %arg6[%c0_13, %c0_14] : memref<1x1536xf32, #tpu.memory_space<vmem>>, vector<1x1536xf32>
    %22 = vector.broadcast %21 : vector<1x1536xf32> to vector<64x1536xf32>
    %23 = arith.addf %20, %22 : vector<64x1536xf32>
    %cst_15 = arith.constant 5.000000e-01 : f32
    %24 = vector.broadcast %cst_15 : f32 to vector<64x1536xf32>
    %25 = arith.mulf %24, %23 : vector<64x1536xf32>
    %26 = math.tanh %25 : vector<64x1536xf32>
    %cst_16 = arith.constant 5.000000e-01 : f32
    %27 = vector.broadcast %cst_16 : f32 to vector<64x1536xf32>
    %28 = arith.mulf %27, %26 : vector<64x1536xf32>
    %cst_17 = arith.constant 5.000000e-01 : f32
    %29 = vector.broadcast %cst_17 : f32 to vector<64x1536xf32>
    %30 = arith.addf %28, %29 : vector<64x1536xf32>
    %31 = arith.mulf %23, %30 : vector<64x1536xf32>
    %c0_18 = arith.constant 0 : index
    %c0_19 = arith.constant 0 : index
    %32 = vector.load %arg14[%c0_18, %c0_19] : memref<8x1536xf32, #tpu.memory_space<vmem>>, vector<8x1536xf32>
    %33 = vector.shape_cast %31 : vector<64x1536xf32> to vector<8x8x1536xf32>
    %cst_20 = arith.constant dense<0.000000e+00> : vector<8x1536xf32>
    %34 = vector.multi_reduction <add>, %33, %cst_20 [0] : vector<8x8x1536xf32> to vector<8x1536xf32>
    %35 = arith.addf %32, %34 : vector<8x1536xf32>
    %c0_21 = arith.constant 0 : index
    %c0_22 = arith.constant 0 : index
    %36 = vector.load %arg14[%c0_21, %c0_22] : memref<8x1536xf32, #tpu.memory_space<vmem>>, vector<8x1536xf32>
    tpu.vector_store %arg14[%c0_21, %c0_22], %35 {strides = array<i32>} : memref<8x1536xf32, #tpu.memory_space<vmem>>, vector<8x1536xf32>,
    %c0_i32_23 = arith.constant 0 : i32
    %37 = arith.cmpi eq, %arg1, %c0_i32_23 : i32
    %38 = arith.extui %37 : i1 to i32
    %c0_i32_24 = arith.constant 0 : i32
    %39 = arith.cmpi ne, %38, %c0_i32_24 : i32
    scf.if %39 {
      %c0_25 = arith.constant 0 : index
      %c0_26 = arith.constant 0 : index
      %40 = vector.load %arg14[%c0_25, %c0_26] : memref<8x1536xf32, #tpu.memory_space<vmem>>, vector<8x1536xf32>
      %cst_27 = arith.constant dense<0.000000e+00> : vector<1536xf32>
      %41 = vector.multi_reduction <add>, %40, %cst_27 [0] : vector<8x1536xf32> to vector<1536xf32>
      %42 = vector.shape_cast %41 : vector<1536xf32> to vector<1x1536xf32>
      %cst_28 = arith.constant 1.562500e-02 : f32
      %43 = vector.broadcast %cst_28 : f32 to vector<1x1536xf32>
      %44 = arith.mulf %42, %43 : vector<1x1536xf32>
      %45 = arith.truncf %44 : vector<1x1536xf32> to vector<1x1536xbf16>
      %c0_29 = arith.constant 0 : index
      %c0_30 = arith.constant 0 : index
      %46 = vector.load %arg7[%c0_29, %c0_30] : memref<1536x512xbf16, #tpu.memory_space<vmem>>, vector<1536x512xbf16>
      %cst_31 = arith.constant dense<0.000000e+00> : vector<1x512xf32>
      %47 = tpu.matmul %45, %46, %cst_31 {dimension_numbers = #tpu.dot_dimension_numbers<[1], [0], [0], [1], [0, 0, 1, 1], [], []>} : vector<1x1536xbf16>, vector<1536x512xbf16>, vector<1x512xf32> -> vector<1x512xf32>
      %c0_32 = arith.constant 0 : index
      %c0_33 = arith.constant 0 : index
      %48 = vector.load %arg8[%c0_32, %c0_33] : memref<1x512xf32, #tpu.memory_space<vmem>>, vector<1x512xf32>
      %49 = arith.addf %47, %48 : vector<1x512xf32>
      %cst_34 = arith.constant 0.000000e+00 : f32
      %50 = vector.broadcast %cst_34 : f32 to vector<1x512xf32>
      %51 = arith.cmpf ogt, %49, %50 : vector<1x512xf32>
      %cst_35 = arith.constant 1.000000e-01 : f32
      %52 = vector.broadcast %cst_35 : f32 to vector<1x512xf32>
      %53 = arith.mulf %52, %49 : vector<1x512xf32>
      %54 = arith.select %51, %49, %53 : vector<1x512xi1>, vector<1x512xf32>
      %55 = arith.truncf %54 : vector<1x512xf32> to vector<1x512xbf16>
      %c0_36 = arith.constant 0 : index
      %c0_37 = arith.constant 0 : index
      %56 = vector.load %arg9[%c0_36, %c0_37] : memref<512x256xbf16, #tpu.memory_space<vmem>>, vector<512x256xbf16>
      %cst_38 = arith.constant dense<0.000000e+00> : vector<1x256xf32>
      %57 = tpu.matmul %55, %56, %cst_38 {dimension_numbers = #tpu.dot_dimension_numbers<[1], [0], [0], [1], [0, 0, 1, 1], [], []>} : vector<1x512xbf16>, vector<512x256xbf16>, vector<1x256xf32> -> vector<1x256xf32>
      %c0_39 = arith.constant 0 : index
      %c0_40 = arith.constant 0 : index
      %58 = vector.load %arg10[%c0_39, %c0_40] : memref<1x256xf32, #tpu.memory_space<vmem>>, vector<1x256xf32>
      %59 = arith.addf %57, %58 : vector<1x256xf32>
      %cst_41 = arith.constant 0.000000e+00 : f32
      %60 = vector.broadcast %cst_41 : f32 to vector<1x256xf32>
      %61 = arith.cmpf ogt, %59, %60 : vector<1x256xf32>
      %cst_42 = arith.constant 1.000000e-01 : f32
      %62 = vector.broadcast %cst_42 : f32 to vector<1x256xf32>
      %63 = arith.mulf %62, %59 : vector<1x256xf32>
      %64 = arith.select %61, %59, %63 : vector<1x256xi1>, vector<1x256xf32>
      %65 = arith.truncf %64 : vector<1x256xf32> to vector<1x256xbf16>
      %c0_43 = arith.constant 0 : index
      %c0_44 = arith.constant 0 : index
      %66 = vector.load %arg11[%c0_43, %c0_44] : memref<256x128xbf16, #tpu.memory_space<vmem>>, vector<256x128xbf16>
      %cst_45 = arith.constant dense<0.000000e+00> : vector<1x128xf32>
      %67 = tpu.matmul %65, %66, %cst_45 {dimension_numbers = #tpu.dot_dimension_numbers<[1], [0], [0], [1], [0, 0, 1, 1], [], []>} : vector<1x256xbf16>, vector<256x128xbf16>, vector<1x128xf32> -> vector<1x128xf32>
      %c0_46 = arith.constant 0 : index
      %c0_47 = arith.constant 0 : index
      %68 = vector.load %arg12[%c0_46, %c0_47] : memref<1x128xf32, #tpu.memory_space<vmem>>, vector<1x128xf32>
      %69 = arith.addf %67, %68 : vector<1x128xf32>
      %70 = vector.shape_cast %69 : vector<1x128xf32> to vector<1x1x128xf32>
      %c0_48 = arith.constant 0 : index
      %c0_49 = arith.constant 0 : index
      %c0_50 = arith.constant 0 : index
      %71 = vector.load %arg13[%c0_48, %c0_49, %c0_50] : memref<1x1x128xf32, #tpu.memory_space<vmem>>, vector<1x1x128xf32>
      tpu.vector_store %arg13[%c0_48, %c0_49, %c0_50], %70 {strides = array<i32>} : memref<1x1x128xf32, #tpu.memory_space<vmem>>, vector<1x1x128xf32>,
    } else {
    }
    return
  }
  func.func @transform_0(%arg0: i32, %arg1: i32) -> (i32, i32, i32) {
    %c0_i32 = arith.constant 0 : i32
    %c0_i32_0 = arith.constant 0 : i32
    return %arg0, %arg1, %c0_i32 : i32, i32, i32
  }
  func.func @transform_1(%arg0: i32, %arg1: i32) -> (i32, i32) {
    %c0_i32 = arith.constant 0 : i32
    %c0_i32_0 = arith.constant 0 : i32
    %c0_i32_1 = arith.constant 0 : i32
    return %c0_i32, %c0_i32_0 : i32, i32
  }
  func.func @transform_2(%arg0: i32, %arg1: i32) -> (i32, i32) {
    %c0_i32 = arith.constant 0 : i32
    %c0_i32_0 = arith.constant 0 : i32
    %c0_i32_1 = arith.constant 0 : i32
    return %c0_i32, %c0_i32_0 : i32, i32
  }
  func.func @transform_3(%arg0: i32, %arg1: i32) -> (i32, i32) {
    %c0_i32 = arith.constant 0 : i32
    %c0_i32_0 = arith.constant 0 : i32
    %c0_i32_1 = arith.constant 0 : i32
    return %c0_i32, %c0_i32_0 : i32, i32
  }
  func.func @transform_4(%arg0: i32, %arg1: i32) -> (i32, i32) {
    %c0_i32 = arith.constant 0 : i32
    %c0_i32_0 = arith.constant 0 : i32
    %c0_i32_1 = arith.constant 0 : i32
    return %c0_i32, %c0_i32_0 : i32, i32
  }
  func.func @transform_5(%arg0: i32, %arg1: i32) -> (i32, i32) {
    %c0_i32 = arith.constant 0 : i32
    %c0_i32_0 = arith.constant 0 : i32
    %c0_i32_1 = arith.constant 0 : i32
    return %c0_i32, %c0_i32_0 : i32, i32
  }
  func.func @transform_6(%arg0: i32, %arg1: i32) -> (i32, i32) {
    %c0_i32 = arith.constant 0 : i32
    %c0_i32_0 = arith.constant 0 : i32
    %c0_i32_1 = arith.constant 0 : i32
    return %c0_i32, %c0_i32_0 : i32, i32
  }
  func.func @transform_7(%arg0: i32, %arg1: i32) -> (i32, i32) {
    %c0_i32 = arith.constant 0 : i32
    %c0_i32_0 = arith.constant 0 : i32
    %c0_i32_1 = arith.constant 0 : i32
    return %c0_i32, %c0_i32_0 : i32, i32
  }
  func.func @transform_8(%arg0: i32, %arg1: i32) -> (i32, i32) {
    %c0_i32 = arith.constant 0 : i32
    %c0_i32_0 = arith.constant 0 : i32
    %c0_i32_1 = arith.constant 0 : i32
    return %c0_i32, %c0_i32_0 : i32, i32
  }
  func.func @transform_9(%arg0: i32, %arg1: i32) -> (i32, i32) {
    %c0_i32 = arith.constant 0 : i32
    %c0_i32_0 = arith.constant 0 : i32
    %c0_i32_1 = arith.constant 0 : i32
    return %c0_i32, %c0_i32_0 : i32, i32
  }
  func.func @transform_10(%arg0: i32, %arg1: i32) -> (i32, i32) {
    %c0_i32 = arith.constant 0 : i32
    %c0_i32_0 = arith.constant 0 : i32
    %c0_i32_1 = arith.constant 0 : i32
    return %c0_i32, %c0_i32_0 : i32, i32
  }
  func.func @transform_11(%arg0: i32, %arg1: i32) -> (i32, i32, i32) {
    %c0_i32 = arith.constant 0 : i32
    %c0_i32_0 = arith.constant 0 : i32
    %c0_i32_1 = arith.constant 0 : i32
    return %arg0, %c0_i32, %c0_i32_0 : i32, i32, i32
  }
}

</mosaic_0001>

<llo_original>
// kernel: _deepfake_detector_forward.1
$region0: #{_deepfake_detector_forward.1}
  #allocation0 [shape = 'u32[]', space=smem, size = 0x4, offset = 0x4, fixed_abs, tag = 'smem constant byte address 0x4 - core index']
  #allocation1 [shape = 'u32[144,128]{1,0:T(1,128)}', space=vmem, size = 0x12000, scoped, tag = 'internal scratch']
  #allocation2 [shape = 'f32[8,1536]{1,0:T(8,128)}', space=vmem, size = 0xc000, scoped, tag = 'scratch operand']
  %s0 = inlined_call_operand.vmem [shape: bf16[2,64,27], index: 0, kind: input, shape index: {}]
  %s1 = inlined_call_operand.vmem [shape: bf16[27,40], index: 1, kind: input, shape index: {}]
  %s2 = inlined_call_operand.vmem [shape: f32[1,40], index: 2, kind: input, shape index: {}]
  %s3 = inlined_call_operand.vmem [shape: bf16[40,1536], index: 3, kind: input, shape index: {}]
  %s4 = inlined_call_operand.vmem [shape: f32[1,1536], index: 4, kind: input, shape index: {}]
  %s5 = inlined_call_operand.vmem [shape: bf16[1536,512], index: 5, kind: input, shape index: {}]
  %s6 = inlined_call_operand.vmem [shape: f32[1,512], index: 6, kind: input, shape index: {}]
  %s7 = inlined_call_operand.vmem [shape: bf16[512,256], index: 7, kind: input, shape index: {}]
  %s8 = inlined_call_operand.vmem [shape: f32[1,256], index: 8, kind: input, shape index: {}]
  %s9 = inlined_call_operand.vmem [shape: bf16[256,128], index: 9, kind: input, shape index: {}]
  %s10 = inlined_call_operand.vmem [shape: f32[1,128], index: 10, kind: input, shape index: {}]
  %s11 = inlined_call_operand.vmem [shape: f32[2,1,128], index: 11, kind: output, shape index: {}]
  %s12 = sld [smem:[#allocation0]]
  $region85: #{_deepfake_detector_forward.1} parent=0
    _
  %s14 = ssub.s32 1, %s12
  %s15 = scalar_select 0, %s14, %s12
  loop: start=0, step=1, limit=4
  $region2: #{_deepfake_detector_forward.1} parent=0 // loop_pre_header
    _
  $region3: #{_deepfake_detector_forward.1} parent=0 // loop_header
    %s17 = sphi 0, %s21
    %p18 = scmp.ge.s32.totalorder %s17, 4
    %s24 = sphi 0, %s36
    %s25 = sphi 0, %s32
    %s26 = sphi 0, %s24
    %s27 = sphi 0, %s25
    %s28 = sphi 0, %s26
    %s29 = sphi 0, %s27
    %s41 = sphi 0, %s43
    %s44 = sphi 0, %s41
    %s45 = sphi 0, %s44
    %s61 = sphi 0, %s45
    %s65 = sphi 0, %s65
    %s67 = sphi 0, %s65
    %s68 = sphi 0, %s67
    %s82 = sphi 0, %s68
    %s86 = sphi 0, %s86
    %s88 = sphi 0, %s86
    %s89 = sphi 0, %s88
    %s103 = sphi 0, %s89
    %s107 = sphi 0, %s107
    %s109 = sphi 0, %s107
    %s110 = sphi 0, %s109
    %s124 = sphi 0, %s110
    %s128 = sphi 0, %s128
    %s130 = sphi 0, %s128
    %s131 = sphi 0, %s130
    %s145 = sphi 0, %s131
    %s149 = sphi 0, %s149
    %s151 = sphi 0, %s149
    %s152 = sphi 0, %s151
    %s166 = sphi 0, %s152
    %s170 = sphi 0, %s170
    %s172 = sphi 0, %s170
    %s173 = sphi 0, %s172
    %s187 = sphi 0, %s173
    %s191 = sphi 0, %s191
    %s193 = sphi 0, %s191
    %s194 = sphi 0, %s193
    %s208 = sphi 0, %s194
    %s212 = sphi 0, %s212
    %s214 = sphi 0, %s212
    %s215 = sphi 0, %s214
    %s229 = sphi 0, %s215
    %s233 = sphi 0, %s233
    %s235 = sphi 0, %s233
    %s236 = sphi 0, %s235
    %s250 = sphi 0, %s236
    %s254 = sphi 0, %s254
    %s256 = sphi 0, %s254
    %s257 = sphi 0, %s256
    %s271 = sphi 0, %s257
    %s277 = sphi 0, %s279
    %s280 = sphi 0, %s277
    %s281 = sphi 0, %s280
    %s297 = sphi 0, %s281
  $region4: #{_deepfake_detector_forward.1} parent=0 // loop_header_branch
    %20 = sbr.rel (%p18) target = $region8
  $region5: #{_deepfake_detector_forward.1} parent=0 // loop_body
    %s22 = ssub.s32 %s17, 1
    %s23 = ssub.s32 %s17, 2
    %s30 = sadd.s32 1, %s25
    %p31 = scmp.ge.s32.totalorder %s30, 1
    %s32 = scalar_select %p31, 0, %s30
    %s33 = sadd.s32 1, %s24
    %s34 = scalar_select %p31, %s33, %s24
    %p35 = scmp.ge.s32.totalorder %s34, 2
    %s36 = scalar_select %p35, 0, %s34
    %s37 = ssub.s32 %s24, %s36
    %s38 = ssub.s32 %s25, %s32
    %s39 = sor.u32 %s37, %s38
    %p40 = scmp.eq.s32.totalorder %s39, 0
    %s42 = sadd.s32 %s41, 1
    %s43 = scalar_select %p40, %s41, %s42
    %p46 = pneg %p40
    %p47 = scmp.eq.s32.totalorder %s17, 1
    %p48 = por %p46, %p47
    %p49 = scmp.ne.s32.totalorder %s41, %s44
    %p50 = scmp.eq.s32.totalorder %s17, 0
    %p51 = por %p49, %p50
    %p52 = scmp.ne.s32.totalorder %s41, %s44
    %p53 = scmp.eq.s32.totalorder %s22, 1
    %p54 = por %p52, %p53
    %p55 = scmp.ne.s32.totalorder %s44, %s45
    %p56 = scmp.eq.s32.totalorder %s22, 0
    %p57 = por %p55, %p56
    %p58 = scmp.ne.s32.totalorder %s44, %s45
    %p59 = scmp.eq.s32.totalorder %s23, 1
    %p60 = por %p58, %p59
    %p62 = scmp.ne.s32.totalorder %s45, %s61
    %p63 = scmp.eq.s32.totalorder %s23, 0
    %p64 = por %p62, %p63
    %s66 = sadd.s32 %s65, 1
    %p69 = scmp.eq.s32.totalorder %s17, 1
    %p70 = scmp.ne.s32.totalorder %s65, %s67
    %p71 = scmp.eq.s32.totalorder %s17, 0
    %p72 = por %p70, %p71
    %p73 = scmp.ne.s32.totalorder %s65, %s67
    %p74 = scmp.eq.s32.totalorder %s22, 1
    %p75 = por %p73, %p74
    %p76 = scmp.ne.s32.totalorder %s67, %s68
    %p77 = scmp.eq.s32.totalorder %s22, 0
    %p78 = por %p76, %p77
    %p79 = scmp.ne.s32.totalorder %s67, %s68
    %p80 = scmp.eq.s32.totalorder %s23, 1
    %p81 = por %p79, %p80
    %p83 = scmp.ne.s32.totalorder %s68, %s82
    %p84 = scmp.eq.s32.totalorder %s23, 0
    %p85 = por %p83, %p84
    %s87 = sadd.s32 %s86, 1
    %p90 = scmp.eq.s32.totalorder %s17, 1
    %p91 = scmp.ne.s32.totalorder %s86, %s88
    %p92 = scmp.eq.s32.totalorder %s17, 0
    %p93 = por %p91, %p92
    %p94 = scmp.ne.s32.totalorder %s86, %s88
    %p95 = scmp.eq.s32.totalorder %s22, 1
    %p96 = por %p94, %p95
    %p97 = scmp.ne.s32.totalorder %s88, %s89
    %p98 = scmp.eq.s32.totalorder %s22, 0
    %p99 = por %p97, %p98
    %p100 = scmp.ne.s32.totalorder %s88, %s89
    %p101 = scmp.eq.s32.totalorder %s23, 1
    %p102 = por %p100, %p101
    %p104 = scmp.ne.s32.totalorder %s89, %s103
    %p105 = scmp.eq.s32.totalorder %s23, 0
    %p106 = por %p104, %p105
    %s108 = sadd.s32 %s107, 1
    %p111 = scmp.eq.s32.totalorder %s17, 1
    %p112 = scmp.ne.s32.totalorder %s107, %s109
    %p113 = scmp.eq.s32.totalorder %s17, 0
    %p114 = por %p112, %p113
    %p115 = scmp.ne.s32.totalorder %s107, %s109
    %p116 = scmp.eq.s32.totalorder %s22, 1
    %p117 = por %p115, %p116
    %p118 = scmp.ne.s32.totalorder %s109, %s110
    %p119 = scmp.eq.s32.totalorder %s22, 0
    %p120 = por %p118, %p119
    %p121 = scmp.ne.s32.totalorder %s109, %s110
    %p122 = scmp.eq.s32.totalorder %s23, 1
    %p123 = por %p121, %p122
    %p125 = scmp.ne.s32.totalorder %s110, %s124
    %p126 = scmp.eq.s32.totalorder %s23, 0
    %p127 = por %p125, %p126
    %s129 = sadd.s32 %s128, 1
    %p132 = scmp.eq.s32.totalorder %s17, 1
    %p133 = scmp.ne.s32.totalorder %s128, %s130
    %p134 = scmp.eq.s32.totalorder %s17, 0
    %p135 = por %p133, %p134
    %p136 = scmp.ne.s32.totalorder %s128, %s130
    %p137 = scmp.eq.s32.totalorder %s22, 1
    %p138 = por %p136, %p137
    %p139 = scmp.ne.s32.totalorder %s130, %s131
    %p140 = scmp.eq.s32.totalorder %s22, 0
    %p141 = por %p139, %p140
    %p142 = scmp.ne.s32.totalorder %s130, %s131
    %p143 = scmp.eq.s32.totalorder %s23, 1
    %p144 = por %p142, %p143
    %p146 = scmp.ne.s32.totalorder %s131, %s145
    %p147 = scmp.eq.s32.totalorder %s23, 0
    %p148 = por %p146, %p147
    %s150 = sadd.s32 %s149, 1
    %p153 = scmp.eq.s32.totalorder %s17, 1
    %p154 = scmp.ne.s32.totalorder %s149, %s151
    %p155 = scmp.eq.s32.totalorder %s17, 0
    %p156 = por %p154, %p155
    %p157 = scmp.ne.s32.totalorder %s149, %s151
    %p158 = scmp.eq.s32.totalorder %s22, 1
    %p159 = por %p157, %p158
    %p160 = scmp.ne.s32.totalorder %s151, %s152
    %p161 = scmp.eq.s32.totalorder %s22, 0
    %p162 = por %p160, %p161
    %p163 = scmp.ne.s32.totalorder %s151, %s152
    %p164 = scmp.eq.s32.totalorder %s23, 1
    %p165 = por %p163, %p164
    %p167 = scmp.ne.s32.totalorder %s152, %s166
    %p168 = scmp.eq.s32.totalorder %s23, 0
    %p169 = por %p167, %p168
    %s171 = sadd.s32 %s170, 1
    %p174 = scmp.eq.s32.totalorder %s17, 1
    %p175 = scmp.ne.s32.totalorder %s170, %s172
    %p176 = scmp.eq.s32.totalorder %s17, 0
    %p177 = por %p175, %p176
    %p178 = scmp.ne.s32.totalorder %s170, %s172
    %p179 = scmp.eq.s32.totalorder %s22, 1
    %p180 = por %p178, %p179
    %p181 = scmp.ne.s32.totalorder %s172, %s173
    %p182 = scmp.eq.s32.totalorder %s22, 0
    %p183 = por %p181, %p182
    %p184 = scmp.ne.s32.totalorder %s172, %s173
    %p185 = scmp.eq.s32.totalorder %s23, 1
    %p186 = por %p184, %p185
    %p188 = scmp.ne.s32.totalorder %s173, %s187
    %p189 = scmp.eq.s32.totalorder %s23, 0
    %p190 = por %p188, %p189
    %s192 = sadd.s32 %s191, 1
    %p195 = scmp.eq.s32.totalorder %s17, 1
    %p196 = scmp.ne.s32.totalorder %s191, %s193
    %p197 = scmp.eq.s32.totalorder %s17, 0
    %p198 = por %p196, %p197
    %p199 = scmp.ne.s32.totalorder %s191, %s193
    %p200 = scmp.eq.s32.totalorder %s22, 1
    %p201 = por %p199, %p200
    %p202 = scmp.ne.s32.totalorder %s193, %s194
    %p203 = scmp.eq.s32.totalorder %s22, 0
    %p204 = por %p202, %p203
    %p205 = scmp.ne.s32.totalorder %s193, %s194
    %p206 = scmp.eq.s32.totalorder %s23, 1
    %p207 = por %p205, %p206
    %p209 = scmp.ne.s32.totalorder %s194, %s208
    %p210 = scmp.eq.s32.totalorder %s23, 0
    %p211 = por %p209, %p210
    %s213 = sadd.s32 %s212, 1
    %p216 = scmp.eq.s32.totalorder %s17, 1
    %p217 = scmp.ne.s32.totalorder %s212, %s214
    %p218 = scmp.eq.s32.totalorder %s17, 0
    %p219 = por %p217, %p218
    %p220 = scmp.ne.s32.totalorder %s212, %s214
    %p221 = scmp.eq.s32.totalorder %s22, 1
    %p222 = por %p220, %p221
    %p223 = scmp.ne.s32.totalorder %s214, %s215
    %p224 = scmp.eq.s32.totalorder %s22, 0
    %p225 = por %p223, %p224
    %p226 = scmp.ne.s32.totalorder %s214, %s215
    %p227 = scmp.eq.s32.totalorder %s23, 1
    %p228 = por %p226, %p227
    %p230 = scmp.ne.s32.totalorder %s215, %s229
    %p231 = scmp.eq.s32.totalorder %s23, 0
    %p232 = por %p230, %p231
    %s234 = sadd.s32 %s233, 1
    %p237 = scmp.eq.s32.totalorder %s17, 1
    %p238 = scmp.ne.s32.totalorder %s233, %s235
    %p239 = scmp.eq.s32.totalorder %s17, 0
    %p240 = por %p238, %p239
    %p241 = scmp.ne.s32.totalorder %s233, %s235
    %p242 = scmp.eq.s32.totalorder %s22, 1
    %p243 = por %p241, %p242
    %p244 = scmp.ne.s32.totalorder %s235, %s236
    %p245 = scmp.eq.s32.totalorder %s22, 0
    %p246 = por %p244, %p245
    %p247 = scmp.ne.s32.totalorder %s235, %s236
    %p248 = scmp.eq.s32.totalorder %s23, 1
    %p249 = por %p247, %p248
    %p251 = scmp.ne.s32.totalorder %s236, %s250
    %p252 = scmp.eq.s32.totalorder %s23, 0
    %p253 = por %p251, %p252
    %s255 = sadd.s32 %s254, 1
    %p258 = scmp.eq.s32.totalorder %s17, 1
    %p259 = scmp.ne.s32.totalorder %s254, %s256
    %p260 = scmp.eq.s32.totalorder %s17, 0
    %p261 = por %p259, %p260
    %p262 = scmp.ne.s32.totalorder %s254, %s256
    %p263 = scmp.eq.s32.totalorder %s22, 1
    %p264 = por %p262, %p263
    %p265 = scmp.ne.s32.totalorder %s256, %s257
    %p266 = scmp.eq.s32.totalorder %s22, 0
    %p267 = por %p265, %p266
    %p268 = scmp.ne.s32.totalorder %s256, %s257
    %p269 = scmp.eq.s32.totalorder %s23, 1
    %p270 = por %p268, %p269
    %p272 = scmp.ne.s32.totalorder %s257, %s271
    %p273 = scmp.eq.s32.totalorder %s23, 0
    %p274 = por %p272, %p273
    %s275 = ssub.s32 %s24, %s36
    %p276 = scmp.eq.s32.totalorder %s275, 0
    %s278 = sadd.s32 %s277, 1
    %s279 = scalar_select %p276, %s277, %s278
    %p282 = pneg %p276
    %p283 = scmp.eq.s32.totalorder %s17, 1
    %p284 = por %p282, %p283
    %p285 = scmp.ne.s32.totalorder %s277, %s280
    %p286 = scmp.eq.s32.totalorder %s17, 0
    %p287 = por %p285, %p286
    %p288 = scmp.ne.s32.totalorder %s277, %s280
    %p289 = scmp.eq.s32.totalorder %s22, 1
    %p290 = por %p288, %p289
    %p291 = scmp.ne.s32.totalorder %s280, %s281
    %p292 = scmp.eq.s32.totalorder %s22, 0
    %p293 = por %p291, %p292
    %p294 = scmp.ne.s32.totalorder %s280, %s281
    %p295 = scmp.eq.s32.totalorder %s23, 1
    %p296 = por %p294, %p295
    %p298 = scmp.ne.s32.totalorder %s281, %s297
    %p299 = scmp.eq.s32.totalorder %s23, 0
    %p300 = por %p298, %p299
    %p301 = scmp.le.s32.totalorder 1, %s17
    %p302 = scmp.lt.s32.totalorder %s17, 3
    %p303 = pnand %p301, %p302
    %p304 = pneg %p303
    // Predicated region
    $region9: #{_deepfake_detector_forward.1} parent=5 // pred_check
      _
    $region10: #{_deepfake_detector_forward.1} parent=5 // pred_check_branch
      %306 = sbr.rel (%p303) target = $region12
    $region11: #{_deepfake_detector_forward.1} parent=5 // pred_region
      %s307 = ssub.s32 %s17, 1
      // Predicated region
      $region13: #{_deepfake_detector_forward.1} parent=11 // pred_check
        %p308 = pneg %p78
      $region14: #{_deepfake_detector_forward.1} parent=11 // pred_check_branch
        %310 = sbr.rel (%p308) target = $region16
      $region15: #{_deepfake_detector_forward.1} parent=11 // pred_region
        _
      $region16: #{_deepfake_detector_forward.1} parent=11 // pred_fallthru
        _
      // Predicated region
      $region17: #{_deepfake_detector_forward.1} parent=11 // pred_check
        %p311 = pneg %p99
      $region18: #{_deepfake_detector_forward.1} parent=11 // pred_check_branch
        %313 = sbr.rel (%p311) target = $region20
      $region19: #{_deepfake_detector_forward.1} parent=11 // pred_region
        _
      $region20: #{_deepfake_detector_forward.1} parent=11 // pred_fallthru
        _
      // Predicated region
      $region21: #{_deepfake_detector_forward.1} parent=11 // pred_check
        %p314 = pneg %p120
      $region22: #{_deepfake_detector_forward.1} parent=11 // pred_check_branch
        %316 = sbr.rel (%p314) target = $region24
      $region23: #{_deepfake_detector_forward.1} parent=11 // pred_region
        _
      $region24: #{_deepfake_detector_forward.1} parent=11 // pred_fallthru
        _
      // Predicated region
      $region25: #{_deepfake_detector_forward.1} parent=11 // pred_check
        %p317 = pneg %p141
      $region26: #{_deepfake_detector_forward.1} parent=11 // pred_check_branch
        %319 = sbr.rel (%p317) target = $region28
      $region27: #{_deepfake_detector_forward.1} parent=11 // pred_region
        _
      $region28: #{_deepfake_detector_forward.1} parent=11 // pred_fallthru
        _
      // Predicated region
      $region29: #{_deepfake_detector_forward.1} parent=11 // pred_check
        %p320 = pneg %p162
      $region30: #{_deepfake_detector_forward.1} parent=11 // pred_check_branch
        %322 = sbr.rel (%p320) target = $region32
      $region31: #{_deepfake_detector_forward.1} parent=11 // pred_region
        _
      $region32: #{_deepfake_detector_forward.1} parent=11 // pred_fallthru
        _
      // Predicated region
      $region33: #{_deepfake_detector_forward.1} parent=11 // pred_check
        %p323 = pneg %p183
      $region34: #{_deepfake_detector_forward.1} parent=11 // pred_check_branch
        %325 = sbr.rel (%p323) target = $region36
      $region35: #{_deepfake_detector_forward.1} parent=11 // pred_region
        _
      $region36: #{_deepfake_detector_forward.1} parent=11 // pred_fallthru
        _
      // Predicated region
      $region37: #{_deepfake_detector_forward.1} parent=11 // pred_check
        %p326 = pneg %p204
      $region38: #{_deepfake_detector_forward.1} parent=11 // pred_check_branch
        %328 = sbr.rel (%p326) target = $region40
      $region39: #{_deepfake_detector_forward.1} parent=11 // pred_region
        _
      $region40: #{_deepfake_detector_forward.1} parent=11 // pred_fallthru
        _
      // Predicated region
      $region41: #{_deepfake_detector_forward.1} parent=11 // pred_check
        %p329 = pneg %p225
      $region42: #{_deepfake_detector_forward.1} parent=11 // pred_check_branch
        %331 = sbr.rel (%p329) target = $region44
      $region43: #{_deepfake_detector_forward.1} parent=11 // pred_region
        _
      $region44: #{_deepfake_detector_forward.1} parent=11 // pred_fallthru
        _
      // Predicated region
      $region45: #{_deepfake_detector_forward.1} parent=11 // pred_check
        %p332 = pneg %p246
      $region46: #{_deepfake_detector_forward.1} parent=11 // pred_check_branch
        %334 = sbr.rel (%p332) target = $region48
      $region47: #{_deepfake_detector_forward.1} parent=11 // pred_region
        _
      $region48: #{_deepfake_detector_forward.1} parent=11 // pred_fallthru
        _
      // Predicated region
      $region49: #{_deepfake_detector_forward.1} parent=11 // pred_check
        %p335 = pneg %p267
      $region50: #{_deepfake_detector_forward.1} parent=11 // pred_check_branch
        %337 = sbr.rel (%p335) target = $region52
      $region51: #{_deepfake_detector_forward.1} parent=11 // pred_region
        _
      $region52: #{_deepfake_detector_forward.1} parent=11 // pred_fallthru
        _
    $region12: #{_deepfake_detector_forward.1} parent=5 // pred_fallthru
      _
    %p338 = scmp.lt.s32.totalorder %s17, 2
    // Predicated region
    $region53: #{_deepfake_detector_forward.1} parent=5 // pred_check
      %p339 = pneg %p338
    $region54: #{_deepfake_detector_forward.1} parent=5 // pred_check_branch
      %341 = sbr.rel (%p339) target = $region56
    $region55: #{_deepfake_detector_forward.1} parent=5 // pred_region
      // Predicated region
      $region57: #{_deepfake_detector_forward.1} parent=55 // pred_check
        %p342 = pneg %p51
      $region58: #{_deepfake_detector_forward.1} parent=55 // pred_check_branch
        %344 = sbr.rel (%p342) target = $region60
      $region59: #{_deepfake_detector_forward.1} parent=55 // pred_region
        %s345 = smul.u32 8, %s25
        %p346 = scmp.lt.s32.totalorder %s24, 1
        %s347 = scalar_select %p346, %s24, 1
        %p348 = scmp.lt.s32.totalorder %s345, 7
        %s349 = scalar_select %p348, %s345, 7
        %s350 = smul.addr %s347, 8
        %s351 = sadd.s32 %s349, %s350
        %s352 = smul.addr %s351, 4
        %s353 = scalar_lea.vmem %s0, %s352
        %s354 = smul.u32 8, %s25
      $region60: #{_deepfake_detector_forward.1} parent=55 // pred_fallthru
        _
    $region56: #{_deepfake_detector_forward.1} parent=5 // pred_fallthru
      _
    %p355 = scmp.le.s32.totalorder 1, %s17
    %p356 = scmp.lt.s32.totalorder %s17, 3
    %p357 = pnand %p355, %p356
    %p358 = pneg %p357
    // Predicated region
    $region61: #{_deepfake_detector_forward.1} parent=5 // pred_check
      _
    $region62: #{_deepfake_detector_forward.1} parent=5 // pred_check_branch
      %360 = sbr.rel (%p357) target = $region64
    $region63: #{_deepfake_detector_forward.1} parent=5 // pred_region
      %s361 = ssub.s32 %s17, 1
      %s362 = smul.u32 8, %s27
      %p363 = scmp.lt.s32.totalorder %s26, 1
      %s364 = scalar_select %p363, %s26, 1
      %p365 = scmp.lt.s32.totalorder %s362, 7
      %s366 = scalar_select %p365, %s362, 7
      %s367 = smul.addr %s364, 8
      %s368 = sadd.s32 %s366, %s367
      %s369 = smul.addr %s368, 4
      %s370 = scalar_lea.vmem %s0, %s369
      %p371 = pneg %p57
      %p372 = pneg %p54
      %p373 = pneg %p78
      %p374 = pneg %p75
      %p375 = pneg %p99
      %p376 = pneg %p96
      %p377 = pneg %p120
      %p378 = pneg %p117
      %p379 = pneg %p141
      %p380 = pneg %p138
      %p381 = pneg %p162
      %p382 = pneg %p159
      %p383 = pneg %p183
      %p384 = pneg %p180
      %p385 = pneg %p204
      %p386 = pneg %p201
      %p387 = pneg %p225
      %p388 = pneg %p222
      %p389 = pneg %p246
      %p390 = pneg %p243
      %p391 = pneg %p267
      %p392 = pneg %p264
      %p393 = pneg %p293
      %p394 = pneg %p290
      %p395 = scmp.lt.s32.totalorder %s26, 1
      %s396 = scalar_select %p395, %s26, 1
      %s397 = scalar_lea.vmem %s11, %s396
      %s398 = smul.u32 8, %s27
      %p399 = scmp.lt.s32.totalorder %s26, 1
      %s400 = scalar_select %p399, %s26, 1
      %p401 = scmp.lt.s32.totalorder %s398, 7
      %s402 = scalar_select %p401, %s398, 7
      %s403 = smul.addr %s400, 8
      %s404 = sadd.s32 %s402, %s403
      %s405 = smul.addr %s404, 4
      %s406 = scalar_lea.vmem %s0, %s405
      %s407 = smul.u32 8, %s27
      %p408 = scmp.lt.s32.totalorder %s26, 1
      %s409 = scalar_select %p408, %s26, 1
      %s410 = scalar_lea.vmem %s11, %s409
      %p412 = scmp.eq.s32.totalorder %s27, 0
      // Predicated region
      $region65: #{_deepfake_detector_forward.1} parent=63 // pred_check
        %p413 = pneg %p412
      $region66: #{_deepfake_detector_forward.1} parent=63 // pred_check_branch
        %415 = sbr.rel (%p413) target = $region68
      $region67: #{_deepfake_detector_forward.1} parent=63 // pred_region
        %416 = vst [vmem:[#allocation2] sm:$0xff] 0.0
        %417 = vst [vmem:[#allocation2 + $0x8] sm:$0xff] 0.0
        %418 = vst [vmem:[#allocation2 + $0x10] sm:$0xff] 0.0
        %419 = vst [vmem:[#allocation2 + $0x18] sm:$0xff] 0.0
        %420 = vst [vmem:[#allocation2 + $0x20] sm:$0xff] 0.0
        %421 = vst [vmem:[#allocation2 + $0x28] sm:$0xff] 0.0
        %422 = vst [vmem:[#allocation2 + $0x30] sm:$0xff] 0.0
        %423 = vst [vmem:[#allocation2 + $0x38] sm:$0xff] 0.0
        %424 = vst [vmem:[#allocation2 + $0x40] sm:$0xff] 0.0
        %425 = vst [vmem:[#allocation2 + $0x48] sm:$0xff] 0.0
        %426 = vst [vmem:[#allocation2 + $0x50] sm:$0xff] 0.0
        %427 = vst [vmem:[#allocation2 + $0x58] sm:$0xff] 0.0
      $region68: #{_deepfake_detector_forward.1} parent=63 // pred_fallthru
        _
      %v428 = vld [vmem:[%s406] sm:$0xf]
      %v429 = vld [vmem:[%s406 + $0x4] sm:$0xf]
      %v430 = vld [vmem:[%s406 + $0x8] sm:$0xf]
      %v431 = vld [vmem:[%s406 + $0xc] sm:$0xf]
      %v432 = vld [vmem:[%s406 + $0x10] sm:$0xf]
      %v433 = vld [vmem:[%s406 + $0x14] sm:$0xf]
      %v434 = vld [vmem:[%s406 + $0x18] sm:$0xf]
      %v435 = vld [vmem:[%s406 + $0x1c] sm:$0xf]
      %v436 = vld [vmem:[%s1] sm:$0xf]
      %v437 = vld [vmem:[%s1 + $0x4] sm:$0xf]
      %v438 = vld [vmem:[%s1 + $0x8] sm:$0xf]
      %v439 = vld [vmem:[%s1 + $0xc] sm:$0x3]
      %v440 = vld [vmem:[%s2] sm:$0x1]
      %v442 = vlaneseq
      %v443 = vshrl.u32 %v442, 7
      %v444 = vsub.s32 0, %v443
      %v445 = vrot.slane %v440, %v444
      %v455 = vunpack.c.l.b16 %v428
      %v456 = vunpack.c.l.b16 %v429
      %v457 = vunpack.c.l.b16 %v430
      %v458 = vunpack.c.l.b16 %v431
      %v459 = vunpack.c.l.b16 %v432
      %v460 = vunpack.c.l.b16 %v433
      %v461 = vunpack.c.l.b16 %v434
      %v462 = vunpack.c.l.b16 %v435
      %v463 = vpack.c.b16 %v456, %v455
      %v464 = vpack.c.b16 %v458, %v457
      %v465 = vpack.c.b16 %v460, %v459
      %v466 = vpack.c.b16 %v462, %v461
      %v471 = vunpack.c.l.b16 %v436
      %v472 = vunpack.c.l.b16 %v437
      %v473 = vunpack.c.l.b16 %v438
      %v474 = vunpack.c.l.b16 %v439
      %v475 = vpack.c.b16 %v472, %v471
      %v476 = vpack.c.b16 %v474, %v473
      %vm478 = vcmask 220160
      %v480 = vsel %vm478, %v463, 0
      %v483 = vsel %vm478, %v464, 0
      %v486 = vsel %vm478, %v465, 0
      %v489 = vsel %vm478, %v466, 0
      %vm491 = vcmask 1044480
      %vm492 = vcmask 1045504
      %v493 = vsel %vm491, 4294967295, 65535
      %v494 = vsel %vm492, %v493, 0
      %v496 = vand.u32 %v476, %v494
      %498 = vmatprep.subr.bf16.mxu0 0
      %499 = vmatpush1.bf16.msra.mxu0 0
      %500 = vmatprep.subr.bf16.mxu0 0
      %501 = vmatpush1.bf16.msra.mxu0 0
      %502 = vmatprep.subr.bf16.mxu0 0
      %503 = vmatpush1.bf16.msra.mxu0 0
      %504 = vmatprep.subr.bf16.mxu0 0
      %505 = vmatpush1.bf16.msra.mxu0 0
      %506 = vmatprep.subr.bf16.mxu0 0
      %507 = vmatpush1.bf16.msra.mxu0 0
      %508 = vmatprep.subr.bf16.mxu0 0
      %509 = vmatpush1.bf16.msra.mxu0 0
      %510 = vmatprep.subr.bf16.mxu0 0
      %511 = vmatpush1.bf16.msra.mxu0 %v496
      %512 = vmatprep.subr.bf16.mxu0 0
      %513 = vmatpush1.bf16.msra.mxu0 %v475
      %514 = vmatprep.subr.bf16.mxu0 0
      %515 = vmatpush2.bf16.msra.mxu0 0
      %516 = vmatprep.subr.bf16.mxu0 0
      %517 = vmatpush2.bf16.msra.mxu0 0
      %518 = vmatprep.subr.bf16.mxu0 0
      %519 = vmatpush2.bf16.msra.mxu0 0
      %520 = vmatprep.subr.bf16.mxu0 0
      %521 = vmatpush2.bf16.msra.mxu0 0
      %522 = vmatprep.subr.bf16.mxu0 0
      %523 = vmatpush2.bf16.msra.mxu0 0
      %524 = vmatprep.subr.bf16.mxu0 0
      %525 = vmatpush2.bf16.msra.mxu0 0
      %526 = vmatprep.subr.bf16.mxu0 0
      %527 = vmatpush2.bf16.msra.mxu0 0
      %528 = vmatprep.subr.bf16.mxu0 0
      %529 = vmatpush2.bf16.msra.mxu0 0
      %530 = vmatprep.mubr.bf16.mxu0 0
      %531 = vmatmul.mubr.bf16.gmra.mxu0 %v480
      %v532 = vpop.f32.mrf.mxu0
      %v533 = vadd.f32 %v445, %v532
      %v534 = vpop.f32.mrf.mxu0
      %v535 = vpop.f32.mrf.mxu0
      %v536 = vadd.f32 %v445, %v535
      %v537 = vpop.f32.mrf.mxu0
      %538 = vmatprep.mubr.bf16.mxu0 0
      %539 = vmatmul.mubr.bf16.gmra.mxu0 %v483
      %v540 = vpop.f32.mrf.mxu0
      %v541 = vadd.f32 %v445, %v540
      %v542 = vpop.f32.mrf.mxu0
      %v543 = vpop.f32.mrf.mxu0
      %v544 = vadd.f32 %v445, %v543
      %v545 = vpop.f32.mrf.mxu0
      %546 = vmatprep.mubr.bf16.mxu0 0
      %547 = vmatmul.mubr.bf16.gmra.mxu0 %v486
      %v548 = vpop.f32.mrf.mxu0
      %v549 = vadd.f32 %v445, %v548
      %v550 = vpop.f32.mrf.mxu0
      %v551 = vpop.f32.mrf.mxu0
      %v552 = vadd.f32 %v445, %v551
      %v553 = vpop.f32.mrf.mxu0
      %554 = vmatprep.mubr.bf16.mxu0 0
      %555 = vmatmul.mubr.bf16.gmra.mxu0 %v489
      %v556 = vpop.f32.mrf.mxu0
      %v557 = vadd.f32 %v445, %v556
      %v558 = vpop.f32.mrf.mxu0
      %v559 = vpop.f32.mrf.mxu0
      %v560 = vadd.f32 %v445, %v559
      %v561 = vpop.f32.mrf.mxu0
      %562 = vdwg.mxu0
      %v563 = vmul.f32 %v533, 0.5
      %v564 = vmul.f32 %v536, 0.5
      %v565 = vmul.f32 %v541, 0.5
      %v566 = vmul.f32 %v544, 0.5
      %v567 = vmul.f32 %v549, 0.5
      %v568 = vmul.f32 %v552, 0.5
      %v569 = vmul.f32 %v557, 0.5
      %v570 = vmul.f32 %v560, 0.5
      %v571 = vtanh.pop %v563
      %v572 = vtanh.pop %v564
      %v573 = vtanh.pop %v565
      %v574 = vtanh.pop %v566
      %v575 = vtanh.pop %v567
      %v576 = vtanh.pop %v568
      %v577 = vtanh.pop %v569
      %v578 = vtanh.pop %v570
      %v579 = vmul.f32 %v571, 0.5
      %v580 = vmul.f32 %v572, 0.5
      %v581 = vmul.f32 %v573, 0.5
      %v582 = vmul.f32 %v574, 0.5
      %v583 = vmul.f32 %v575, 0.5
      %v584 = vmul.f32 %v576, 0.5
      %v585 = vmul.f32 %v577, 0.5
      %v586 = vmul.f32 %v578, 0.5
      %v587 = vadd.f32 %v579, 0.5
      %v588 = vadd.f32 %v580, 0.5
      %v589 = vadd.f32 %v581, 0.5
      %v590 = vadd.f32 %v582, 0.5
      %v591 = vadd.f32 %v583, 0.5
      %v592 = vadd.f32 %v584, 0.5
      %v593 = vadd.f32 %v585, 0.5
      %v594 = vadd.f32 %v586, 0.5
      %v595 = vmul.f32 %v533, %v587
      %v596 = vmul.f32 %v536, %v588
      %v597 = vmul.f32 %v541, %v589
      %v598 = vmul.f32 %v544, %v590
      %v599 = vmul.f32 %v549, %v591
      %v600 = vmul.f32 %v552, %v592
      %v601 = vmul.f32 %v557, %v593
      %v602 = vmul.f32 %v560, %v594
      %v603 = vpack.c.bf16 %v596, %v595
      %v604 = vpack.c.bf16 %v598, %v597
      %v605 = vpack.c.bf16 %v600, %v599
      %v606 = vpack.c.bf16 %v602, %v601
      %v607 = vld [vmem:[%s3] sm:$0xff]
      %v608 = vld [vmem:[%s3 + $0x8] sm:$0xff]
      %v609 = vld [vmem:[%s3 + $0x10] sm:$0xff]
      %v610 = vld [vmem:[%s3 + $0x18] sm:$0xff]
      %v611 = vld [vmem:[%s3 + $0x20] sm:$0xff]
      %v612 = vld [vmem:[%s3 + $0x28] sm:$0xff]
      %v613 = vld [vmem:[%s3 + $0x30] sm:$0xff]
      %v614 = vld [vmem:[%s3 + $0x38] sm:$0xff]
      %v615 = vld [vmem:[%s3 + $0x40] sm:$0xff]
      %v616 = vld [vmem:[%s3 + $0x48] sm:$0xff]
      %v617 = vld [vmem:[%s3 + $0x50] sm:$0xff]
      %v618 = vld [vmem:[%s3 + $0x58] sm:$0xff]
      %v619 = vld [vmem:[%s3 + $0x60] sm:$0xff]
      %v620 = vld [vmem:[%s3 + $0x68] sm:$0xff]
      %v621 = vld [vmem:[%s3 + $0x70] sm:$0xff]
      %v622 = vld [vmem:[%s3 + $0x78] sm:$0xff]
      %v623 = vld [vmem:[%s3 + $0x80] sm:$0xff]
      %v624 = vld [vmem:[%s3 + $0x88] sm:$0xff]
      %v625 = vld [vmem:[%s3 + $0x90] sm:$0xff]
      %v626 = vld [vmem:[%s3 + $0x98] sm:$0xff]
      %v627 = vld [vmem:[%s3 + $0xa0] sm:$0xff]
      %v628 = vld [vmem:[%s3 + $0xa8] sm:$0xff]
      %v629 = vld [vmem:[%s3 + $0xb0] sm:$0xff]
      %v630 = vld [vmem:[%s3 + $0xb8] sm:$0xff]
      %v631 = vld [vmem:[%s3 + $0xc0] sm:$0xff]
      %v632 = vld [vmem:[%s3 + $0xc8] sm:$0xff]
      %v633 = vld [vmem:[%s3 + $0xd0] sm:$0xff]
      %v634 = vld [vmem:[%s3 + $0xd8] sm:$0xff]
      %v635 = vld [vmem:[%s3 + $0xe0] sm:$0xff]
      %v636 = vld [vmem:[%s3 + $0xe8] sm:$0xff]
      %v637 = vld [vmem:[%s4] sm:$0xff]
      %v638 = vld [vmem:[%s4 + $0x8] sm:$0xf]
      %v641 = vlaneseq
      %v642 = vshrl.u32 %v641, 7
      %v643 = vsub.s32 0, %v642
      %v644 = vrot.slane %v637, %v643
      %v645 = vlaneseq
      %v646 = vshrl.u32 %v645, 7
      %v647 = vsub.s32 1, %v646
      %v648 = vrot.slane %v637, %v647
      %v649 = vlaneseq
      %v650 = vshrl.u32 %v649, 7
      %v651 = vsub.s32 2, %v650
      %v652 = vrot.slane %v637, %v651
      %v653 = vlaneseq
      %v654 = vshrl.u32 %v653, 7
      %v655 = vsub.s32 3, %v654
      %v656 = vrot.slane %v637, %v655
      %v657 = vlaneseq
      %v658 = vshrl.u32 %v657, 7
      %v659 = vsub.s32 4, %v658
      %v660 = vrot.slane %v637, %v659
      %v661 = vlaneseq
      %v662 = vshrl.u32 %v661, 7
      %v663 = vsub.s32 5, %v662
      %v664 = vrot.slane %v637, %v663
      %v665 = vlaneseq
      %v666 = vshrl.u32 %v665, 7
      %v667 = vsub.s32 6, %v666
      %v668 = vrot.slane %v637, %v667
      %v669 = vlaneseq
      %v670 = vshrl.u32 %v669, 7
      %v671 = vsub.s32 7, %v670
      %v672 = vrot.slane %v637, %v671
      %v673 = vlaneseq
      %v674 = vshrl.u32 %v673, 7
      %v675 = vsub.s32 0, %v674
      %v676 = vrot.slane %v638, %v675
      %v677 = vlaneseq
      %v678 = vshrl.u32 %v677, 7
      %v679 = vsub.s32 1, %v678
      %v680 = vrot.slane %v638, %v679
      %v681 = vlaneseq
      %v682 = vshrl.u32 %v681, 7
      %v683 = vsub.s32 2, %v682
      %v684 = vrot.slane %v638, %v683
      %v685 = vlaneseq
      %v686 = vshrl.u32 %v685, 7
      %v687 = vsub.s32 3, %v686
      %v688 = vrot.slane %v638, %v687
      %v731 = vunpack.c.l.b16 %v607
      %v732 = vunpack.c.h.b16 %v607
      %v733 = vunpack.c.l.b16 %v608
      %v734 = vunpack.c.h.b16 %v608
      %v735 = vunpack.c.l.b16 %v609
      %v736 = vunpack.c.h.b16 %v609
      %v737 = vunpack.c.l.b16 %v610
      %v738 = vunpack.c.h.b16 %v610
      %v739 = vunpack.c.l.b16 %v611
      %v740 = vunpack.c.h.b16 %v611
      %v741 = vunpack.c.l.b16 %v612
      %v742 = vunpack.c.h.b16 %v612
      %v743 = vunpack.c.l.b16 %v613
      %v744 = vunpack.c.h.b16 %v613
      %v745 = vunpack.c.l.b16 %v614
      %v746 = vunpack.c.h.b16 %v614
      %v747 = vunpack.c.l.b16 %v615
      %v748 = vunpack.c.h.b16 %v615
      %v749 = vunpack.c.l.b16 %v616
      %v750 = vunpack.c.h.b16 %v616
      %v751 = vunpack.c.l.b16 %v617
      %v752 = vunpack.c.h.b16 %v617
      %v753 = vunpack.c.l.b16 %v618
      %v754 = vunpack.c.h.b16 %v618
      %v755 = vunpack.c.l.b16 %v619
      %v756 = vunpack.c.h.b16 %v619
      %v757 = vunpack.c.l.b16 %v620
      %v758 = vunpack.c.h.b16 %v620
      %v759 = vunpack.c.l.b16 %v621
      %v760 = vunpack.c.h.b16 %v621
      %v761 = vunpack.c.l.b16 %v622
      %v762 = vunpack.c.h.b16 %v622
      %v763 = vunpack.c.l.b16 %v623
      %v764 = vunpack.c.h.b16 %v623
      %v765 = vunpack.c.l.b16 %v624
      %v766 = vunpack.c.h.b16 %v624
      %v767 = vunpack.c.l.b16 %v625
      %v768 = vunpack.c.h.b16 %v625
      %v769 = vunpack.c.l.b16 %v626
      %v770 = vunpack.c.h.b16 %v626
      %v771 = vunpack.c.l.b16 %v627
      %v772 = vunpack.c.h.b16 %v627
      %v773 = vunpack.c.l.b16 %v628
      %v774 = vunpack.c.h.b16 %v628
      %v775 = vunpack.c.l.b16 %v629
      %v776 = vunpack.c.h.b16 %v629
      %v777 = vunpack.c.l.b16 %v630
      %v778 = vunpack.c.h.b16 %v630
      %v779 = vunpack.c.l.b16 %v631
      %v780 = vunpack.c.h.b16 %v631
      %v781 = vunpack.c.l.b16 %v632
      %v782 = vunpack.c.h.b16 %v632
      %v783 = vunpack.c.l.b16 %v633
      %v784 = vunpack.c.h.b16 %v633
      %v785 = vunpack.c.l.b16 %v634
      %v786 = vunpack.c.h.b16 %v634
      %v787 = vunpack.c.l.b16 %v635
      %v788 = vunpack.c.h.b16 %v635
      %v789 = vunpack.c.l.b16 %v636
      %v790 = vunpack.c.h.b16 %v636
      %v791 = vpack.c.b16 %v743, %v731
      %v792 = vpack.c.b16 %v744, %v732
      %v793 = vpack.c.b16 %v745, %v733
      %v794 = vpack.c.b16 %v746, %v734
      %v795 = vpack.c.b16 %v747, %v735
      %v796 = vpack.c.b16 %v748, %v736
      %v797 = vpack.c.b16 %v749, %v737
      %v798 = vpack.c.b16 %v750, %v738
      %v799 = vpack.c.b16 %v751, %v739
      %v800 = vpack.c.b16 %v752, %v740
      %v801 = vpack.c.b16 %v753, %v741
      %v802 = vpack.c.b16 %v754, %v742
      %v803 = vpack.c.b16 %v767, %v755
      %v804 = vpack.c.b16 %v768, %v756
      %v805 = vpack.c.b16 %v769, %v757
      %v806 = vpack.c.b16 %v770, %v758
      %v807 = vpack.c.b16 %v771, %v759
      %v808 = vpack.c.b16 %v772, %v760
      %v809 = vpack.c.b16 %v773, %v761
      %v810 = vpack.c.b16 %v774, %v762
      %v811 = vpack.c.b16 %v775, %v763
      %v812 = vpack.c.b16 %v776, %v764
      %v813 = vpack.c.b16 %v777, %v765
      %v814 = vpack.c.b16 %v778, %v766
      %v815 = vpack.c.b16 %v779, %v779
      %v816 = vpack.c.b16 %v780, %v780
      %v817 = vpack.c.b16 %v781, %v781
      %v818 = vpack.c.b16 %v782, %v782
      %v819 = vpack.c.b16 %v783, %v783
      %v820 = vpack.c.b16 %v784, %v784
      %v821 = vpack.c.b16 %v785, %v785
      %v822 = vpack.c.b16 %v786, %v786
      %v823 = vpack.c.b16 %v787, %v787
      %v824 = vpack.c.b16 %v788, %v788
      %v825 = vpack.c.b16 %v789, %v789
      %v826 = vpack.c.b16 %v790, %v790
      %vm851 = vcmask 326656
      %v853 = vsel %vm851, %v603, 0
      %v856 = vsel %vm851, %v604, 0
      %v859 = vsel %vm851, %v605, 0
      %v862 = vsel %vm851, %v606, 0
      %vm864 = vcmask 1043456
      %v866 = vsel %vm864, %v815, 0
      %v869 = vsel %vm864, %v816, 0
      %v872 = vsel %vm864, %v817, 0
      %v875 = vsel %vm864, %v818, 0
      %v878 = vsel %vm864, %v819, 0
      %v881 = vsel %vm864, %v820, 0
      %v884 = vsel %vm864, %v821, 0
      %v887 = vsel %vm864, %v822, 0
      %v890 = vsel %vm864, %v823, 0
      %v893 = vsel %vm864, %v824, 0
      %v896 = vsel %vm864, %v825, 0
      %v899 = vsel %vm864, %v826, 0
      %901 = vmatprep.subr.bf16.mxu0 0
      %902 = vmatpush1.bf16.msra.mxu0 0
      %903 = vmatprep.subr.bf16.mxu0 0
      %904 = vmatpush1.bf16.msra.mxu0 0
      %905 = vmatprep.subr.bf16.mxu0 0
      %906 = vmatpush1.bf16.msra.mxu0 0
      %907 = vmatprep.subr.bf16.mxu0 0
      %908 = vmatpush1.bf16.msra.mxu0 0
      %909 = vmatprep.subr.bf16.mxu0 0
      %910 = vmatpush1.bf16.msra.mxu0 0
      %911 = vmatprep.subr.bf16.mxu0 %v869
      %912 = vmatpush1.bf16.msra.mxu0 %v866
      %913 = vmatprep.subr.bf16.mxu0 %v804
      %914 = vmatpush1.bf16.msra.mxu0 %v803
      %915 = vmatprep.subr.bf16.mxu0 %v792
      %916 = vmatpush1.bf16.msra.mxu0 %v791
      %917 = vmatprep.subr.bf16.mxu0 0
      %918 = vmatpush2.bf16.msra.mxu0 0
      %919 = vmatprep.subr.bf16.mxu0 0
      %920 = vmatpush2.bf16.msra.mxu0 0
      %921 = vmatprep.subr.bf16.mxu0 0
      %922 = vmatpush2.bf16.msra.mxu0 0
      %923 = vmatprep.subr.bf16.mxu0 0
      %924 = vmatpush2.bf16.msra.mxu0 0
      %925 = vmatprep.subr.bf16.mxu0 0
      %926 = vmatpush2.bf16.msra.mxu0 0
      %927 = vmatprep.subr.bf16.mxu0 0
      %928 = vmatpush2.bf16.msra.mxu0 0
      %929 = vmatprep.subr.bf16.mxu0 0
      %930 = vmatpush2.bf16.msra.mxu0 0
      %931 = vmatprep.subr.bf16.mxu0 0
      %932 = vmatpush2.bf16.msra.mxu0 0
      %933 = vmatprep.mubr.bf16.mxu0 0
      %934 = vmatmul.mubr.bf16.gmra.mxu0 %v853
      %v935 = vpop.f32.mrf.mxu0
      %v936 = vadd.f32 %v644, %v935
      %v937 = vpop.f32.mrf.mxu0
      %v938 = vadd.f32 %v648, %v937
      %v939 = vpop.f32.mrf.mxu0
      %v940 = vadd.f32 %v644, %v939
      %v941 = vpop.f32.mrf.mxu0
      %v942 = vadd.f32 %v648, %v941
      %943 = vmatprep.mubr.bf16.mxu0 0
      %944 = vmatmul.mubr.bf16.gmra.mxu0 %v856
      %v945 = vpop.f32.mrf.mxu0
      %v946 = vadd.f32 %v644, %v945
      %v947 = vpop.f32.mrf.mxu0
      %v948 = vadd.f32 %v648, %v947
      %v949 = vpop.f32.mrf.mxu0
      %v950 = vadd.f32 %v644, %v949
      %v951 = vpop.f32.mrf.mxu0
      %v952 = vadd.f32 %v648, %v951
      %953 = vmatprep.mubr.bf16.mxu0 0
      %954 = vmatmul.mubr.bf16.gmra.mxu0 %v859
      %v955 = vpop.f32.mrf.mxu0
      %v956 = vadd.f32 %v644, %v955
      %v957 = vpop.f32.mrf.mxu0
      %v958 = vadd.f32 %v648, %v957
      %v959 = vpop.f32.mrf.mxu0
      %v960 = vadd.f32 %v644, %v959
      %v961 = vpop.f32.mrf.mxu0
      %v962 = vadd.f32 %v648, %v961
      %963 = vmatprep.mubr.bf16.mxu0 0
      %964 = vmatmul.mubr.bf16.gmra.mxu0 %v862
      %v965 = vpop.f32.mrf.mxu0
      %v966 = vadd.f32 %v644, %v965
      %v967 = vpop.f32.mrf.mxu0
      %v968 = vadd.f32 %v648, %v967
      %v969 = vpop.f32.mrf.mxu0
      %v970 = vadd.f32 %v644, %v969
      %v971 = vpop.f32.mrf.mxu0
      %v972 = vadd.f32 %v648, %v971
      %973 = vdwg.mxu0
      %974 = vmatprep.subr.bf16.mxu0 0
      %975 = vmatpush1.bf16.msra.mxu0 0
      %976 = vmatprep.subr.bf16.mxu0 0
      %977 = vmatpush1.bf16.msra.mxu0 0
      %978 = vmatprep.subr.bf16.mxu0 0
      %979 = vmatpush1.bf16.msra.mxu0 0
      %980 = vmatprep.subr.bf16.mxu0 0
      %981 = vmatpush1.bf16.msra.mxu0 0
      %982 = vmatprep.subr.bf16.mxu0 0
      %983 = vmatpush1.bf16.msra.mxu0 0
      %984 = vmatprep.subr.bf16.mxu0 %v875
      %985 = vmatpush1.bf16.msra.mxu0 %v872
      %986 = vmatprep.subr.bf16.mxu0 %v806
      %987 = vmatpush1.bf16.msra.mxu0 %v805
      %988 = vmatprep.subr.bf16.mxu0 %v794
      %989 = vmatpush1.bf16.msra.mxu0 %v793
      %990 = vmatprep.subr.bf16.mxu0 0
      %991 = vmatpush2.bf16.msra.mxu0 0
      %992 = vmatprep.subr.bf16.mxu0 0
      %993 = vmatpush2.bf16.msra.mxu0 0
      %994 = vmatprep.subr.bf16.mxu0 0
      %995 = vmatpush2.bf16.msra.mxu0 0
      %996 = vmatprep.subr.bf16.mxu0 0
      %997 = vmatpush2.bf16.msra.mxu0 0
      %998 = vmatprep.subr.bf16.mxu0 0
      %999 = vmatpush2.bf16.msra.mxu0 0
      %1000 = vmatprep.subr.bf16.mxu0 0
      %1001 = vmatpush2.bf16.msra.mxu0 0
      %1002 = vmatprep.subr.bf16.mxu0 0
      %1003 = vmatpush2.bf16.msra.mxu0 0
      %1004 = vmatprep.subr.bf16.mxu0 0
      %1005 = vmatpush2.bf16.msra.mxu0 0
      %1006 = vmatprep.mubr.bf16.mxu0 0
      %1007 = vmatmul.mubr.bf16.gmra.mxu0 %v853
      %v1008 = vpop.f32.mrf.mxu0
      %v1009 = vadd.f32 %v652, %v1008
      %v1010 = vpop.f32.mrf.mxu0
      %v1011 = vadd.f32 %v656, %v1010
      %v1012 = vpop.f32.mrf.mxu0
      %v1013 = vadd.f32 %v652, %v1012
      %v1014 = vpop.f32.mrf.mxu0
      %v1015 = vadd.f32 %v656, %v1014
      %1016 = vmatprep.mubr.bf16.mxu0 0
      %1017 = vmatmul.mubr.bf16.gmra.mxu0 %v856
      %v1018 = vpop.f32.mrf.mxu0
      %v1019 = vadd.f32 %v652, %v1018
      %v1020 = vpop.f32.mrf.mxu0
      %v1021 = vadd.f32 %v656, %v1020
      %v1022 = vpop.f32.mrf.mxu0
      %v1023 = vadd.f32 %v652, %v1022
      %v1024 = vpop.f32.mrf.mxu0
      %v1025 = vadd.f32 %v656, %v1024
      %1026 = vmatprep.mubr.bf16.mxu0 0
      %1027 = vmatmul.mubr.bf16.gmra.mxu0 %v859
      %v1028 = vpop.f32.mrf.mxu0
      %v1029 = vadd.f32 %v652, %v1028
      %v1030 = vpop.f32.mrf.mxu0
      %v1031 = vadd.f32 %v656, %v1030
      %v1032 = vpop.f32.mrf.mxu0
      %v1033 = vadd.f32 %v652, %v1032
      %v1034 = vpop.f32.mrf.mxu0
      %v1035 = vadd.f32 %v656, %v1034
      %1036 = vmatprep.mubr.bf16.mxu0 0
      %1037 = vmatmul.mubr.bf16.gmra.mxu0 %v862
      %v1038 = vpop.f32.mrf.mxu0
      %v1039 = vadd.f32 %v652, %v1038
      %v1040 = vpop.f32.mrf.mxu0
      %v1041 = vadd.f32 %v656, %v1040
      %v1042 = vpop.f32.mrf.mxu0
      %v1043 = vadd.f32 %v652, %v1042
      %v1044 = vpop.f32.mrf.mxu0
      %v1045 = vadd.f32 %v656, %v1044
      %1046 = vdwg.mxu0
      %1047 = vmatprep.subr.bf16.mxu0 0
      %1048 = vmatpush1.bf16.msra.mxu0 0
      %1049 = vmatprep.subr.bf16.mxu0 0
      %1050 = vmatpush1.bf16.msra.mxu0 0
      %1051 = vmatprep.subr.bf16.mxu0 0
      %1052 = vmatpush1.bf16.msra.mxu0 0
      %1053 = vmatprep.subr.bf16.mxu0 0
      %1054 = vmatpush1.bf16.msra.mxu0 0
      %1055 = vmatprep.subr.bf16.mxu0 0
      %1056 = vmatpush1.bf16.msra.mxu0 0
      %1057 = vmatprep.subr.bf16.mxu0 %v881
      %1058 = vmatpush1.bf16.msra.mxu0 %v878
      %1059 = vmatprep.subr.bf16.mxu0 %v808
      %1060 = vmatpush1.bf16.msra.mxu0 %v807
      %1061 = vmatprep.subr.bf16.mxu0 %v796
      %1062 = vmatpush1.bf16.msra.mxu0 %v795
      %1063 = vmatprep.subr.bf16.mxu0 0
      %1064 = vmatpush2.bf16.msra.mxu0 0
      %1065 = vmatprep.subr.bf16.mxu0 0
      %1066 = vmatpush2.bf16.msra.mxu0 0
      %1067 = vmatprep.subr.bf16.mxu0 0
      %1068 = vmatpush2.bf16.msra.mxu0 0
      %1069 = vmatprep.subr.bf16.mxu0 0
      %1070 = vmatpush2.bf16.msra.mxu0 0
      %1071 = vmatprep.subr.bf16.mxu0 0
      %1072 = vmatpush2.bf16.msra.mxu0 0
      %1073 = vmatprep.subr.bf16.mxu0 0
      %1074 = vmatpush2.bf16.msra.mxu0 0
      %1075 = vmatprep.subr.bf16.mxu0 0
      %1076 = vmatpush2.bf16.msra.mxu0 0
      %1077 = vmatprep.subr.bf16.mxu0 0
      %1078 = vmatpush2.bf16.msra.mxu0 0
      %1079 = vmatprep.mubr.bf16.mxu0 0
      %1080 = vmatmul.mubr.bf16.gmra.mxu0 %v853
      %v1081 = vpop.f32.mrf.mxu0
      %v1082 = vadd.f32 %v660, %v1081
      %v1083 = vpop.f32.mrf.mxu0
      %v1084 = vadd.f32 %v664, %v1083
      %v1085 = vpop.f32.mrf.mxu0
      %v1086 = vadd.f32 %v660, %v1085
      %v1087 = vpop.f32.mrf.mxu0
      %v1088 = vadd.f32 %v664, %v1087
      %1089 = vmatprep.mubr.bf16.mxu0 0
      %1090 = vmatmul.mubr.bf16.gmra.mxu0 %v856
      %v1091 = vpop.f32.mrf.mxu0
      %v1092 = vadd.f32 %v660, %v1091
      %v1093 = vpop.f32.mrf.mxu0
      %v1094 = vadd.f32 %v664, %v1093
      %v1095 = vpop.f32.mrf.mxu0
      %v1096 = vadd.f32 %v660, %v1095
      %v1097 = vpop.f32.mrf.mxu0
      %v1098 = vadd.f32 %v664, %v1097
      %1099 = vmatprep.mubr.bf16.mxu0 0
      %1100 = vmatmul.mubr.bf16.gmra.mxu0 %v859
      %v1101 = vpop.f32.mrf.mxu0
      %v1102 = vadd.f32 %v660, %v1101
      %v1103 = vpop.f32.mrf.mxu0
      %v1104 = vadd.f32 %v664, %v1103
      %v1105 = vpop.f32.mrf.mxu0
      %v1106 = vadd.f32 %v660, %v1105
      %v1107 = vpop.f32.mrf.mxu0
      %v1108 = vadd.f32 %v664, %v1107
      %1109 = vmatprep.mubr.bf16.mxu0 0
      %1110 = vmatmul.mubr.bf16.gmra.mxu0 %v862
      %v1111 = vpop.f32.mrf.mxu0
      %v1112 = vadd.f32 %v660, %v1111
      %v1113 = vpop.f32.mrf.mxu0
      %v1114 = vadd.f32 %v664, %v1113
      %v1115 = vpop.f32.mrf.mxu0
      %v1116 = vadd.f32 %v660, %v1115
      %v1117 = vpop.f32.mrf.mxu0
      %v1118 = vadd.f32 %v664, %v1117
      %1119 = vdwg.mxu0
      %1120 = vmatprep.subr.bf16.mxu0 0
      %1121 = vmatpush1.bf16.msra.mxu0 0
      %1122 = vmatprep.subr.bf16.mxu0 0
      %1123 = vmatpush1.bf16.msra.mxu0 0
      %1124 = vmatprep.subr.bf16.mxu0 0
      %1125 = vmatpush1.bf16.msra.mxu0 0
      %1126 = vmatprep.subr.bf16.mxu0 0
      %1127 = vmatpush1.bf16.msra.mxu0 0
      %1128 = vmatprep.subr.bf16.mxu0 0
      %1129 = vmatpush1.bf16.msra.mxu0 0
      %1130 = vmatprep.subr.bf16.mxu0 %v887
      %1131 = vmatpush1.bf16.msra.mxu0 %v884
      %1132 = vmatprep.subr.bf16.mxu0 %v810
      %1133 = vmatpush1.bf16.msra.mxu0 %v809
      %1134 = vmatprep.subr.bf16.mxu0 %v798
      %1135 = vmatpush1.bf16.msra.mxu0 %v797
      %1136 = vmatprep.subr.bf16.mxu0 0
      %1137 = vmatpush2.bf16.msra.mxu0 0
      %1138 = vmatprep.subr.bf16.mxu0 0
      %1139 = vmatpush2.bf16.msra.mxu0 0
      %1140 = vmatprep.subr.bf16.mxu0 0
      %1141 = vmatpush2.bf16.msra.mxu0 0
      %1142 = vmatprep.subr.bf16.mxu0 0
      %1143 = vmatpush2.bf16.msra.mxu0 0
      %1144 = vmatprep.subr.bf16.mxu0 0
      %1145 = vmatpush2.bf16.msra.mxu0 0
      %1146 = vmatprep.subr.bf16.mxu0 0
      %1147 = vmatpush2.bf16.msra.mxu0 0
      %1148 = vmatprep.subr.bf16.mxu0 0
      %1149 = vmatpush2.bf16.msra.mxu0 0
      %1150 = vmatprep.subr.bf16.mxu0 0
      %1151 = vmatpush2.bf16.msra.mxu0 0
      %1152 = vmatprep.mubr.bf16.mxu0 0
      %1153 = vmatmul.mubr.bf16.gmra.mxu0 %v853
      %v1154 = vpop.f32.mrf.mxu0
      %v1155 = vadd.f32 %v668, %v1154
      %v1156 = vpop.f32.mrf.mxu0
      %v1157 = vadd.f32 %v672, %v1156
      %v1158 = vpop.f32.mrf.mxu0
      %v1159 = vadd.f32 %v668, %v1158
      %v1160 = vpop.f32.mrf.mxu0
      %v1161 = vadd.f32 %v672, %v1160
      %1162 = vmatprep.mubr.bf16.mxu0 0
      %1163 = vmatmul.mubr.bf16.gmra.mxu0 %v856
      %v1164 = vpop.f32.mrf.mxu0
      %v1165 = vadd.f32 %v668, %v1164
      %v1166 = vpop.f32.mrf.mxu0
      %v1167 = vadd.f32 %v672, %v1166
      %v1168 = vpop.f32.mrf.mxu0
      %v1169 = vadd.f32 %v668, %v1168
      %v1170 = vpop.f32.mrf.mxu0
      %v1171 = vadd.f32 %v672, %v1170
      %1172 = vmatprep.mubr.bf16.mxu0 0
      %1173 = vmatmul.mubr.bf16.gmra.mxu0 %v859
      %v1174 = vpop.f32.mrf.mxu0
      %v1175 = vadd.f32 %v668, %v1174
      %v1176 = vpop.f32.mrf.mxu0
      %v1177 = vadd.f32 %v672, %v1176
      %v1178 = vpop.f32.mrf.mxu0
      %v1179 = vadd.f32 %v668, %v1178
      %v1180 = vpop.f32.mrf.mxu0
      %v1181 = vadd.f32 %v672, %v1180
      %1182 = vmatprep.mubr.bf16.mxu0 0
      %1183 = vmatmul.mubr.bf16.gmra.mxu0 %v862
      %v1184 = vpop.f32.mrf.mxu0
      %v1185 = vadd.f32 %v668, %v1184
      %v1186 = vpop.f32.mrf.mxu0
      %v1187 = vadd.f32 %v672, %v1186
      %v1188 = vpop.f32.mrf.mxu0
      %v1189 = vadd.f32 %v668, %v1188
      %v1190 = vpop.f32.mrf.mxu0
      %v1191 = vadd.f32 %v672, %v1190
      %1192 = vdwg.mxu0
      %1193 = vmatprep.subr.bf16.mxu0 0
      %1194 = vmatpush1.bf16.msra.mxu0 0
      %1195 = vmatprep.subr.bf16.mxu0 0
      %1196 = vmatpush1.bf16.msra.mxu0 0
      %1197 = vmatprep.subr.bf16.mxu0 0
      %1198 = vmatpush1.bf16.msra.mxu0 0
      %1199 = vmatprep.subr.bf16.mxu0 0
      %1200 = vmatpush1.bf16.msra.mxu0 0
      %1201 = vmatprep.subr.bf16.mxu0 0
      %1202 = vmatpush1.bf16.msra.mxu0 0
      %1203 = vmatprep.subr.bf16.mxu0 %v893
      %1204 = vmatpush1.bf16.msra.mxu0 %v890
      %1205 = vmatprep.subr.bf16.mxu0 %v812
      %1206 = vmatpush1.bf16.msra.mxu0 %v811
      %1207 = vmatprep.subr.bf16.mxu0 %v800
      %1208 = vmatpush1.bf16.msra.mxu0 %v799
      %1209 = vmatprep.subr.bf16.mxu0 0
      %1210 = vmatpush2.bf16.msra.mxu0 0
      %1211 = vmatprep.subr.bf16.mxu0 0
      %1212 = vmatpush2.bf16.msra.mxu0 0
      %1213 = vmatprep.subr.bf16.mxu0 0
      %1214 = vmatpush2.bf16.msra.mxu0 0
      %1215 = vmatprep.subr.bf16.mxu0 0
      %1216 = vmatpush2.bf16.msra.mxu0 0
      %1217 = vmatprep.subr.bf16.mxu0 0
      %1218 = vmatpush2.bf16.msra.mxu0 0
      %1219 = vmatprep.subr.bf16.mxu0 0
      %1220 = vmatpush2.bf16.msra.mxu0 0
      %1221 = vmatprep.subr.bf16.mxu0 0
      %1222 = vmatpush2.bf16.msra.mxu0 0
      %1223 = vmatprep.subr.bf16.mxu0 0
      %1224 = vmatpush2.bf16.msra.mxu0 0
      %1225 = vmatprep.mubr.bf16.mxu0 0
      %1226 = vmatmul.mubr.bf16.gmra.mxu0 %v853
      %v1227 = vpop.f32.mrf.mxu0
      %v1228 = vadd.f32 %v676, %v1227
      %v1229 = vpop.f32.mrf.mxu0
      %v1230 = vadd.f32 %v680, %v1229
      %v1231 = vpop.f32.mrf.mxu0
      %v1232 = vadd.f32 %v676, %v1231
      %v1233 = vpop.f32.mrf.mxu0
      %v1234 = vadd.f32 %v680, %v1233
      %1235 = vmatprep.mubr.bf16.mxu0 0
      %1236 = vmatmul.mubr.bf16.gmra.mxu0 %v856
      %v1237 = vpop.f32.mrf.mxu0
      %v1238 = vadd.f32 %v676, %v1237
      %v1239 = vpop.f32.mrf.mxu0
      %v1240 = vadd.f32 %v680, %v1239
      %v1241 = vpop.f32.mrf.mxu0
      %v1242 = vadd.f32 %v676, %v1241
      %v1243 = vpop.f32.mrf.mxu0
      %v1244 = vadd.f32 %v680, %v1243
      %1245 = vmatprep.mubr.bf16.mxu0 0
      %1246 = vmatmul.mubr.bf16.gmra.mxu0 %v859
      %v1247 = vpop.f32.mrf.mxu0
      %v1248 = vadd.f32 %v676, %v1247
      %v1249 = vpop.f32.mrf.mxu0
      %v1250 = vadd.f32 %v680, %v1249
      %v1251 = vpop.f32.mrf.mxu0
      %v1252 = vadd.f32 %v676, %v1251
      %v1253 = vpop.f32.mrf.mxu0
      %v1254 = vadd.f32 %v680, %v1253
      %1255 = vmatprep.mubr.bf16.mxu0 0
      %1256 = vmatmul.mubr.bf16.gmra.mxu0 %v862
      %v1257 = vpop.f32.mrf.mxu0
      %v1258 = vadd.f32 %v676, %v1257
      %v1259 = vpop.f32.mrf.mxu0
      %v1260 = vadd.f32 %v680, %v1259
      %v1261 = vpop.f32.mrf.mxu0
      %v1262 = vadd.f32 %v676, %v1261
      %v1263 = vpop.f32.mrf.mxu0
      %v1264 = vadd.f32 %v680, %v1263
      %1265 = vdwg.mxu0
      %1266 = vmatprep.subr.bf16.mxu0 0
      %1267 = vmatpush1.bf16.msra.mxu0 0
      %1268 = vmatprep.subr.bf16.mxu0 0
      %1269 = vmatpush1.bf16.msra.mxu0 0
      %1270 = vmatprep.subr.bf16.mxu0 0
      %1271 = vmatpush1.bf16.msra.mxu0 0
      %1272 = vmatprep.subr.bf16.mxu0 0
      %1273 = vmatpush1.bf16.msra.mxu0 0
      %1274 = vmatprep.subr.bf16.mxu0 0
      %1275 = vmatpush1.bf16.msra.mxu0 0
      %1276 = vmatprep.subr.bf16.mxu0 %v899
      %1277 = vmatpush1.bf16.msra.mxu0 %v896
      %1278 = vmatprep.subr.bf16.mxu0 %v814
      %1279 = vmatpush1.bf16.msra.mxu0 %v813
      %1280 = vmatprep.subr.bf16.mxu0 %v802
      %1281 = vmatpush1.bf16.msra.mxu0 %v801
      %1282 = vmatprep.subr.bf16.mxu0 0
      %1283 = vmatpush2.bf16.msra.mxu0 0
      %1284 = vmatprep.subr.bf16.mxu0 0
      %1285 = vmatpush2.bf16.msra.mxu0 0
      %1286 = vmatprep.subr.bf16.mxu0 0
      %1287 = vmatpush2.bf16.msra.mxu0 0
      %1288 = vmatprep.subr.bf16.mxu0 0
      %1289 = vmatpush2.bf16.msra.mxu0 0
      %1290 = vmatprep.subr.bf16.mxu0 0
      %1291 = vmatpush2.bf16.msra.mxu0 0
      %1292 = vmatprep.subr.bf16.mxu0 0
      %1293 = vmatpush2.bf16.msra.mxu0 0
      %1294 = vmatprep.subr.bf16.mxu0 0
      %1295 = vmatpush2.bf16.msra.mxu0 0
      %1296 = vmatprep.subr.bf16.mxu0 0
      %1297 = vmatpush2.bf16.msra.mxu0 0
      %1298 = vmatprep.mubr.bf16.mxu0 0
      %1299 = vmatmul.mubr.bf16.gmra.mxu0 %v853
      %v1300 = vpop.f32.mrf.mxu0
      %v1301 = vadd.f32 %v684, %v1300
      %v1302 = vpop.f32.mrf.mxu0
      %v1303 = vadd.f32 %v688, %v1302
      %v1304 = vpop.f32.mrf.mxu0
      %v1305 = vadd.f32 %v684, %v1304
      %v1306 = vpop.f32.mrf.mxu0
      %v1307 = vadd.f32 %v688, %v1306
      %1308 = vmatprep.mubr.bf16.mxu0 0
      %1309 = vmatmul.mubr.bf16.gmra.mxu0 %v856
      %v1310 = vpop.f32.mrf.mxu0
      %v1311 = vadd.f32 %v684, %v1310
      %v1312 = vpop.f32.mrf.mxu0
      %v1313 = vadd.f32 %v688, %v1312
      %v1314 = vpop.f32.mrf.mxu0
      %v1315 = vadd.f32 %v684, %v1314
      %v1316 = vpop.f32.mrf.mxu0
      %v1317 = vadd.f32 %v688, %v1316
      %1318 = vmatprep.mubr.bf16.mxu0 0
      %1319 = vmatmul.mubr.bf16.gmra.mxu0 %v859
      %v1320 = vpop.f32.mrf.mxu0
      %v1321 = vadd.f32 %v684, %v1320
      %v1322 = vpop.f32.mrf.mxu0
      %v1323 = vadd.f32 %v688, %v1322
      %v1324 = vpop.f32.mrf.mxu0
      %v1325 = vadd.f32 %v684, %v1324
      %v1326 = vpop.f32.mrf.mxu0
      %v1327 = vadd.f32 %v688, %v1326
      %1328 = vmatprep.mubr.bf16.mxu0 0
      %1329 = vmatmul.mubr.bf16.gmra.mxu0 %v862
      %v1330 = vpop.f32.mrf.mxu0
      %v1331 = vadd.f32 %v684, %v1330
      %v1332 = vpop.f32.mrf.mxu0
      %v1333 = vadd.f32 %v688, %v1332
      %v1334 = vpop.f32.mrf.mxu0
      %v1335 = vadd.f32 %v684, %v1334
      %v1336 = vpop.f32.mrf.mxu0
      %v1337 = vadd.f32 %v688, %v1336
      %1338 = vdwg.mxu0
      %v1339 = vmul.f32 %v936, 0.5
      %v1340 = vmul.f32 %v938, 0.5
      %v1341 = vmul.f32 %v1009, 0.5
      %v1342 = vmul.f32 %v1011, 0.5
      %v1343 = vmul.f32 %v1082, 0.5
      %v1344 = vmul.f32 %v1084, 0.5
      %v1345 = vmul.f32 %v1155, 0.5
      %v1346 = vmul.f32 %v1157, 0.5
      %v1347 = vmul.f32 %v1228, 0.5
      %v1348 = vmul.f32 %v1230, 0.5
      %v1349 = vmul.f32 %v1301, 0.5
      %v1350 = vmul.f32 %v1303, 0.5
      %v1351 = vmul.f32 %v940, 0.5
      %v1352 = vmul.f32 %v942, 0.5
      %v1353 = vmul.f32 %v1013, 0.5
      %v1354 = vmul.f32 %v1015, 0.5
      %v1355 = vmul.f32 %v1086, 0.5
      %v1356 = vmul.f32 %v1088, 0.5
      %v1357 = vmul.f32 %v1159, 0.5
      %v1358 = vmul.f32 %v1161, 0.5
      %v1359 = vmul.f32 %v1232, 0.5
      %v1360 = vmul.f32 %v1234, 0.5
      %v1361 = vmul.f32 %v1305, 0.5
      %v1362 = vmul.f32 %v1307, 0.5
      %v1363 = vmul.f32 %v946, 0.5
      %v1364 = vmul.f32 %v948, 0.5
      %v1365 = vmul.f32 %v1019, 0.5
      %v1366 = vmul.f32 %v1021, 0.5
      %v1367 = vmul.f32 %v1092, 0.5
      %v1368 = vmul.f32 %v1094, 0.5
      %v1369 = vmul.f32 %v1165, 0.5
      %v1370 = vmul.f32 %v1167, 0.5
      %v1371 = vmul.f32 %v1238, 0.5
      %v1372 = vmul.f32 %v1240, 0.5
      %v1373 = vmul.f32 %v1311, 0.5
      %v1374 = vmul.f32 %v1313, 0.5
      %v1375 = vmul.f32 %v950, 0.5
      %v1376 = vmul.f32 %v952, 0.5
      %v1377 = vmul.f32 %v1023, 0.5
      %v1378 = vmul.f32 %v1025, 0.5
      %v1379 = vmul.f32 %v1096, 0.5
      %v1380 = vmul.f32 %v1098, 0.5
      %v1381 = vmul.f32 %v1169, 0.5
      %v1382 = vmul.f32 %v1171, 0.5
      %v1383 = vmul.f32 %v1242, 0.5
      %v1384 = vmul.f32 %v1244, 0.5
      %v1385 = vmul.f32 %v1315, 0.5
      %v1386 = vmul.f32 %v1317, 0.5
      %v1387 = vmul.f32 %v956, 0.5
      %v1388 = vmul.f32 %v958, 0.5
      %v1389 = vmul.f32 %v1029, 0.5
      %v1390 = vmul.f32 %v1031, 0.5
      %v1391 = vmul.f32 %v1102, 0.5
      %v1392 = vmul.f32 %v1104, 0.5
      %v1393 = vmul.f32 %v1175, 0.5
      %v1394 = vmul.f32 %v1177, 0.5
      %v1395 = vmul.f32 %v1248, 0.5
      %v1396 = vmul.f32 %v1250, 0.5
      %v1397 = vmul.f32 %v1321, 0.5
      %v1398 = vmul.f32 %v1323, 0.5
      %v1399 = vmul.f32 %v960, 0.5
      %v1400 = vmul.f32 %v962, 0.5
      %v1401 = vmul.f32 %v1033, 0.5
      %v1402 = vmul.f32 %v1035, 0.5
      %v1403 = vmul.f32 %v1106, 0.5
      %v1404 = vmul.f32 %v1108, 0.5
      %v1405 = vmul.f32 %v1179, 0.5
      %v1406 = vmul.f32 %v1181, 0.5
      %v1407 = vmul.f32 %v1252, 0.5
      %v1408 = vmul.f32 %v1254, 0.5
      %v1409 = vmul.f32 %v1325, 0.5
      %v1410 = vmul.f32 %v1327, 0.5
      %v1411 = vmul.f32 %v966, 0.5
      %v1412 = vmul.f32 %v968, 0.5
      %v1413 = vmul.f32 %v1039, 0.5
      %v1414 = vmul.f32 %v1041, 0.5
      %v1415 = vmul.f32 %v1112, 0.5
      %v1416 = vmul.f32 %v1114, 0.5
      %v1417 = vmul.f32 %v1185, 0.5
      %v1418 = vmul.f32 %v1187, 0.5
      %v1419 = vmul.f32 %v1258, 0.5
      %v1420 = vmul.f32 %v1260, 0.5
      %v1421 = vmul.f32 %v1331, 0.5
      %v1422 = vmul.f32 %v1333, 0.5
      %v1423 = vmul.f32 %v970, 0.5
      %v1424 = vmul.f32 %v972, 0.5
      %v1425 = vmul.f32 %v1043, 0.5
      %v1426 = vmul.f32 %v1045, 0.5
      %v1427 = vmul.f32 %v1116, 0.5
      %v1428 = vmul.f32 %v1118, 0.5
      %v1429 = vmul.f32 %v1189, 0.5
      %v1430 = vmul.f32 %v1191, 0.5
      %v1431 = vmul.f32 %v1262, 0.5
      %v1432 = vmul.f32 %v1264, 0.5
      %v1433 = vmul.f32 %v1335, 0.5
      %v1434 = vmul.f32 %v1337, 0.5
      %v1435 = vtanh.pop %v1339
      %v1436 = vtanh.pop %v1340
      %v1437 = vtanh.pop %v1341
      %v1438 = vtanh.pop %v1342
      %v1439 = vtanh.pop %v1343
      %v1440 = vtanh.pop %v1344
      %v1441 = vtanh.pop %v1345
      %v1442 = vtanh.pop %v1346
      %v1443 = vtanh.pop %v1347
      %v1444 = vtanh.pop %v1348
      %v1445 = vtanh.pop %v1349
      %v1446 = vtanh.pop %v1350
      %v1447 = vtanh.pop %v1351
      %v1448 = vtanh.pop %v1352
      %v1449 = vtanh.pop %v1353
      %v1450 = vtanh.pop %v1354
      %v1451 = vtanh.pop %v1355
      %v1452 = vtanh.pop %v1356
      %v1453 = vtanh.pop %v1357
      %v1454 = vtanh.pop %v1358
      %v1455 = vtanh.pop %v1359
      %v1456 = vtanh.pop %v1360
      %v1457 = vtanh.pop %v1361
      %v1458 = vtanh.pop %v1362
      %v1459 = vtanh.pop %v1363
      %v1460 = vtanh.pop %v1364
      %v1461 = vtanh.pop %v1365
      %v1462 = vtanh.pop %v1366
      %v1463 = vtanh.pop %v1367
      %v1464 = vtanh.pop %v1368
      %v1465 = vtanh.pop %v1369
      %v1466 = vtanh.pop %v1370
      %v1467 = vtanh.pop %v1371
      %v1468 = vtanh.pop %v1372
      %v1469 = vtanh.pop %v1373
      %v1470 = vtanh.pop %v1374
      %v1471 = vtanh.pop %v1375
      %v1472 = vtanh.pop %v1376
      %v1473 = vtanh.pop %v1377
      %v1474 = vtanh.pop %v1378
      %v1475 = vtanh.pop %v1379
      %v1476 = vtanh.pop %v1380
      %v1477 = vtanh.pop %v1381
      %v1478 = vtanh.pop %v1382
      %v1479 = vtanh.pop %v1383
      %v1480 = vtanh.pop %v1384
      %v1481 = vtanh.pop %v1385
      %v1482 = vtanh.pop %v1386
      %v1483 = vtanh.pop %v1387
      %v1484 = vtanh.pop %v1388
      %v1485 = vtanh.pop %v1389
      %v1486 = vtanh.pop %v1390
      %v1487 = vtanh.pop %v1391
      %v1488 = vtanh.pop %v1392
      %v1489 = vtanh.pop %v1393
      %v1490 = vtanh.pop %v1394
      %v1491 = vtanh.pop %v1395
      %v1492 = vtanh.pop %v1396
      %v1493 = vtanh.pop %v1397
      %v1494 = vtanh.pop %v1398
      %v1495 = vtanh.pop %v1399
      %v1496 = vtanh.pop %v1400
      %v1497 = vtanh.pop %v1401
      %v1498 = vtanh.pop %v1402
      %v1499 = vtanh.pop %v1403
      %v1500 = vtanh.pop %v1404
      %v1501 = vtanh.pop %v1405
      %v1502 = vtanh.pop %v1406
      %v1503 = vtanh.pop %v1407
      %v1504 = vtanh.pop %v1408
      %v1505 = vtanh.pop %v1409
      %v1506 = vtanh.pop %v1410
      %v1507 = vtanh.pop %v1411
      %v1508 = vtanh.pop %v1412
      %v1509 = vtanh.pop %v1413
      %v1510 = vtanh.pop %v1414
      %v1511 = vtanh.pop %v1415
      %v1512 = vtanh.pop %v1416
      %v1513 = vtanh.pop %v1417
      %v1514 = vtanh.pop %v1418
      %v1515 = vtanh.pop %v1419
      %v1516 = vtanh.pop %v1420
      %v1517 = vtanh.pop %v1421
      %v1518 = vtanh.pop %v1422
      %v1519 = vtanh.pop %v1423
      %v1520 = vtanh.pop %v1424
      %v1521 = vtanh.pop %v1425
      %v1522 = vtanh.pop %v1426
      %v1523 = vtanh.pop %v1427
      %v1524 = vtanh.pop %v1428
      %v1525 = vtanh.pop %v1429
      %v1526 = vtanh.pop %v1430
      %v1527 = vtanh.pop %v1431
      %v1528 = vtanh.pop %v1432
      %v1529 = vtanh.pop %v1433
      %v1530 = vtanh.pop %v1434
      %v1531 = vmul.f32 %v1435, 0.5
      %v1532 = vmul.f32 %v1436, 0.5
      %v1533 = vmul.f32 %v1437, 0.5
      %v1534 = vmul.f32 %v1438, 0.5
      %v1535 = vmul.f32 %v1439, 0.5
      %v1536 = vmul.f32 %v1440, 0.5
      %v1537 = vmul.f32 %v1441, 0.5
      %v1538 = vmul.f32 %v1442, 0.5
      %v1539 = vmul.f32 %v1443, 0.5
      %v1540 = vmul.f32 %v1444, 0.5
      %v1541 = vmul.f32 %v1445, 0.5
      %v1542 = vmul.f32 %v1446, 0.5
      %v1543 = vmul.f32 %v1447, 0.5
      %v1544 = vmul.f32 %v1448, 0.5
      %v1545 = vmul.f32 %v1449, 0.5
      %v1546 = vmul.f32 %v1450, 0.5
      %v1547 = vmul.f32 %v1451, 0.5
      %v1548 = vmul.f32 %v1452, 0.5
      %v1549 = vmul.f32 %v1453, 0.5
      %v1550 = vmul.f32 %v1454, 0.5
      %v1551 = vmul.f32 %v1455, 0.5
      %v1552 = vmul.f32 %v1456, 0.5
      %v1553 = vmul.f32 %v1457, 0.5
      %v1554 = vmul.f32 %v1458, 0.5
      %v1555 = vmul.f32 %v1459, 0.5
      %v1556 = vmul.f32 %v1460, 0.5
      %v1557 = vmul.f32 %v1461, 0.5
      %v1558 = vmul.f32 %v1462, 0.5
      %v1559 = vmul.f32 %v1463, 0.5
      %v1560 = vmul.f32 %v1464, 0.5
      %v1561 = vmul.f32 %v1465, 0.5
      %v1562 = vmul.f32 %v1466, 0.5
      %v1563 = vmul.f32 %v1467, 0.5
      %v1564 = vmul.f32 %v1468, 0.5
      %v1565 = vmul.f32 %v1469, 0.5
      %v1566 = vmul.f32 %v1470, 0.5
      %v1567 = vmul.f32 %v1471, 0.5
      %v1568 = vmul.f32 %v1472, 0.5
      %v1569 = vmul.f32 %v1473, 0.5
      %v1570 = vmul.f32 %v1474, 0.5
      %v1571 = vmul.f32 %v1475, 0.5
      %v1572 = vmul.f32 %v1476, 0.5
      %v1573 = vmul.f32 %v1477, 0.5
      %v1574 = vmul.f32 %v1478, 0.5
      %v1575 = vmul.f32 %v1479, 0.5
      %v1576 = vmul.f32 %v1480, 0.5
      %v1577 = vmul.f32 %v1481, 0.5
      %v1578 = vmul.f32 %v1482, 0.5
      %v1579 = vmul.f32 %v1483, 0.5
      %v1580 = vmul.f32 %v1484, 0.5
      %v1581 = vmul.f32 %v1485, 0.5
      %v1582 = vmul.f32 %v1486, 0.5
      %v1583 = vmul.f32 %v1487, 0.5
      %v1584 = vmul.f32 %v1488, 0.5
      %v1585 = vmul.f32 %v1489, 0.5
      %v1586 = vmul.f32 %v1490, 0.5
      %v1587 = vmul.f32 %v1491, 0.5
      %v1588 = vmul.f32 %v1492, 0.5
      %v1589 = vmul.f32 %v1493, 0.5
      %v1590 = vmul.f32 %v1494, 0.5
      %v1591 = vmul.f32 %v1495, 0.5
      %v1592 = vmul.f32 %v1496, 0.5
      %v1593 = vmul.f32 %v1497, 0.5
      %v1594 = vmul.f32 %v1498, 0.5
      %v1595 = vmul.f32 %v1499, 0.5
      %v1596 = vmul.f32 %v1500, 0.5
      %v1597 = vmul.f32 %v1501, 0.5
      %v1598 = vmul.f32 %v1502, 0.5
      %v1599 = vmul.f32 %v1503, 0.5
      %v1600 = vmul.f32 %v1504, 0.5
      %v1601 = vmul.f32 %v1505, 0.5
      %v1602 = vmul.f32 %v1506, 0.5
      %v1603 = vmul.f32 %v1507, 0.5
      %v1604 = vmul.f32 %v1508, 0.5
      %v1605 = vmul.f32 %v1509, 0.5
      %v1606 = vmul.f32 %v1510, 0.5
      %v1607 = vmul.f32 %v1511, 0.5
      %v1608 = vmul.f32 %v1512, 0.5
      %v1609 = vmul.f32 %v1513, 0.5
      %v1610 = vmul.f32 %v1514, 0.5
      %v1611 = vmul.f32 %v1515, 0.5
      %v1612 = vmul.f32 %v1516, 0.5
      %v1613 = vmul.f32 %v1517, 0.5
      %v1614 = vmul.f32 %v1518, 0.5
      %v1615 = vmul.f32 %v1519, 0.5
      %v1616 = vmul.f32 %v1520, 0.5
      %v1617 = vmul.f32 %v1521, 0.5
      %v1618 = vmul.f32 %v1522, 0.5
      %v1619 = vmul.f32 %v1523, 0.5
      %v1620 = vmul.f32 %v1524, 0.5
      %v1621 = vmul.f32 %v1525, 0.5
      %v1622 = vmul.f32 %v1526, 0.5
      %v1623 = vmul.f32 %v1527, 0.5
      %v1624 = vmul.f32 %v1528, 0.5
      %v1625 = vmul.f32 %v1529, 0.5
      %v1626 = vmul.f32 %v1530, 0.5
      %v1627 = vadd.f32 %v1531, 0.5
      %v1628 = vadd.f32 %v1532, 0.5
      %v1629 = vadd.f32 %v1533, 0.5
      %v1630 = vadd.f32 %v1534, 0.5
      %v1631 = vadd.f32 %v1535, 0.5
      %v1632 = vadd.f32 %v1536, 0.5
      %v1633 = vadd.f32 %v1537, 0.5
      %v1634 = vadd.f32 %v1538, 0.5
      %v1635 = vadd.f32 %v1539, 0.5
      %v1636 = vadd.f32 %v1540, 0.5
      %v1637 = vadd.f32 %v1541, 0.5
      %v1638 = vadd.f32 %v1542, 0.5
      %v1639 = vadd.f32 %v1543, 0.5
      %v1640 = vadd.f32 %v1544, 0.5
      %v1641 = vadd.f32 %v1545, 0.5
      %v1642 = vadd.f32 %v1546, 0.5
      %v1643 = vadd.f32 %v1547, 0.5
      %v1644 = vadd.f32 %v1548, 0.5
      %v1645 = vadd.f32 %v1549, 0.5
      %v1646 = vadd.f32 %v1550, 0.5
      %v1647 = vadd.f32 %v1551, 0.5
      %v1648 = vadd.f32 %v1552, 0.5
      %v1649 = vadd.f32 %v1553, 0.5
      %v1650 = vadd.f32 %v1554, 0.5
      %v1651 = vadd.f32 %v1555, 0.5
      %v1652 = vadd.f32 %v1556, 0.5
      %v1653 = vadd.f32 %v1557, 0.5
      %v1654 = vadd.f32 %v1558, 0.5
      %v1655 = vadd.f32 %v1559, 0.5
      %v1656 = vadd.f32 %v1560, 0.5
      %v1657 = vadd.f32 %v1561, 0.5
      %v1658 = vadd.f32 %v1562, 0.5
      %v1659 = vadd.f32 %v1563, 0.5
      %v1660 = vadd.f32 %v1564, 0.5
      %v1661 = vadd.f32 %v1565, 0.5
      %v1662 = vadd.f32 %v1566, 0.5
      %v1663 = vadd.f32 %v1567, 0.5
      %v1664 = vadd.f32 %v1568, 0.5
      %v1665 = vadd.f32 %v1569, 0.5
      %v1666 = vadd.f32 %v1570, 0.5
      %v1667 = vadd.f32 %v1571, 0.5
      %v1668 = vadd.f32 %v1572, 0.5
      %v1669 = vadd.f32 %v1573, 0.5
      %v1670 = vadd.f32 %v1574, 0.5
      %v1671 = vadd.f32 %v1575, 0.5
      %v1672 = vadd.f32 %v1576, 0.5
      %v1673 = vadd.f32 %v1577, 0.5
      %v1674 = vadd.f32 %v1578, 0.5
      %v1675 = vadd.f32 %v1579, 0.5
      %v1676 = vadd.f32 %v1580, 0.5
      %v1677 = vadd.f32 %v1581, 0.5
      %v1678 = vadd.f32 %v1582, 0.5
      %v1679 = vadd.f32 %v1583, 0.5
      %v1680 = vadd.f32 %v1584, 0.5
      %v1681 = vadd.f32 %v1585, 0.5
      %v1682 = vadd.f32 %v1586, 0.5
      %v1683 = vadd.f32 %v1587, 0.5
      %v1684 = vadd.f32 %v1588, 0.5
      %v1685 = vadd.f32 %v1589, 0.5
      %v1686 = vadd.f32 %v1590, 0.5
      %v1687 = vadd.f32 %v1591, 0.5
      %v1688 = vadd.f32 %v1592, 0.5
      %v1689 = vadd.f32 %v1593, 0.5
      %v1690 = vadd.f32 %v1594, 0.5
      %v1691 = vadd.f32 %v1595, 0.5
      %v1692 = vadd.f32 %v1596, 0.5
      %v1693 = vadd.f32 %v1597, 0.5
      %v1694 = vadd.f32 %v1598, 0.5
      %v1695 = vadd.f32 %v1599, 0.5
      %v1696 = vadd.f32 %v1600, 0.5
      %v1697 = vadd.f32 %v1601, 0.5
      %v1698 = vadd.f32 %v1602, 0.5
      %v1699 = vadd.f32 %v1603, 0.5
      %v1700 = vadd.f32 %v1604, 0.5
      %v1701 = vadd.f32 %v1605, 0.5
      %v1702 = vadd.f32 %v1606, 0.5
      %v1703 = vadd.f32 %v1607, 0.5
      %v1704 = vadd.f32 %v1608, 0.5
      %v1705 = vadd.f32 %v1609, 0.5
      %v1706 = vadd.f32 %v1610, 0.5
      %v1707 = vadd.f32 %v1611, 0.5
      %v1708 = vadd.f32 %v1612, 0.5
      %v1709 = vadd.f32 %v1613, 0.5
      %v1710 = vadd.f32 %v1614, 0.5
      %v1711 = vadd.f32 %v1615, 0.5
      %v1712 = vadd.f32 %v1616, 0.5
      %v1713 = vadd.f32 %v1617, 0.5
      %v1714 = vadd.f32 %v1618, 0.5
      %v1715 = vadd.f32 %v1619, 0.5
      %v1716 = vadd.f32 %v1620, 0.5
      %v1717 = vadd.f32 %v1621, 0.5
      %v1718 = vadd.f32 %v1622, 0.5
      %v1719 = vadd.f32 %v1623, 0.5
      %v1720 = vadd.f32 %v1624, 0.5
      %v1721 = vadd.f32 %v1625, 0.5
      %v1722 = vadd.f32 %v1626, 0.5
      %v1723 = vmul.f32 %v936, %v1627
      %v1724 = vmul.f32 %v938, %v1628
      %v1725 = vmul.f32 %v1009, %v1629
      %v1726 = vmul.f32 %v1011, %v1630
      %v1727 = vmul.f32 %v1082, %v1631
      %v1728 = vmul.f32 %v1084, %v1632
      %v1729 = vmul.f32 %v1155, %v1633
      %v1730 = vmul.f32 %v1157, %v1634
      %v1731 = vmul.f32 %v1228, %v1635
      %v1732 = vmul.f32 %v1230, %v1636
      %v1733 = vmul.f32 %v1301, %v1637
      %v1734 = vmul.f32 %v1303, %v1638
      %v1735 = vmul.f32 %v940, %v1639
      %v1736 = vmul.f32 %v942, %v1640
      %v1737 = vmul.f32 %v1013, %v1641
      %v1738 = vmul.f32 %v1015, %v1642
      %v1739 = vmul.f32 %v1086, %v1643
      %v1740 = vmul.f32 %v1088, %v1644
      %v1741 = vmul.f32 %v1159, %v1645
      %v1742 = vmul.f32 %v1161, %v1646
      %v1743 = vmul.f32 %v1232, %v1647
      %v1744 = vmul.f32 %v1234, %v1648
      %v1745 = vmul.f32 %v1305, %v1649
      %v1746 = vmul.f32 %v1307, %v1650
      %v1747 = vmul.f32 %v946, %v1651
      %v1748 = vmul.f32 %v948, %v1652
      %v1749 = vmul.f32 %v1019, %v1653
      %v1750 = vmul.f32 %v1021, %v1654
      %v1751 = vmul.f32 %v1092, %v1655
      %v1752 = vmul.f32 %v1094, %v1656
      %v1753 = vmul.f32 %v1165, %v1657
      %v1754 = vmul.f32 %v1167, %v1658
      %v1755 = vmul.f32 %v1238, %v1659
      %v1756 = vmul.f32 %v1240, %v1660
      %v1757 = vmul.f32 %v1311, %v1661
      %v1758 = vmul.f32 %v1313, %v1662
      %v1759 = vmul.f32 %v950, %v1663
      %v1760 = vmul.f32 %v952, %v1664
      %v1761 = vmul.f32 %v1023, %v1665
      %v1762 = vmul.f32 %v1025, %v1666
      %v1763 = vmul.f32 %v1096, %v1667
      %v1764 = vmul.f32 %v1098, %v1668
      %v1765 = vmul.f32 %v1169, %v1669
      %v1766 = vmul.f32 %v1171, %v1670
      %v1767 = vmul.f32 %v1242, %v1671
      %v1768 = vmul.f32 %v1244, %v1672
      %v1769 = vmul.f32 %v1315, %v1673
      %v1770 = vmul.f32 %v1317, %v1674
      %v1771 = vmul.f32 %v956, %v1675
      %v1772 = vmul.f32 %v958, %v1676
      %v1773 = vmul.f32 %v1029, %v1677
      %v1774 = vmul.f32 %v1031, %v1678
      %v1775 = vmul.f32 %v1102, %v1679
      %v1776 = vmul.f32 %v1104, %v1680
      %v1777 = vmul.f32 %v1175, %v1681
      %v1778 = vmul.f32 %v1177, %v1682
      %v1779 = vmul.f32 %v1248, %v1683
      %v1780 = vmul.f32 %v1250, %v1684
      %v1781 = vmul.f32 %v1321, %v1685
      %v1782 = vmul.f32 %v1323, %v1686
      %v1783 = vmul.f32 %v960, %v1687
      %v1784 = vmul.f32 %v962, %v1688
      %v1785 = vmul.f32 %v1033, %v1689
      %v1786 = vmul.f32 %v1035, %v1690
      %v1787 = vmul.f32 %v1106, %v1691
      %v1788 = vmul.f32 %v1108, %v1692
      %v1789 = vmul.f32 %v1179, %v1693
      %v1790 = vmul.f32 %v1181, %v1694
      %v1791 = vmul.f32 %v1252, %v1695
      %v1792 = vmul.f32 %v1254, %v1696
      %v1793 = vmul.f32 %v1325, %v1697
      %v1794 = vmul.f32 %v1327, %v1698
      %v1795 = vmul.f32 %v966, %v1699
      %v1796 = vmul.f32 %v968, %v1700
      %v1797 = vmul.f32 %v1039, %v1701
      %v1798 = vmul.f32 %v1041, %v1702
      %v1799 = vmul.f32 %v1112, %v1703
      %v1800 = vmul.f32 %v1114, %v1704
      %v1801 = vmul.f32 %v1185, %v1705
      %v1802 = vmul.f32 %v1187, %v1706
      %v1803 = vmul.f32 %v1258, %v1707
      %v1804 = vmul.f32 %v1260, %v1708
      %v1805 = vmul.f32 %v1331, %v1709
      %v1806 = vmul.f32 %v1333, %v1710
      %v1807 = vmul.f32 %v970, %v1711
      %v1808 = vmul.f32 %v972, %v1712
      %v1809 = vmul.f32 %v1043, %v1713
      %v1810 = vmul.f32 %v1045, %v1714
      %v1811 = vmul.f32 %v1116, %v1715
      %v1812 = vmul.f32 %v1118, %v1716
      %v1813 = vmul.f32 %v1189, %v1717
      %v1814 = vmul.f32 %v1191, %v1718
      %v1815 = vmul.f32 %v1262, %v1719
      %v1816 = vmul.f32 %v1264, %v1720
      %v1817 = vmul.f32 %v1335, %v1721
      %v1818 = vmul.f32 %v1337, %v1722
      %v1819 = vld [vmem:[#allocation2] sm:$0xff]
      %v1820 = vld [vmem:[#allocation2 + $0x8] sm:$0xff]
      %v1821 = vld [vmem:[#allocation2 + $0x10] sm:$0xff]
      %v1822 = vld [vmem:[#allocation2 + $0x18] sm:$0xff]
      %v1823 = vld [vmem:[#allocation2 + $0x20] sm:$0xff]
      %v1824 = vld [vmem:[#allocation2 + $0x28] sm:$0xff]
      %v1825 = vld [vmem:[#allocation2 + $0x30] sm:$0xff]
      %v1826 = vld [vmem:[#allocation2 + $0x38] sm:$0xff]
      %v1827 = vld [vmem:[#allocation2 + $0x40] sm:$0xff]
      %v1828 = vld [vmem:[#allocation2 + $0x48] sm:$0xff]
      %v1829 = vld [vmem:[#allocation2 + $0x50] sm:$0xff]
      %v1830 = vld [vmem:[#allocation2 + $0x58] sm:$0xff]
      %v1831 = vadd.f32 %v1723, %v1735
      %v1832 = vadd.f32 %v1831, %v1747
      %v1833 = vadd.f32 %v1832, %v1759
      %v1834 = vadd.f32 %v1833, %v1771
      %v1835 = vadd.f32 %v1834, %v1783
      %v1836 = vadd.f32 %v1835, %v1795
      %v1837 = vadd.f32 %v1836, %v1807
      %v1838 = vadd.f32 %v1724, %v1736
      %v1839 = vadd.f32 %v1838, %v1748
      %v1840 = vadd.f32 %v1839, %v1760
      %v1841 = vadd.f32 %v1840, %v1772
      %v1842 = vadd.f32 %v1841, %v1784
      %v1843 = vadd.f32 %v1842, %v1796
      %v1844 = vadd.f32 %v1843, %v1808
      %v1845 = vadd.f32 %v1725, %v1737
      %v1846 = vadd.f32 %v1845, %v1749
      %v1847 = vadd.f32 %v1846, %v1761
      %v1848 = vadd.f32 %v1847, %v1773
      %v1849 = vadd.f32 %v1848, %v1785
      %v1850 = vadd.f32 %v1849, %v1797
      %v1851 = vadd.f32 %v1850, %v1809
      %v1852 = vadd.f32 %v1726, %v1738
      %v1853 = vadd.f32 %v1852, %v1750
      %v1854 = vadd.f32 %v1853, %v1762
      %v1855 = vadd.f32 %v1854, %v1774
      %v1856 = vadd.f32 %v1855, %v1786
      %v1857 = vadd.f32 %v1856, %v1798
      %v1858 = vadd.f32 %v1857, %v1810
      %v1859 = vadd.f32 %v1727, %v1739
      %v1860 = vadd.f32 %v1859, %v1751
      %v1861 = vadd.f32 %v1860, %v1763
      %v1862 = vadd.f32 %v1861, %v1775
      %v1863 = vadd.f32 %v1862, %v1787
      %v1864 = vadd.f32 %v1863, %v1799
      %v1865 = vadd.f32 %v1864, %v1811
      %v1866 = vadd.f32 %v1728, %v1740
      %v1867 = vadd.f32 %v1866, %v1752
      %v1868 = vadd.f32 %v1867, %v1764
      %v1869 = vadd.f32 %v1868, %v1776
      %v1870 = vadd.f32 %v1869, %v1788
      %v1871 = vadd.f32 %v1870, %v1800
      %v1872 = vadd.f32 %v1871, %v1812
      %v1873 = vadd.f32 %v1729, %v1741
      %v1874 = vadd.f32 %v1873, %v1753
      %v1875 = vadd.f32 %v1874, %v1765
      %v1876 = vadd.f32 %v1875, %v1777
      %v1877 = vadd.f32 %v1876, %v1789
      %v1878 = vadd.f32 %v1877, %v1801
      %v1879 = vadd.f32 %v1878, %v1813
      %v1880 = vadd.f32 %v1730, %v1742
      %v1881 = vadd.f32 %v1880, %v1754
      %v1882 = vadd.f32 %v1881, %v1766
      %v1883 = vadd.f32 %v1882, %v1778
      %v1884 = vadd.f32 %v1883, %v1790
      %v1885 = vadd.f32 %v1884, %v1802
      %v1886 = vadd.f32 %v1885, %v1814
      %v1887 = vadd.f32 %v1731, %v1743
      %v1888 = vadd.f32 %v1887, %v1755
      %v1889 = vadd.f32 %v1888, %v1767
      %v1890 = vadd.f32 %v1889, %v1779
      %v1891 = vadd.f32 %v1890, %v1791
      %v1892 = vadd.f32 %v1891, %v1803
      %v1893 = vadd.f32 %v1892, %v1815
      %v1894 = vadd.f32 %v1732, %v1744
      %v1895 = vadd.f32 %v1894, %v1756
      %v1896 = vadd.f32 %v1895, %v1768
      %v1897 = vadd.f32 %v1896, %v1780
      %v1898 = vadd.f32 %v1897, %v1792
      %v1899 = vadd.f32 %v1898, %v1804
      %v1900 = vadd.f32 %v1899, %v1816
      %v1901 = vadd.f32 %v1733, %v1745
      %v1902 = vadd.f32 %v1901, %v1757
      %v1903 = vadd.f32 %v1902, %v1769
      %v1904 = vadd.f32 %v1903, %v1781
      %v1905 = vadd.f32 %v1904, %v1793
      %v1906 = vadd.f32 %v1905, %v1805
      %v1907 = vadd.f32 %v1906, %v1817
      %v1908 = vadd.f32 %v1734, %v1746
      %v1909 = vadd.f32 %v1908, %v1758
      %v1910 = vadd.f32 %v1909, %v1770
      %v1911 = vadd.f32 %v1910, %v1782
      %v1912 = vadd.f32 %v1911, %v1794
      %v1913 = vadd.f32 %v1912, %v1806
      %v1914 = vadd.f32 %v1913, %v1818
      %v1915 = vadd.f32 %v1819, %v1837
      %v1916 = vadd.f32 %v1820, %v1844
      %v1917 = vadd.f32 %v1821, %v1851
      %v1918 = vadd.f32 %v1822, %v1858
      %v1919 = vadd.f32 %v1823, %v1865
      %v1920 = vadd.f32 %v1824, %v1872
      %v1921 = vadd.f32 %v1825, %v1879
      %v1922 = vadd.f32 %v1826, %v1886
      %v1923 = vadd.f32 %v1827, %v1893
      %v1924 = vadd.f32 %v1828, %v1900
      %v1925 = vadd.f32 %v1829, %v1907
      %v1926 = vadd.f32 %v1830, %v1914
      %1927 = vst [vmem:[#allocation2] sm:$0xff] %v1915
      %1928 = vst [vmem:[#allocation2 + $0x8] sm:$0xff] %v1916
      %1929 = vst [vmem:[#allocation2 + $0x10] sm:$0xff] %v1917
      %1930 = vst [vmem:[#allocation2 + $0x18] sm:$0xff] %v1918
      %1931 = vst [vmem:[#allocation2 + $0x20] sm:$0xff] %v1919
      %1932 = vst [vmem:[#allocation2 + $0x28] sm:$0xff] %v1920
      %1933 = vst [vmem:[#allocation2 + $0x30] sm:$0xff] %v1921
      %1934 = vst [vmem:[#allocation2 + $0x38] sm:$0xff] %v1922
      %1935 = vst [vmem:[#allocation2 + $0x40] sm:$0xff] %v1923
      %1936 = vst [vmem:[#allocation2 + $0x48] sm:$0xff] %v1924
      %1937 = vst [vmem:[#allocation2 + $0x50] sm:$0xff] %v1925
      %1938 = vst [vmem:[#allocation2 + $0x58] sm:$0xff] %v1926
      // Predicated region
      $region69: #{_deepfake_detector_forward.1} parent=63 // pred_check
        %p1939 = pneg %p412
      $region70: #{_deepfake_detector_forward.1} parent=63 // pred_check_branch
        %1941 = sbr.rel (%p1939) target = $region72
      $region71: #{_deepfake_detector_forward.1} parent=63 // pred_region
        %v1942 = vld [vmem:[#allocation2] sm:$0xff]
        %v1943 = vld [vmem:[#allocation2 + $0x8] sm:$0xff]
        %v1944 = vld [vmem:[#allocation2 + $0x10] sm:$0xff]
        %v1945 = vld [vmem:[#allocation2 + $0x18] sm:$0xff]
        %v1946 = vld [vmem:[#allocation2 + $0x20] sm:$0xff]
        %v1947 = vld [vmem:[#allocation2 + $0x28] sm:$0xff]
        %v1948 = vld [vmem:[#allocation2 + $0x30] sm:$0xff]
        %v1949 = vld [vmem:[#allocation2 + $0x38] sm:$0xff]
        %v1950 = vld [vmem:[#allocation2 + $0x40] sm:$0xff]
        %v1951 = vld [vmem:[#allocation2 + $0x48] sm:$0xff]
        %v1952 = vld [vmem:[#allocation2 + $0x50] sm:$0xff]
        %v1953 = vld [vmem:[#allocation2 + $0x58] sm:$0xff]
        %v1954 = vrot.slane %v1942, 4
        %v1955 = vadd.f32 %v1942, %v1954
        %v1956 = vrot.slane %v1955, 2
        %v1957 = vadd.f32 %v1955, %v1956
        %v1958 = vrot.slane %v1957, 1
        %v1959 = vadd.f32 %v1957, %v1958
        %v1960 = vrot.slane %v1943, 4
        %v1961 = vadd.f32 %v1943, %v1960
        %v1962 = vrot.slane %v1961, 2
        %v1963 = vadd.f32 %v1961, %v1962
        %v1964 = vrot.slane %v1963, 1
        %v1965 = vadd.f32 %v1963, %v1964
        %v1966 = vrot.slane %v1944, 4
        %v1967 = vadd.f32 %v1944, %v1966
        %v1968 = vrot.slane %v1967, 2
        %v1969 = vadd.f32 %v1967, %v1968
        %v1970 = vrot.slane %v1969, 1
        %v1971 = vadd.f32 %v1969, %v1970
        %v1972 = vrot.slane %v1945, 4
        %v1973 = vadd.f32 %v1945, %v1972
        %v1974 = vrot.slane %v1973, 2
        %v1975 = vadd.f32 %v1973, %v1974
        %v1976 = vrot.slane %v1975, 1
        %v1977 = vadd.f32 %v1975, %v1976
        %v1978 = vrot.slane %v1946, 4
        %v1979 = vadd.f32 %v1946, %v1978
        %v1980 = vrot.slane %v1979, 2
        %v1981 = vadd.f32 %v1979, %v1980
        %v1982 = vrot.slane %v1981, 1
        %v1983 = vadd.f32 %v1981, %v1982
        %v1984 = vrot.slane %v1947, 4
        %v1985 = vadd.f32 %v1947, %v1984
        %v1986 = vrot.slane %v1985, 2
        %v1987 = vadd.f32 %v1985, %v1986
        %v1988 = vrot.slane %v1987, 1
        %v1989 = vadd.f32 %v1987, %v1988
        %v1990 = vrot.slane %v1948, 4
        %v1991 = vadd.f32 %v1948, %v1990
        %v1992 = vrot.slane %v1991, 2
        %v1993 = vadd.f32 %v1991, %v1992
        %v1994 = vrot.slane %v1993, 1
        %v1995 = vadd.f32 %v1993, %v1994
        %v1996 = vrot.slane %v1949, 4
        %v1997 = vadd.f32 %v1949, %v1996
        %v1998 = vrot.slane %v1997, 2
        %v1999 = vadd.f32 %v1997, %v1998
        %v2000 = vrot.slane %v1999, 1
        %v2001 = vadd.f32 %v1999, %v2000
        %v2002 = vrot.slane %v1950, 4
        %v2003 = vadd.f32 %v1950, %v2002
        %v2004 = vrot.slane %v2003, 2
        %v2005 = vadd.f32 %v2003, %v2004
        %v2006 = vrot.slane %v2005, 1
        %v2007 = vadd.f32 %v2005, %v2006
        %v2008 = vrot.slane %v1951, 4
        %v2009 = vadd.f32 %v1951, %v2008
        %v2010 = vrot.slane %v2009, 2
        %v2011 = vadd.f32 %v2009, %v2010
        %v2012 = vrot.slane %v2011, 1
        %v2013 = vadd.f32 %v2011, %v2012
        %v2014 = vrot.slane %v1952, 4
        %v2015 = vadd.f32 %v1952, %v2014
        %v2016 = vrot.slane %v2015, 2
        %v2017 = vadd.f32 %v2015, %v2016
        %v2018 = vrot.slane %v2017, 1
        %v2019 = vadd.f32 %v2017, %v2018
        %v2020 = vrot.slane %v1953, 4
        %v2021 = vadd.f32 %v1953, %v2020
        %v2022 = vrot.slane %v2021, 2
        %v2023 = vadd.f32 %v2021, %v2022
        %v2024 = vrot.slane %v2023, 1
        %v2025 = vadd.f32 %v2023, %v2024
        %v2026 = vmul.f32 %v1959, 0.015625
        %v2027 = vmul.f32 %v1965, 0.015625
        %v2028 = vmul.f32 %v1971, 0.015625
        %v2029 = vmul.f32 %v1977, 0.015625
        %v2030 = vmul.f32 %v1983, 0.015625
        %v2031 = vmul.f32 %v1989, 0.015625
        %v2032 = vmul.f32 %v1995, 0.015625
        %v2033 = vmul.f32 %v2001, 0.015625
        %v2034 = vmul.f32 %v2007, 0.015625
        %v2035 = vmul.f32 %v2013, 0.015625
        %v2036 = vmul.f32 %v2019, 0.015625
        %v2037 = vmul.f32 %v2025, 0.015625
        %v2038 = vpack.c.bf16 %v2026, %v2026
        %v2039 = vpack.c.bf16 %v2027, %v2027
        %v2040 = vpack.c.bf16 %v2028, %v2028
        %v2041 = vpack.c.bf16 %v2029, %v2029
        %v2042 = vpack.c.bf16 %v2030, %v2030
        %v2043 = vpack.c.bf16 %v2031, %v2031
        %v2044 = vpack.c.bf16 %v2032, %v2032
        %v2045 = vpack.c.bf16 %v2033, %v2033
        %v2046 = vpack.c.bf16 %v2034, %v2034
        %v2047 = vpack.c.bf16 %v2035, %v2035
        %v2048 = vpack.c.bf16 %v2036, %v2036
        %v2049 = vpack.c.bf16 %v2037, %v2037
        %v2050 = vld [vmem:[%s5] sm:$0xff]
        %v2051 = vld [vmem:[%s5 + $0x8] sm:$0xff]
        %v2052 = vld [vmem:[%s5 + $0x10] sm:$0xff]
        %v2053 = vld [vmem:[%s5 + $0x18] sm:$0xff]
        %v2054 = vld [vmem:[%s5 + $0x20] sm:$0xff]
        %v2055 = vld [vmem:[%s5 + $0x28] sm:$0xff]
        %v2056 = vld [vmem:[%s5 + $0x30] sm:$0xff]
        %v2057 = vld [vmem:[%s5 + $0x38] sm:$0xff]
        %v2058 = vld [vmem:[%s5 + $0x40] sm:$0xff]
        %v2059 = vld [vmem:[%s5 + $0x48] sm:$0xff]
        %v2060 = vld [vmem:[%s5 + $0x50] sm:$0xff]
        %v2061 = vld [vmem:[%s5 + $0x58] sm:$0xff]
        %v2062 = vld [vmem:[%s5 + $0x60] sm:$0xff]
        %v2063 = vld [vmem:[%s5 + $0x68] sm:$0xff]
        %v2064 = vld [vmem:[%s5 + $0x70] sm:$0xff]
        %v2065 = vld [vmem:[%s5 + $0x78] sm:$0xff]
        %v2066 = vld [vmem:[%s5 + $0x80] sm:$0xff]
        %v2067 = vld [vmem:[%s5 + $0x88] sm:$0xff]
        %v2068 = vld [vmem:[%s5 + $0x90] sm:$0xff]
        %v2069 = vld [vmem:[%s5 + $0x98] sm:$0xff]
        %v2070 = vld [vmem:[%s5 + $0xa0] sm:$0xff]
        %v2071 = vld [vmem:[%s5 + $0xa8] sm:$0xff]
        %v2072 = vld [vmem:[%s5 + $0xb0] sm:$0xff]
        %v2073 = vld [vmem:[%s5 + $0xb8] sm:$0xff]
        %v2074 = vld [vmem:[%s5 + $0xc0] sm:$0xff]
        %v2075 = vld [vmem:[%s5 + $0xc8] sm:$0xff]
        %v2076 = vld [vmem:[%s5 + $0xd0] sm:$0xff]
        %v2077 = vld [vmem:[%s5 + $0xd8] sm:$0xff]
        %v2078 = vld [vmem:[%s5 + $0xe0] sm:$0xff]
        %v2079 = vld [vmem:[%s5 + $0xe8] sm:$0xff]
        %v2080 = vld [vmem:[%s5 + $0xf0] sm:$0xff]
        %v2081 = vld [vmem:[%s5 + $0xf8] sm:$0xff]
        %v2082 = vld [vmem:[%s5 + $0x100] sm:$0xff]
        %v2083 = vld [vmem:[%s5 + $0x108] sm:$0xff]
        %v2084 = vld [vmem:[%s5 + $0x110] sm:$0xff]
        %v2085 = vld [vmem:[%s5 + $0x118] sm:$0xff]
        %v2086 = vld [vmem:[%s5 + $0x120] sm:$0xff]
        %v2087 = vld [vmem:[%s5 + $0x128] sm:$0xff]
        %v2088 = vld [vmem:[%s5 + $0x130] sm:$0xff]
        %v2089 = vld [vmem:[%s5 + $0x138] sm:$0xff]
        %v2090 = vld [vmem:[%s5 + $0x140] sm:$0xff]
        %v2091 = vld [vmem:[%s5 + $0x148] sm:$0xff]
        %v2092 = vld [vmem:[%s5 + $0x150] sm:$0xff]
        %v2093 = vld [vmem:[%s5 + $0x158] sm:$0xff]
        %v2094 = vld [vmem:[%s5 + $0x160] sm:$0xff]
        %v2095 = vld [vmem:[%s5 + $0x168] sm:$0xff]
        %v2096 = vld [vmem:[%s5 + $0x170] sm:$0xff]
        %v2097 = vld [vmem:[%s5 + $0x178] sm:$0xff]
        %v2098 = vld [vmem:[%s5 + $0x180] sm:$0xff]
        %v2099 = vld [vmem:[%s5 + $0x188] sm:$0xff]
        %v2100 = vld [vmem:[%s5 + $0x190] sm:$0xff]
        %v2101 = vld [vmem:[%s5 + $0x198] sm:$0xff]
        %v2102 = vld [vmem:[%s5 + $0x1a0] sm:$0xff]
        %v2103 = vld [vmem:[%s5 + $0x1a8] sm:$0xff]
        %v2104 = vld [vmem:[%s5 + $0x1b0] sm:$0xff]
        %v2105 = vld [vmem:[%s5 + $0x1b8] sm:$0xff]
        %v2106 = vld [vmem:[%s5 + $0x1c0] sm:$0xff]
        %v2107 = vld [vmem:[%s5 + $0x1c8] sm:$0xff]
        %v2108 = vld [vmem:[%s5 + $0x1d0] sm:$0xff]
        %v2109 = vld [vmem:[%s5 + $0x1d8] sm:$0xff]
        %v2110 = vld [vmem:[%s5 + $0x1e0] sm:$0xff]
        %v2111 = vld [vmem:[%s5 + $0x1e8] sm:$0xff]
        %v2112 = vld [vmem:[%s5 + $0x1f0] sm:$0xff]
        %v2113 = vld [vmem:[%s5 + $0x1f8] sm:$0xff]
        %v2114 = vld [vmem:[%s5 + $0x200] sm:$0xff]
        %v2115 = vld [vmem:[%s5 + $0x208] sm:$0xff]
        %v2116 = vld [vmem:[%s5 + $0x210] sm:$0xff]
        %v2117 = vld [vmem:[%s5 + $0x218] sm:$0xff]
        %v2118 = vld [vmem:[%s5 + $0x220] sm:$0xff]
        %v2119 = vld [vmem:[%s5 + $0x228] sm:$0xff]
        %v2120 = vld [vmem:[%s5 + $0x230] sm:$0xff]
        %v2121 = vld [vmem:[%s5 + $0x238] sm:$0xff]
        %v2122 = vld [vmem:[%s5 + $0x240] sm:$0xff]
        %v2123 = vld [vmem:[%s5 + $0x248] sm:$0xff]
        %v2124 = vld [vmem:[%s5 + $0x250] sm:$0xff]
        %v2125 = vld [vmem:[%s5 + $0x258] sm:$0xff]
        %v2126 = vld [vmem:[%s5 + $0x260] sm:$0xff]
        %v2127 = vld [vmem:[%s5 + $0x268] sm:$0xff]
        %v2128 = vld [vmem:[%s5 + $0x270] sm:$0xff]
        %v2129 = vld [vmem:[%s5 + $0x278] sm:$0xff]
        %v2130 = vld [vmem:[%s5 + $0x280] sm:$0xff]
        %v2131 = vld [vmem:[%s5 + $0x288] sm:$0xff]
        %v2132 = vld [vmem:[%s5 + $0x290] sm:$0xff]
        %v2133 = vld [vmem:[%s5 + $0x298] sm:$0xff]
        %v2134 = vld [vmem:[%s5 + $0x2a0] sm:$0xff]
        %v2135 = vld [vmem:[%s5 + $0x2a8] sm:$0xff]
        %v2136 = vld [vmem:[%s5 + $0x2b0] sm:$0xff]
        %v2137 = vld [vmem:[%s5 + $0x2b8] sm:$0xff]
        %v2138 = vld [vmem:[%s5 + $0x2c0] sm:$0xff]
        %v2139 = vld [vmem:[%s5 + $0x2c8] sm:$0xff]
        %v2140 = vld [vmem:[%s5 + $0x2d0] sm:$0xff]
        %v2141 = vld [vmem:[%s5 + $0x2d8] sm:$0xff]
        %v2142 = vld [vmem:[%s5 + $0x2e0] sm:$0xff]
        %v2143 = vld [vmem:[%s5 + $0x2e8] sm:$0xff]
        %v2144 = vld [vmem:[%s5 + $0x2f0] sm:$0xff]
        %v2145 = vld [vmem:[%s5 + $0x2f8] sm:$0xff]
        %v2146 = vld [vmem:[%s5 + $0x300] sm:$0xff]
        %v2147 = vld [vmem:[%s5 + $0x308] sm:$0xff]
        %v2148 = vld [vmem:[%s5 + $0x310] sm:$0xff]
        %v2149 = vld [vmem:[%s5 + $0x318] sm:$0xff]
        %v2150 = vld [vmem:[%s5 + $0x320] sm:$0xff]
        %v2151 = vld [vmem:[%s5 + $0x328] sm:$0xff]
        %v2152 = vld [vmem:[%s5 + $0x330] sm:$0xff]
        %v2153 = vld [vmem:[%s5 + $0x338] sm:$0xff]
        %v2154 = vld [vmem:[%s5 + $0x340] sm:$0xff]
        %v2155 = vld [vmem:[%s5 + $0x348] sm:$0xff]
        %v2156 = vld [vmem:[%s5 + $0x350] sm:$0xff]
        %v2157 = vld [vmem:[%s5 + $0x358] sm:$0xff]
        %v2158 = vld [vmem:[%s5 + $0x360] sm:$0xff]
        %v2159 = vld [vmem:[%s5 + $0x368] sm:$0xff]
        %v2160 = vld [vmem:[%s5 + $0x370] sm:$0xff]
        %v2161 = vld [vmem:[%s5 + $0x378] sm:$0xff]
        %v2162 = vld [vmem:[%s5 + $0x380] sm:$0xff]
        %v2163 = vld [vmem:[%s5 + $0x388] sm:$0xff]
        %v2164 = vld [vmem:[%s5 + $0x390] sm:$0xff]
        %v2165 = vld [vmem:[%s5 + $0x398] sm:$0xff]
        %v2166 = vld [vmem:[%s5 + $0x3a0] sm:$0xff]
        %v2167 = vld [vmem:[%s5 + $0x3a8] sm:$0xff]
        %v2168 = vld [vmem:[%s5 + $0x3b0] sm:$0xff]
        %v2169 = vld [vmem:[%s5 + $0x3b8] sm:$0xff]
        %v2170 = vld [vmem:[%s5 + $0x3c0] sm:$0xff]
        %v2171 = vld [vmem:[%s5 + $0x3c8] sm:$0xff]
        %v2172 = vld [vmem:[%s5 + $0x3d0] sm:$0xff]
        %v2173 = vld [vmem:[%s5 + $0x3d8] sm:$0xff]
        %v2174 = vld [vmem:[%s5 + $0x3e0] sm:$0xff]
        %v2175 = vld [vmem:[%s5 + $0x3e8] sm:$0xff]
        %v2176 = vld [vmem:[%s5 + $0x3f0] sm:$0xff]
        %v2177 = vld [vmem:[%s5 + $0x3f8] sm:$0xff]
        %v2178 = vld [vmem:[%s5 + $0x400] sm:$0xff]
        %v2179 = vld [vmem:[%s5 + $0x408] sm:$0xff]
        %v2180 = vld [vmem:[%s5 + $0x410] sm:$0xff]
        %v2181 = vld [vmem:[%s5 + $0x418] sm:$0xff]
        %v2182 = vld [vmem:[%s5 + $0x420] sm:$0xff]
        %v2183 = vld [vmem:[%s5 + $0x428] sm:$0xff]
        %v2184 = vld [vmem:[%s5 + $0x430] sm:$0xff]
        %v2185 = vld [vmem:[%s5 + $0x438] sm:$0xff]
        %v2186 = vld [vmem:[%s5 + $0x440] sm:$0xff]
        %v2187 = vld [vmem:[%s5 + $0x448] sm:$0xff]
        %v2188 = vld [vmem:[%s5 + $0x450] sm:$0xff]
        %v2189 = vld [vmem:[%s5 + $0x458] sm:$0xff]
        %v2190 = vld [vmem:[%s5 + $0x460] sm:$0xff]
        %v2191 = vld [vmem:[%s5 + $0x468] sm:$0xff]
        %v2192 = vld [vmem:[%s5 + $0x470] sm:$0xff]
        %v2193 = vld [vmem:[%s5 + $0x478] sm:$0xff]
        %v2194 = vld [vmem:[%s5 + $0x480] sm:$0xff]
        %v2195 = vld [vmem:[%s5 + $0x488] sm:$0xff]
        %v2196 = vld [vmem:[%s5 + $0x490] sm:$0xff]
        %v2197 = vld [vmem:[%s5 + $0x498] sm:$0xff]
        %v2198 = vld [vmem:[%s5 + $0x4a0] sm:$0xff]
        %v2199 = vld [vmem:[%s5 + $0x4a8] sm:$0xff]
        %v2200 = vld [vmem:[%s5 + $0x4b0] sm:$0xff]
        %v2201 = vld [vmem:[%s5 + $0x4b8] sm:$0xff]
        %v2202 = vld [vmem:[%s5 + $0x4c0] sm:$0xff]
        %v2203 = vld [vmem:[%s5 + $0x4c8] sm:$0xff]
        %v2204 = vld [vmem:[%s5 + $0x4d0] sm:$0xff]
        %v2205 = vld [vmem:[%s5 + $0x4d8] sm:$0xff]
        %v2206 = vld [vmem:[%s5 + $0x4e0] sm:$0xff]
        %v2207 = vld [vmem:[%s5 + $0x4e8] sm:$0xff]
        %v2208 = vld [vmem:[%s5 + $0x4f0] sm:$0xff]
        %v2209 = vld [vmem:[%s5 + $0x4f8] sm:$0xff]
        %v2210 = vld [vmem:[%s5 + $0x500] sm:$0xff]
        %v2211 = vld [vmem:[%s5 + $0x508] sm:$0xff]
        %v2212 = vld [vmem:[%s5 + $0x510] sm:$0xff]
        %v2213 = vld [vmem:[%s5 + $0x518] sm:$0xff]
        %v2214 = vld [vmem:[%s5 + $0x520] sm:$0xff]
        %v2215 = vld [vmem:[%s5 + $0x528] sm:$0xff]
        %v2216 = vld [vmem:[%s5 + $0x530] sm:$0xff]
        %v2217 = vld [vmem:[%s5 + $0x538] sm:$0xff]
        %v2218 = vld [vmem:[%s5 + $0x540] sm:$0xff]
        %v2219 = vld [vmem:[%s5 + $0x548] sm:$0xff]
        %v2220 = vld [vmem:[%s5 + $0x550] sm:$0xff]
        %v2221 = vld [vmem:[%s5 + $0x558] sm:$0xff]
        %v2222 = vld [vmem:[%s5 + $0x560] sm:$0xff]
        %v2223 = vld [vmem:[%s5 + $0x568] sm:$0xff]
        %v2224 = vld [vmem:[%s5 + $0x570] sm:$0xff]
        %v2225 = vld [vmem:[%s5 + $0x578] sm:$0xff]
        %v2226 = vld [vmem:[%s5 + $0x580] sm:$0xff]
        %v2227 = vld [vmem:[%s5 + $0x588] sm:$0xff]
        %v2228 = vld [vmem:[%s5 + $0x590] sm:$0xff]
        %v2229 = vld [vmem:[%s5 + $0x598] sm:$0xff]
        %v2230 = vld [vmem:[%s5 + $0x5a0] sm:$0xff]
        %v2231 = vld [vmem:[%s5 + $0x5a8] sm:$0xff]
        %v2232 = vld [vmem:[%s5 + $0x5b0] sm:$0xff]
        %v2233 = vld [vmem:[%s5 + $0x5b8] sm:$0xff]
        %v2234 = vld [vmem:[%s5 + $0x5c0] sm:$0xff]
        %v2235 = vld [vmem:[%s5 + $0x5c8] sm:$0xff]
        %v2236 = vld [vmem:[%s5 + $0x5d0] sm:$0xff]
        %v2237 = vld [vmem:[%s5 + $0x5d8] sm:$0xff]
        %v2238 = vld [vmem:[%s5 + $0x5e0] sm:$0xff]
        %v2239 = vld [vmem:[%s5 + $0x5e8] sm:$0xff]
        %v2240 = vld [vmem:[%s5 + $0x5f0] sm:$0xff]
        %v2241 = vld [vmem:[%s5 + $0x5f8] sm:$0xff]
        %v2242 = vld [vmem:[%s5 + $0x600] sm:$0xff]
        %v2243 = vld [vmem:[%s5 + $0x608] sm:$0xff]
        %v2244 = vld [vmem:[%s5 + $0x610] sm:$0xff]
        %v2245 = vld [vmem:[%s5 + $0x618] sm:$0xff]
        %v2246 = vld [vmem:[%s5 + $0x620] sm:$0xff]
        %v2247 = vld [vmem:[%s5 + $0x628] sm:$0xff]
        %v2248 = vld [vmem:[%s5 + $0x630] sm:$0xff]
        %v2249 = vld [vmem:[%s5 + $0x638] sm:$0xff]
        %v2250 = vld [vmem:[%s5 + $0x640] sm:$0xff]
        %v2251 = vld [vmem:[%s5 + $0x648] sm:$0xff]
        %v2252 = vld [vmem:[%s5 + $0x650] sm:$0xff]
        %v2253 = vld [vmem:[%s5 + $0x658] sm:$0xff]
        %v2254 = vld [vmem:[%s5 + $0x660] sm:$0xff]
        %v2255 = vld [vmem:[%s5 + $0x668] sm:$0xff]
        %v2256 = vld [vmem:[%s5 + $0x670] sm:$0xff]
        %v2257 = vld [vmem:[%s5 + $0x678] sm:$0xff]
        %v2258 = vld [vmem:[%s5 + $0x680] sm:$0xff]
        %v2259 = vld [vmem:[%s5 + $0x688] sm:$0xff]
        %v2260 = vld [vmem:[%s5 + $0x690] sm:$0xff]
        %v2261 = vld [vmem:[%s5 + $0x698] sm:$0xff]
        %v2262 = vld [vmem:[%s5 + $0x6a0] sm:$0xff]
        %v2263 = vld [vmem:[%s5 + $0x6a8] sm:$0xff]
        %v2264 = vld [vmem:[%s5 + $0x6b0] sm:$0xff]
        %v2265 = vld [vmem:[%s5 + $0x6b8] sm:$0xff]
        %v2266 = vld [vmem:[%s5 + $0x6c0] sm:$0xff]
        %v2267 = vld [vmem:[%s5 + $0x6c8] sm:$0xff]
        %v2268 = vld [vmem:[%s5 + $0x6d0] sm:$0xff]
        %v2269 = vld [vmem:[%s5 + $0x6d8] sm:$0xff]
        %v2270 = vld [vmem:[%s5 + $0x6e0] sm:$0xff]
        %v2271 = vld [vmem:[%s5 + $0x6e8] sm:$0xff]
        %v2272 = vld [vmem:[%s5 + $0x6f0] sm:$0xff]
        %v2273 = vld [vmem:[%s5 + $0x6f8] sm:$0xff]
        %v2274 = vld [vmem:[%s5 + $0x700] sm:$0xff]
        %v2275 = vld [vmem:[%s5 + $0x708] sm:$0xff]
        %v2276 = vld [vmem:[%s5 + $0x710] sm:$0xff]
        %v2277 = vld [vmem:[%s5 + $0x718] sm:$0xff]
        %v2278 = vld [vmem:[%s5 + $0x720] sm:$0xff]
        %v2279 = vld [vmem:[%s5 + $0x728] sm:$0xff]
        %v2280 = vld [vmem:[%s5 + $0x730] sm:$0xff]
        %v2281 = vld [vmem:[%s5 + $0x738] sm:$0xff]
        %v2282 = vld [vmem:[%s5 + $0x740] sm:$0xff]
        %v2283 = vld [vmem:[%s5 + $0x748] sm:$0xff]
        %v2284 = vld [vmem:[%s5 + $0x750] sm:$0xff]
        %v2285 = vld [vmem:[%s5 + $0x758] sm:$0xff]
        %v2286 = vld [vmem:[%s5 + $0x760] sm:$0xff]
        %v2287 = vld [vmem:[%s5 + $0x768] sm:$0xff]
        %v2288 = vld [vmem:[%s5 + $0x770] sm:$0xff]
        %v2289 = vld [vmem:[%s5 + $0x778] sm:$0xff]
        %v2290 = vld [vmem:[%s5 + $0x780] sm:$0xff]
        %v2291 = vld [vmem:[%s5 + $0x788] sm:$0xff]
        %v2292 = vld [vmem:[%s5 + $0x790] sm:$0xff]
        %v2293 = vld [vmem:[%s5 + $0x798] sm:$0xff]
        %v2294 = vld [vmem:[%s5 + $0x7a0] sm:$0xff]
        %v2295 = vld [vmem:[%s5 + $0x7a8] sm:$0xff]
        %v2296 = vld [vmem:[%s5 + $0x7b0] sm:$0xff]
        %v2297 = vld [vmem:[%s5 + $0x7b8] sm:$0xff]
        %v2298 = vld [vmem:[%s5 + $0x7c0] sm:$0xff]
        %v2299 = vld [vmem:[%s5 + $0x7c8] sm:$0xff]
        %v2300 = vld [vmem:[%s5 + $0x7d0] sm:$0xff]
        %v2301 = vld [vmem:[%s5 + $0x7d8] sm:$0xff]
        %v2302 = vld [vmem:[%s5 + $0x7e0] sm:$0xff]
        %v2303 = vld [vmem:[%s5 + $0x7e8] sm:$0xff]
        %v2304 = vld [vmem:[%s5 + $0x7f0] sm:$0xff]
        %v2305 = vld [vmem:[%s5 + $0x7f8] sm:$0xff]
        %v2306 = vld [vmem:[%s5 + $0x800] sm:$0xff]
        %v2307 = vld [vmem:[%s5 + $0x808] sm:$0xff]
        %v2308 = vld [vmem:[%s5 + $0x810] sm:$0xff]
        %v2309 = vld [vmem:[%s5 + $0x818] sm:$0xff]
        %v2310 = vld [vmem:[%s5 + $0x820] sm:$0xff]
        %v2311 = vld [vmem:[%s5 + $0x828] sm:$0xff]
        %v2312 = vld [vmem:[%s5 + $0x830] sm:$0xff]
        %v2313 = vld [vmem:[%s5 + $0x838] sm:$0xff]
        %v2314 = vld [vmem:[%s5 + $0x840] sm:$0xff]
        %v2315 = vld [vmem:[%s5 + $0x848] sm:$0xff]
        %v2316 = vld [vmem:[%s5 + $0x850] sm:$0xff]
        %v2317 = vld [vmem:[%s5 + $0x858] sm:$0xff]
        %v2318 = vld [vmem:[%s5 + $0x860] sm:$0xff]
        %v2319 = vld [vmem:[%s5 + $0x868] sm:$0xff]
        %v2320 = vld [vmem:[%s5 + $0x870] sm:$0xff]
        %v2321 = vld [vmem:[%s5 + $0x878] sm:$0xff]
        %v2322 = vld [vmem:[%s5 + $0x880] sm:$0xff]
        %v2323 = vld [vmem:[%s5 + $0x888] sm:$0xff]
        %v2324 = vld [vmem:[%s5 + $0x890] sm:$0xff]
        %v2325 = vld [vmem:[%s5 + $0x898] sm:$0xff]
        %v2326 = vld [vmem:[%s5 + $0x8a0] sm:$0xff]
        %v2327 = vld [vmem:[%s5 + $0x8a8] sm:$0xff]
        %v2328 = vld [vmem:[%s5 + $0x8b0] sm:$0xff]
        %v2329 = vld [vmem:[%s5 + $0x8b8] sm:$0xff]
        %v2330 = vld [vmem:[%s5 + $0x8c0] sm:$0xff]
        %v2331 = vld [vmem:[%s5 + $0x8c8] sm:$0xff]
        %v2332 = vld [vmem:[%s5 + $0x8d0] sm:$0xff]
        %v2333 = vld [vmem:[%s5 + $0x8d8] sm:$0xff]
        %v2334 = vld [vmem:[%s5 + $0x8e0] sm:$0xff]
        %v2335 = vld [vmem:[%s5 + $0x8e8] sm:$0xff]
        %v2336 = vld [vmem:[%s5 + $0x8f0] sm:$0xff]
        %v2337 = vld [vmem:[%s5 + $0x8f8] sm:$0xff]
        %v2338 = vld [vmem:[%s5 + $0x900] sm:$0xff]
        %v2339 = vld [vmem:[%s5 + $0x908] sm:$0xff]
        %v2340 = vld [vmem:[%s5 + $0x910] sm:$0xff]
        %v2341 = vld [vmem:[%s5 + $0x918] sm:$0xff]
        %v2342 = vld [vmem:[%s5 + $0x920] sm:$0xff]
        %v2343 = vld [vmem:[%s5 + $0x928] sm:$0xff]
        %v2344 = vld [vmem:[%s5 + $0x930] sm:$0xff]
        %v2345 = vld [vmem:[%s5 + $0x938] sm:$0xff]
        %v2346 = vld [vmem:[%s5 + $0x940] sm:$0xff]
        %v2347 = vld [vmem:[%s5 + $0x948] sm:$0xff]
        %v2348 = vld [vmem:[%s5 + $0x950] sm:$0xff]
        %v2349 = vld [vmem:[%s5 + $0x958] sm:$0xff]
        %v2350 = vld [vmem:[%s5 + $0x960] sm:$0xff]
        %v2351 = vld [vmem:[%s5 + $0x968] sm:$0xff]
        %v2352 = vld [vmem:[%s5 + $0x970] sm:$0xff]
        %v2353 = vld [vmem:[%s5 + $0x978] sm:$0xff]
        %v2354 = vld [vmem:[%s5 + $0x980] sm:$0xff]
        %v2355 = vld [vmem:[%s5 + $0x988] sm:$0xff]
        %v2356 = vld [vmem:[%s5 + $0x990] sm:$0xff]
        %v2357 = vld [vmem:[%s5 + $0x998] sm:$0xff]
        %v2358 = vld [vmem:[%s5 + $0x9a0] sm:$0xff]
        %v2359 = vld [vmem:[%s5 + $0x9a8] sm:$0xff]
        %v2360 = vld [vmem:[%s5 + $0x9b0] sm:$0xff]
        %v2361 = vld [vmem:[%s5 + $0x9b8] sm:$0xff]
        %v2362 = vld [vmem:[%s5 + $0x9c0] sm:$0xff]
        %v2363 = vld [vmem:[%s5 + $0x9c8] sm:$0xff]
        %v2364 = vld [vmem:[%s5 + $0x9d0] sm:$0xff]
        %v2365 = vld [vmem:[%s5 + $0x9d8] sm:$0xff]
        %v2366 = vld [vmem:[%s5 + $0x9e0] sm:$0xff]
        %v2367 = vld [vmem:[%s5 + $0x9e8] sm:$0xff]
        %v2368 = vld [vmem:[%s5 + $0x9f0] sm:$0xff]
        %v2369 = vld [vmem:[%s5 + $0x9f8] sm:$0xff]
        %v2370 = vld [vmem:[%s5 + $0xa00] sm:$0xff]
        %v2371 = vld [vmem:[%s5 + $0xa08] sm:$0xff]
        %v2372 = vld [vmem:[%s5 + $0xa10] sm:$0xff]
        %v2373 = vld [vmem:[%s5 + $0xa18] sm:$0xff]
        %v2374 = vld [vmem:[%s5 + $0xa20] sm:$0xff]
        %v2375 = vld [vmem:[%s5 + $0xa28] sm:$0xff]
        %v2376 = vld [vmem:[%s5 + $0xa30] sm:$0xff]
        %v2377 = vld [vmem:[%s5 + $0xa38] sm:$0xff]
        %v2378 = vld [vmem:[%s5 + $0xa40] sm:$0xff]
        %v2379 = vld [vmem:[%s5 + $0xa48] sm:$0xff]
        %v2380 = vld [vmem:[%s5 + $0xa50] sm:$0xff]
        %v2381 = vld [vmem:[%s5 + $0xa58] sm:$0xff]
        %v2382 = vld [vmem:[%s5 + $0xa60] sm:$0xff]
        %v2383 = vld [vmem:[%s5 + $0xa68] sm:$0xff]
        %v2384 = vld [vmem:[%s5 + $0xa70] sm:$0xff]
        %v2385 = vld [vmem:[%s5 + $0xa78] sm:$0xff]
        %v2386 = vld [vmem:[%s5 + $0xa80] sm:$0xff]
        %v2387 = vld [vmem:[%s5 + $0xa88] sm:$0xff]
        %v2388 = vld [vmem:[%s5 + $0xa90] sm:$0xff]
        %v2389 = vld [vmem:[%s5 + $0xa98] sm:$0xff]
        %v2390 = vld [vmem:[%s5 + $0xaa0] sm:$0xff]
        %v2391 = vld [vmem:[%s5 + $0xaa8] sm:$0xff]
        %v2392 = vld [vmem:[%s5 + $0xab0] sm:$0xff]
        %v2393 = vld [vmem:[%s5 + $0xab8] sm:$0xff]
        %v2394 = vld [vmem:[%s5 + $0xac0] sm:$0xff]
        %v2395 = vld [vmem:[%s5 + $0xac8] sm:$0xff]
        %v2396 = vld [vmem:[%s5 + $0xad0] sm:$0xff]
        %v2397 = vld [vmem:[%s5 + $0xad8] sm:$0xff]
        %v2398 = vld [vmem:[%s5 + $0xae0] sm:$0xff]
        %v2399 = vld [vmem:[%s5 + $0xae8] sm:$0xff]
        %v2400 = vld [vmem:[%s5 + $0xaf0] sm:$0xff]
        %v2401 = vld [vmem:[%s5 + $0xaf8] sm:$0xff]
        %v2402 = vld [vmem:[%s5 + $0xb00] sm:$0xff]
        %v2403 = vld [vmem:[%s5 + $0xb08] sm:$0xff]
        %v2404 = vld [vmem:[%s5 + $0xb10] sm:$0xff]
        %v2405 = vld [vmem:[%s5 + $0xb18] sm:$0xff]
        %v2406 = vld [vmem:[%s5 + $0xb20] sm:$0xff]
        %v2407 = vld [vmem:[%s5 + $0xb28] sm:$0xff]
        %v2408 = vld [vmem:[%s5 + $0xb30] sm:$0xff]
        %v2409 = vld [vmem:[%s5 + $0xb38] sm:$0xff]
        %v2410 = vld [vmem:[%s5 + $0xb40] sm:$0xff]
        %v2411 = vld [vmem:[%s5 + $0xb48] sm:$0xff]
        %v2412 = vld [vmem:[%s5 + $0xb50] sm:$0xff]
        %v2413 = vld [vmem:[%s5 + $0xb58] sm:$0xff]
        %v2414 = vld [vmem:[%s5 + $0xb60] sm:$0xff]
        %v2415 = vld [vmem:[%s5 + $0xb68] sm:$0xff]
        %v2416 = vld [vmem:[%s5 + $0xb70] sm:$0xff]
        %v2417 = vld [vmem:[%s5 + $0xb78] sm:$0xff]
        %v2418 = vld [vmem:[%s5 + $0xb80] sm:$0xff]
        %v2419 = vld [vmem:[%s5 + $0xb88] sm:$0xff]
        %v2420 = vld [vmem:[%s5 + $0xb90] sm:$0xff]
        %v2421 = vld [vmem:[%s5 + $0xb98] sm:$0xff]
        %v2422 = vld [vmem:[%s5 + $0xba0] sm:$0xff]
        %v2423 = vld [vmem:[%s5 + $0xba8] sm:$0xff]
        %v2424 = vld [vmem:[%s5 + $0xbb0] sm:$0xff]
        %v2425 = vld [vmem:[%s5 + $0xbb8] sm:$0xff]
        %v2426 = vld [vmem:[%s5 + $0xbc0] sm:$0xff]
        %v2427 = vld [vmem:[%s5 + $0xbc8] sm:$0xff]
        %v2428 = vld [vmem:[%s5 + $0xbd0] sm:$0xff]
        %v2429 = vld [vmem:[%s5 + $0xbd8] sm:$0xff]
        %v2430 = vld [vmem:[%s5 + $0xbe0] sm:$0xff]
        %v2431 = vld [vmem:[%s5 + $0xbe8] sm:$0xff]
        %v2432 = vld [vmem:[%s5 + $0xbf0] sm:$0xff]
        %v2433 = vld [vmem:[%s5 + $0xbf8] sm:$0xff]
        %v2434 = vld [vmem:[%s6] sm:$0xf]
        %v2819 = vunpack.c.l.b16 %v2050
        %v2820 = vunpack.c.h.b16 %v2050
        %v2821 = vunpack.c.l.b16 %v2051
        %v2822 = vunpack.c.h.b16 %v2051
        %v2823 = vunpack.c.l.b16 %v2052
        %v2824 = vunpack.c.h.b16 %v2052
        %v2825 = vunpack.c.l.b16 %v2053
        %v2826 = vunpack.c.h.b16 %v2053
        %v2827 = vunpack.c.l.b16 %v2054
        %v2828 = vunpack.c.h.b16 %v2054
        %v2829 = vunpack.c.l.b16 %v2055
        %v2830 = vunpack.c.h.b16 %v2055
        %v2831 = vunpack.c.l.b16 %v2056
        %v2832 = vunpack.c.h.b16 %v2056
        %v2833 = vunpack.c.l.b16 %v2057
        %v2834 = vunpack.c.h.b16 %v2057
        %v2835 = vunpack.c.l.b16 %v2058
        %v2836 = vunpack.c.h.b16 %v2058
        %v2837 = vunpack.c.l.b16 %v2059
        %v2838 = vunpack.c.h.b16 %v2059
        %v2839 = vunpack.c.l.b16 %v2060
        %v2840 = vunpack.c.h.b16 %v2060
        %v2841 = vunpack.c.l.b16 %v2061
        %v2842 = vunpack.c.h.b16 %v2061
        %v2843 = vunpack.c.l.b16 %v2062
        %v2844 = vunpack.c.h.b16 %v2062
        %v2845 = vunpack.c.l.b16 %v2063
        %v2846 = vunpack.c.h.b16 %v2063
        %v2847 = vunpack.c.l.b16 %v2064
        %v2848 = vunpack.c.h.b16 %v2064
        %v2849 = vunpack.c.l.b16 %v2065
        %v2850 = vunpack.c.h.b16 %v2065
        %v2851 = vunpack.c.l.b16 %v2066
        %v2852 = vunpack.c.h.b16 %v2066
        %v2853 = vunpack.c.l.b16 %v2067
        %v2854 = vunpack.c.h.b16 %v2067
        %v2855 = vunpack.c.l.b16 %v2068
        %v2856 = vunpack.c.h.b16 %v2068
        %v2857 = vunpack.c.l.b16 %v2069
        %v2858 = vunpack.c.h.b16 %v2069
        %v2859 = vunpack.c.l.b16 %v2070
        %v2860 = vunpack.c.h.b16 %v2070
        %v2861 = vunpack.c.l.b16 %v2071
        %v2862 = vunpack.c.h.b16 %v2071
        %v2863 = vunpack.c.l.b16 %v2072
        %v2864 = vunpack.c.h.b16 %v2072
        %v2865 = vunpack.c.l.b16 %v2073
        %v2866 = vunpack.c.h.b16 %v2073
        %v2867 = vunpack.c.l.b16 %v2074
        %v2868 = vunpack.c.h.b16 %v2074
        %v2869 = vunpack.c.l.b16 %v2075
        %v2870 = vunpack.c.h.b16 %v2075
        %v2871 = vunpack.c.l.b16 %v2076
        %v2872 = vunpack.c.h.b16 %v2076
        %v2873 = vunpack.c.l.b16 %v2077
        %v2874 = vunpack.c.h.b16 %v2077
        %v2875 = vunpack.c.l.b16 %v2078
        %v2876 = vunpack.c.h.b16 %v2078
        %v2877 = vunpack.c.l.b16 %v2079
        %v2878 = vunpack.c.h.b16 %v2079
        %v2879 = vunpack.c.l.b16 %v2080
        %v2880 = vunpack.c.h.b16 %v2080
        %v2881 = vunpack.c.l.b16 %v2081
        %v2882 = vunpack.c.h.b16 %v2081
        %v2883 = vunpack.c.l.b16 %v2082
        %v2884 = vunpack.c.h.b16 %v2082
        %v2885 = vunpack.c.l.b16 %v2083
        %v2886 = vunpack.c.h.b16 %v2083
        %v2887 = vunpack.c.l.b16 %v2084
        %v2888 = vunpack.c.h.b16 %v2084
        %v2889 = vunpack.c.l.b16 %v2085
        %v2890 = vunpack.c.h.b16 %v2085
        %v2891 = vunpack.c.l.b16 %v2086
        %v2892 = vunpack.c.h.b16 %v2086
        %v2893 = vunpack.c.l.b16 %v2087
        %v2894 = vunpack.c.h.b16 %v2087
        %v2895 = vunpack.c.l.b16 %v2088
        %v2896 = vunpack.c.h.b16 %v2088
        %v2897 = vunpack.c.l.b16 %v2089
        %v2898 = vunpack.c.h.b16 %v2089
        %v2899 = vunpack.c.l.b16 %v2090
        %v2900 = vunpack.c.h.b16 %v2090
        %v2901 = vunpack.c.l.b16 %v2091
        %v2902 = vunpack.c.h.b16 %v2091
        %v2903 = vunpack.c.l.b16 %v2092
        %v2904 = vunpack.c.h.b16 %v2092
        %v2905 = vunpack.c.l.b16 %v2093
        %v2906 = vunpack.c.h.b16 %v2093
        %v2907 = vunpack.c.l.b16 %v2094
        %v2908 = vunpack.c.h.b16 %v2094
        %v2909 = vunpack.c.l.b16 %v2095
        %v2910 = vunpack.c.h.b16 %v2095
        %v2911 = vunpack.c.l.b16 %v2096
        %v2912 = vunpack.c.h.b16 %v2096
        %v2913 = vunpack.c.l.b16 %v2097
        %v2914 = vunpack.c.h.b16 %v2097
        %v2915 = vunpack.c.l.b16 %v2098
        %v2916 = vunpack.c.h.b16 %v2098
        %v2917 = vunpack.c.l.b16 %v2099
        %v2918 = vunpack.c.h.b16 %v2099
        %v2919 = vunpack.c.l.b16 %v2100
        %v2920 = vunpack.c.h.b16 %v2100
        %v2921 = vunpack.c.l.b16 %v2101
        %v2922 = vunpack.c.h.b16 %v2101
        %v2923 = vunpack.c.l.b16 %v2102
        %v2924 = vunpack.c.h.b16 %v2102
        %v2925 = vunpack.c.l.b16 %v2103
        %v2926 = vunpack.c.h.b16 %v2103
        %v2927 = vunpack.c.l.b16 %v2104
        %v2928 = vunpack.c.h.b16 %v2104
        %v2929 = vunpack.c.l.b16 %v2105
        %v2930 = vunpack.c.h.b16 %v2105
        %v2931 = vunpack.c.l.b16 %v2106
        %v2932 = vunpack.c.h.b16 %v2106
        %v2933 = vunpack.c.l.b16 %v2107
        %v2934 = vunpack.c.h.b16 %v2107
        %v2935 = vunpack.c.l.b16 %v2108
        %v2936 = vunpack.c.h.b16 %v2108
        %v2937 = vunpack.c.l.b16 %v2109
        %v2938 = vunpack.c.h.b16 %v2109
        %v2939 = vunpack.c.l.b16 %v2110
        %v2940 = vunpack.c.h.b16 %v2110
        %v2941 = vunpack.c.l.b16 %v2111
        %v2942 = vunpack.c.h.b16 %v2111
        %v2943 = vunpack.c.l.b16 %v2112
        %v2944 = vunpack.c.h.b16 %v2112
        %v2945 = vunpack.c.l.b16 %v2113
        %v2946 = vunpack.c.h.b16 %v2113
        %v2947 = vunpack.c.l.b16 %v2114
        %v2948 = vunpack.c.h.b16 %v2114
        %v2949 = vunpack.c.l.b16 %v2115
        %v2950 = vunpack.c.h.b16 %v2115
        %v2951 = vunpack.c.l.b16 %v2116
        %v2952 = vunpack.c.h.b16 %v2116
        %v2953 = vunpack.c.l.b16 %v2117
        %v2954 = vunpack.c.h.b16 %v2117
        %v2955 = vunpack.c.l.b16 %v2118
        %v2956 = vunpack.c.h.b16 %v2118
        %v2957 = vunpack.c.l.b16 %v2119
        %v2958 = vunpack.c.h.b16 %v2119
        %v2959 = vunpack.c.l.b16 %v2120
        %v2960 = vunpack.c.h.b16 %v2120
        %v2961 = vunpack.c.l.b16 %v2121
        %v2962 = vunpack.c.h.b16 %v2121
        %v2963 = vunpack.c.l.b16 %v2122
        %v2964 = vunpack.c.h.b16 %v2122
        %v2965 = vunpack.c.l.b16 %v2123
        %v2966 = vunpack.c.h.b16 %v2123
        %v2967 = vunpack.c.l.b16 %v2124
        %v2968 = vunpack.c.h.b16 %v2124
        %v2969 = vunpack.c.l.b16 %v2125
        %v2970 = vunpack.c.h.b16 %v2125
        %v2971 = vunpack.c.l.b16 %v2126
        %v2972 = vunpack.c.h.b16 %v2126
        %v2973 = vunpack.c.l.b16 %v2127
        %v2974 = vunpack.c.h.b16 %v2127
        %v2975 = vunpack.c.l.b16 %v2128
        %v2976 = vunpack.c.h.b16 %v2128
        %v2977 = vunpack.c.l.b16 %v2129
        %v2978 = vunpack.c.h.b16 %v2129
        %v2979 = vunpack.c.l.b16 %v2130
        %v2980 = vunpack.c.h.b16 %v2130
        %v2981 = vunpack.c.l.b16 %v2131
        %v2982 = vunpack.c.h.b16 %v2131
        %v2983 = vunpack.c.l.b16 %v2132
        %v2984 = vunpack.c.h.b16 %v2132
        %v2985 = vunpack.c.l.b16 %v2133
        %v2986 = vunpack.c.h.b16 %v2133
        %v2987 = vunpack.c.l.b16 %v2134
        %v2988 = vunpack.c.h.b16 %v2134
        %v2989 = vunpack.c.l.b16 %v2135
        %v2990 = vunpack.c.h.b16 %v2135
        %v2991 = vunpack.c.l.b16 %v2136
        %v2992 = vunpack.c.h.b16 %v2136
        %v2993 = vunpack.c.l.b16 %v2137
        %v2994 = vunpack.c.h.b16 %v2137
        %v2995 = vunpack.c.l.b16 %v2138
        %v2996 = vunpack.c.h.b16 %v2138
        %v2997 = vunpack.c.l.b16 %v2139
        %v2998 = vunpack.c.h.b16 %v2139
        %v2999 = vunpack.c.l.b16 %v2140
        %v3000 = vunpack.c.h.b16 %v2140
        %v3001 = vunpack.c.l.b16 %v2141
        %v3002 = vunpack.c.h.b16 %v2141
        %v3003 = vunpack.c.l.b16 %v2142
        %v3004 = vunpack.c.h.b16 %v2142
        %v3005 = vunpack.c.l.b16 %v2143
        %v3006 = vunpack.c.h.b16 %v2143
        %v3007 = vunpack.c.l.b16 %v2144
        %v3008 = vunpack.c.h.b16 %v2144
        %v3009 = vunpack.c.l.b16 %v2145
        %v3010 = vunpack.c.h.b16 %v2145
        %v3011 = vunpack.c.l.b16 %v2146
        %v3012 = vunpack.c.h.b16 %v2146
        %v3013 = vunpack.c.l.b16 %v2147
        %v3014 = vunpack.c.h.b16 %v2147
        %v3015 = vunpack.c.l.b16 %v2148
        %v3016 = vunpack.c.h.b16 %v2148
        %v3017 = vunpack.c.l.b16 %v2149
        %v3018 = vunpack.c.h.b16 %v2149
        %v3019 = vunpack.c.l.b16 %v2150
        %v3020 = vunpack.c.h.b16 %v2150
        %v3021 = vunpack.c.l.b16 %v2151
        %v3022 = vunpack.c.h.b16 %v2151
        %v3023 = vunpack.c.l.b16 %v2152
        %v3024 = vunpack.c.h.b16 %v2152
        %v3025 = vunpack.c.l.b16 %v2153
        %v3026 = vunpack.c.h.b16 %v2153
        %v3027 = vunpack.c.l.b16 %v2154
        %v3028 = vunpack.c.h.b16 %v2154
        %v3029 = vunpack.c.l.b16 %v2155
        %v3030 = vunpack.c.h.b16 %v2155
        %v3031 = vunpack.c.l.b16 %v2156
        %v3032 = vunpack.c.h.b16 %v2156
        %v3033 = vunpack.c.l.b16 %v2157
        %v3034 = vunpack.c.h.b16 %v2157
        %v3035 = vunpack.c.l.b16 %v2158
        %v3036 = vunpack.c.h.b16 %v2158
        %v3037 = vunpack.c.l.b16 %v2159
        %v3038 = vunpack.c.h.b16 %v2159
        %v3039 = vunpack.c.l.b16 %v2160
        %v3040 = vunpack.c.h.b16 %v2160
        %v3041 = vunpack.c.l.b16 %v2161
        %v3042 = vunpack.c.h.b16 %v2161
        %v3043 = vunpack.c.l.b16 %v2162
        %v3044 = vunpack.c.h.b16 %v2162
        %v3045 = vunpack.c.l.b16 %v2163
        %v3046 = vunpack.c.h.b16 %v2163
        %v3047 = vunpack.c.l.b16 %v2164
        %v3048 = vunpack.c.h.b16 %v2164
        %v3049 = vunpack.c.l.b16 %v2165
        %v3050 = vunpack.c.h.b16 %v2165
        %v3051 = vunpack.c.l.b16 %v2166
        %v3052 = vunpack.c.h.b16 %v2166
        %v3053 = vunpack.c.l.b16 %v2167
        %v3054 = vunpack.c.h.b16 %v2167
        %v3055 = vunpack.c.l.b16 %v2168
        %v3056 = vunpack.c.h.b16 %v2168
        %v3057 = vunpack.c.l.b16 %v2169
        %v3058 = vunpack.c.h.b16 %v2169
        %v3059 = vunpack.c.l.b16 %v2170
        %v3060 = vunpack.c.h.b16 %v2170
        %v3061 = vunpack.c.l.b16 %v2171
        %v3062 = vunpack.c.h.b16 %v2171
        %v3063 = vunpack.c.l.b16 %v2172
        %v3064 = vunpack.c.h.b16 %v2172
        %v3065 = vunpack.c.l.b16 %v2173
        %v3066 = vunpack.c.h.b16 %v2173
        %v3067 = vunpack.c.l.b16 %v2174
        %v3068 = vunpack.c.h.b16 %v2174
        %v3069 = vunpack.c.l.b16 %v2175
        %v3070 = vunpack.c.h.b16 %v2175
        %v3071 = vunpack.c.l.b16 %v2176
        %v3072 = vunpack.c.h.b16 %v2176
        %v3073 = vunpack.c.l.b16 %v2177
        %v3074 = vunpack.c.h.b16 %v2177
        %v3075 = vunpack.c.l.b16 %v2178
        %v3076 = vunpack.c.h.b16 %v2178
        %v3077 = vunpack.c.l.b16 %v2179
        %v3078 = vunpack.c.h.b16 %v2179
        %v3079 = vunpack.c.l.b16 %v2180
        %v3080 = vunpack.c.h.b16 %v2180
        %v3081 = vunpack.c.l.b16 %v2181
        %v3082 = vunpack.c.h.b16 %v2181
        %v3083 = vunpack.c.l.b16 %v2182
        %v3084 = vunpack.c.h.b16 %v2182
        %v3085 = vunpack.c.l.b16 %v2183
        %v3086 = vunpack.c.h.b16 %v2183
        %v3087 = vunpack.c.l.b16 %v2184
        %v3088 = vunpack.c.h.b16 %v2184
        %v3089 = vunpack.c.l.b16 %v2185
        %v3090 = vunpack.c.h.b16 %v2185
        %v3091 = vunpack.c.l.b16 %v2186
        %v3092 = vunpack.c.h.b16 %v2186
        %v3093 = vunpack.c.l.b16 %v2187
        %v3094 = vunpack.c.h.b16 %v2187
        %v3095 = vunpack.c.l.b16 %v2188
        %v3096 = vunpack.c.h.b16 %v2188
        %v3097 = vunpack.c.l.b16 %v2189
        %v3098 = vunpack.c.h.b16 %v2189
        %v3099 = vunpack.c.l.b16 %v2190
        %v3100 = vunpack.c.h.b16 %v2190
        %v3101 = vunpack.c.l.b16 %v2191
        %v3102 = vunpack.c.h.b16 %v2191
        %v3103 = vunpack.c.l.b16 %v2192
        %v3104 = vunpack.c.h.b16 %v2192
        %v3105 = vunpack.c.l.b16 %v2193
        %v3106 = vunpack.c.h.b16 %v2193
        %v3107 = vunpack.c.l.b16 %v2194
        %v3108 = vunpack.c.h.b16 %v2194
        %v3109 = vunpack.c.l.b16 %v2195
        %v3110 = vunpack.c.h.b16 %v2195
        %v3111 = vunpack.c.l.b16 %v2196
        %v3112 = vunpack.c.h.b16 %v2196
        %v3113 = vunpack.c.l.b16 %v2197
        %v3114 = vunpack.c.h.b16 %v2197
        %v3115 = vunpack.c.l.b16 %v2198
        %v3116 = vunpack.c.h.b16 %v2198
        %v3117 = vunpack.c.l.b16 %v2199
        %v3118 = vunpack.c.h.b16 %v2199
        %v3119 = vunpack.c.l.b16 %v2200
        %v3120 = vunpack.c.h.b16 %v2200
        %v3121 = vunpack.c.l.b16 %v2201
        %v3122 = vunpack.c.h.b16 %v2201
        %v3123 = vunpack.c.l.b16 %v2202
        %v3124 = vunpack.c.h.b16 %v2202
        %v3125 = vunpack.c.l.b16 %v2203
        %v3126 = vunpack.c.h.b16 %v2203
        %v3127 = vunpack.c.l.b16 %v2204
        %v3128 = vunpack.c.h.b16 %v2204
        %v3129 = vunpack.c.l.b16 %v2205
        %v3130 = vunpack.c.h.b16 %v2205
        %v3131 = vunpack.c.l.b16 %v2206
        %v3132 = vunpack.c.h.b16 %v2206
        %v3133 = vunpack.c.l.b16 %v2207
        %v3134 = vunpack.c.h.b16 %v2207
        %v3135 = vunpack.c.l.b16 %v2208
        %v3136 = vunpack.c.h.b16 %v2208
        %v3137 = vunpack.c.l.b16 %v2209
        %v3138 = vunpack.c.h.b16 %v2209
        %v3139 = vunpack.c.l.b16 %v2210
        %v3140 = vunpack.c.h.b16 %v2210
        %v3141 = vunpack.c.l.b16 %v2211
        %v3142 = vunpack.c.h.b16 %v2211
        %v3143 = vunpack.c.l.b16 %v2212
        %v3144 = vunpack.c.h.b16 %v2212
        %v3145 = vunpack.c.l.b16 %v2213
        %v3146 = vunpack.c.h.b16 %v2213
        %v3147 = vunpack.c.l.b16 %v2214
        %v3148 = vunpack.c.h.b16 %v2214
        %v3149 = vunpack.c.l.b16 %v2215
        %v3150 = vunpack.c.h.b16 %v2215
        %v3151 = vunpack.c.l.b16 %v2216
        %v3152 = vunpack.c.h.b16 %v2216
        %v3153 = vunpack.c.l.b16 %v2217
        %v3154 = vunpack.c.h.b16 %v2217
        %v3155 = vunpack.c.l.b16 %v2218
        %v3156 = vunpack.c.h.b16 %v2218
        %v3157 = vunpack.c.l.b16 %v2219
        %v3158 = vunpack.c.h.b16 %v2219
        %v3159 = vunpack.c.l.b16 %v2220
        %v3160 = vunpack.c.h.b16 %v2220
        %v3161 = vunpack.c.l.b16 %v2221
        %v3162 = vunpack.c.h.b16 %v2221
        %v3163 = vunpack.c.l.b16 %v2222
        %v3164 = vunpack.c.h.b16 %v2222
        %v3165 = vunpack.c.l.b16 %v2223
        %v3166 = vunpack.c.h.b16 %v2223
        %v3167 = vunpack.c.l.b16 %v2224
        %v3168 = vunpack.c.h.b16 %v2224
        %v3169 = vunpack.c.l.b16 %v2225
        %v3170 = vunpack.c.h.b16 %v2225
        %v3171 = vunpack.c.l.b16 %v2226
        %v3172 = vunpack.c.h.b16 %v2226
        %v3173 = vunpack.c.l.b16 %v2227
        %v3174 = vunpack.c.h.b16 %v2227
        %v3175 = vunpack.c.l.b16 %v2228
        %v3176 = vunpack.c.h.b16 %v2228
        %v3177 = vunpack.c.l.b16 %v2229
        %v3178 = vunpack.c.h.b16 %v2229
        %v3179 = vunpack.c.l.b16 %v2230
        %v3180 = vunpack.c.h.b16 %v2230
        %v3181 = vunpack.c.l.b16 %v2231
        %v3182 = vunpack.c.h.b16 %v2231
        %v3183 = vunpack.c.l.b16 %v2232
        %v3184 = vunpack.c.h.b16 %v2232
        %v3185 = vunpack.c.l.b16 %v2233
        %v3186 = vunpack.c.h.b16 %v2233
        %v3187 = vunpack.c.l.b16 %v2234
        %v3188 = vunpack.c.h.b16 %v2234
        %v3189 = vunpack.c.l.b16 %v2235
        %v3190 = vunpack.c.h.b16 %v2235
        %v3191 = vunpack.c.l.b16 %v2236
        %v3192 = vunpack.c.h.b16 %v2236
        %v3193 = vunpack.c.l.b16 %v2237
        %v3194 = vunpack.c.h.b16 %v2237
        %v3195 = vunpack.c.l.b16 %v2238
        %v3196 = vunpack.c.h.b16 %v2238
        %v3197 = vunpack.c.l.b16 %v2239
        %v3198 = vunpack.c.h.b16 %v2239
        %v3199 = vunpack.c.l.b16 %v2240
        %v3200 = vunpack.c.h.b16 %v2240
        %v3201 = vunpack.c.l.b16 %v2241
        %v3202 = vunpack.c.h.b16 %v2241
        %v3203 = vunpack.c.l.b16 %v2242
        %v3204 = vunpack.c.h.b16 %v2242
        %v3205 = vunpack.c.l.b16 %v2243
        %v3206 = vunpack.c.h.b16 %v2243
        %v3207 = vunpack.c.l.b16 %v2244
        %v3208 = vunpack.c.h.b16 %v2244
        %v3209 = vunpack.c.l.b16 %v2245
        %v3210 = vunpack.c.h.b16 %v2245
        %v3211 = vunpack.c.l.b16 %v2246
        %v3212 = vunpack.c.h.b16 %v2246
        %v3213 = vunpack.c.l.b16 %v2247
        %v3214 = vunpack.c.h.b16 %v2247
        %v3215 = vunpack.c.l.b16 %v2248
        %v3216 = vunpack.c.h.b16 %v2248
        %v3217 = vunpack.c.l.b16 %v2249
        %v3218 = vunpack.c.h.b16 %v2249
        %v3219 = vunpack.c.l.b16 %v2250
        %v3220 = vunpack.c.h.b16 %v2250
        %v3221 = vunpack.c.l.b16 %v2251
        %v3222 = vunpack.c.h.b16 %v2251
        %v3223 = vunpack.c.l.b16 %v2252
        %v3224 = vunpack.c.h.b16 %v2252
        %v3225 = vunpack.c.l.b16 %v2253
        %v3226 = vunpack.c.h.b16 %v2253
        %v3227 = vunpack.c.l.b16 %v2254
        %v3228 = vunpack.c.h.b16 %v2254
        %v3229 = vunpack.c.l.b16 %v2255
        %v3230 = vunpack.c.h.b16 %v2255
        %v3231 = vunpack.c.l.b16 %v2256
        %v3232 = vunpack.c.h.b16 %v2256
        %v3233 = vunpack.c.l.b16 %v2257
        %v3234 = vunpack.c.h.b16 %v2257
        %v3235 = vunpack.c.l.b16 %v2258
        %v3236 = vunpack.c.h.b16 %v2258
        %v3237 = vunpack.c.l.b16 %v2259
        %v3238 = vunpack.c.h.b16 %v2259
        %v3239 = vunpack.c.l.b16 %v2260
        %v3240 = vunpack.c.h.b16 %v2260
        %v3241 = vunpack.c.l.b16 %v2261
        %v3242 = vunpack.c.h.b16 %v2261
        %v3243 = vunpack.c.l.b16 %v2262
        %v3244 = vunpack.c.h.b16 %v2262
        %v3245 = vunpack.c.l.b16 %v2263
        %v3246 = vunpack.c.h.b16 %v2263
        %v3247 = vunpack.c.l.b16 %v2264
        %v3248 = vunpack.c.h.b16 %v2264
        %v3249 = vunpack.c.l.b16 %v2265
        %v3250 = vunpack.c.h.b16 %v2265
        %v3251 = vunpack.c.l.b16 %v2266
        %v3252 = vunpack.c.h.b16 %v2266
        %v3253 = vunpack.c.l.b16 %v2267
        %v3254 = vunpack.c.h.b16 %v2267
        %v3255 = vunpack.c.l.b16 %v2268
        %v3256 = vunpack.c.h.b16 %v2268
        %v3257 = vunpack.c.l.b16 %v2269
        %v3258 = vunpack.c.h.b16 %v2269
        %v3259 = vunpack.c.l.b16 %v2270
        %v3260 = vunpack.c.h.b16 %v2270
        %v3261 = vunpack.c.l.b16 %v2271
        %v3262 = vunpack.c.h.b16 %v2271
        %v3263 = vunpack.c.l.b16 %v2272
        %v3264 = vunpack.c.h.b16 %v2272
        %v3265 = vunpack.c.l.b16 %v2273
        %v3266 = vunpack.c.h.b16 %v2273
        %v3267 = vunpack.c.l.b16 %v2274
        %v3268 = vunpack.c.h.b16 %v2274
        %v3269 = vunpack.c.l.b16 %v2275
        %v3270 = vunpack.c.h.b16 %v2275
        %v3271 = vunpack.c.l.b16 %v2276
        %v3272 = vunpack.c.h.b16 %v2276
        %v3273 = vunpack.c.l.b16 %v2277
        %v3274 = vunpack.c.h.b16 %v2277
        %v3275 = vunpack.c.l.b16 %v2278
        %v3276 = vunpack.c.h.b16 %v2278
        %v3277 = vunpack.c.l.b16 %v2279
        %v3278 = vunpack.c.h.b16 %v2279
        %v3279 = vunpack.c.l.b16 %v2280
        %v3280 = vunpack.c.h.b16 %v2280
        %v3281 = vunpack.c.l.b16 %v2281
        %v3282 = vunpack.c.h.b16 %v2281
        %v3283 = vunpack.c.l.b16 %v2282
        %v3284 = vunpack.c.h.b16 %v2282
        %v3285 = vunpack.c.l.b16 %v2283
        %v3286 = vunpack.c.h.b16 %v2283
        %v3287 = vunpack.c.l.b16 %v2284
        %v3288 = vunpack.c.h.b16 %v2284
        %v3289 = vunpack.c.l.b16 %v2285
        %v3290 = vunpack.c.h.b16 %v2285
        %v3291 = vunpack.c.l.b16 %v2286
        %v3292 = vunpack.c.h.b16 %v2286
        %v3293 = vunpack.c.l.b16 %v2287
        %v3294 = vunpack.c.h.b16 %v2287
        %v3295 = vunpack.c.l.b16 %v2288
        %v3296 = vunpack.c.h.b16 %v2288
        %v3297 = vunpack.c.l.b16 %v2289
        %v3298 = vunpack.c.h.b16 %v2289
        %v3299 = vunpack.c.l.b16 %v2290
        %v3300 = vunpack.c.h.b16 %v2290
        %v3301 = vunpack.c.l.b16 %v2291
        %v3302 = vunpack.c.h.b16 %v2291
        %v3303 = vunpack.c.l.b16 %v2292
        %v3304 = vunpack.c.h.b16 %v2292
        %v3305 = vunpack.c.l.b16 %v2293
        %v3306 = vunpack.c.h.b16 %v2293
        %v3307 = vunpack.c.l.b16 %v2294
        %v3308 = vunpack.c.h.b16 %v2294
        %v3309 = vunpack.c.l.b16 %v2295
        %v3310 = vunpack.c.h.b16 %v2295
        %v3311 = vunpack.c.l.b16 %v2296
        %v3312 = vunpack.c.h.b16 %v2296
        %v3313 = vunpack.c.l.b16 %v2297
        %v3314 = vunpack.c.h.b16 %v2297
        %v3315 = vunpack.c.l.b16 %v2298
        %v3316 = vunpack.c.h.b16 %v2298
        %v3317 = vunpack.c.l.b16 %v2299
        %v3318 = vunpack.c.h.b16 %v2299
        %v3319 = vunpack.c.l.b16 %v2300
        %v3320 = vunpack.c.h.b16 %v2300
        %v3321 = vunpack.c.l.b16 %v2301
        %v3322 = vunpack.c.h.b16 %v2301
        %v3323 = vunpack.c.l.b16 %v2302
        %v3324 = vunpack.c.h.b16 %v2302
        %v3325 = vunpack.c.l.b16 %v2303
        %v3326 = vunpack.c.h.b16 %v2303
        %v3327 = vunpack.c.l.b16 %v2304
        %v3328 = vunpack.c.h.b16 %v2304
        %v3329 = vunpack.c.l.b16 %v2305
        %v3330 = vunpack.c.h.b16 %v2305
        %v3331 = vunpack.c.l.b16 %v2306
        %v3332 = vunpack.c.h.b16 %v2306
        %v3333 = vunpack.c.l.b16 %v2307
        %v3334 = vunpack.c.h.b16 %v2307
        %v3335 = vunpack.c.l.b16 %v2308
        %v3336 = vunpack.c.h.b16 %v2308
        %v3337 = vunpack.c.l.b16 %v2309
        %v3338 = vunpack.c.h.b16 %v2309
        %v3339 = vunpack.c.l.b16 %v2310
        %v3340 = vunpack.c.h.b16 %v2310
        %v3341 = vunpack.c.l.b16 %v2311
        %v3342 = vunpack.c.h.b16 %v2311
        %v3343 = vunpack.c.l.b16 %v2312
        %v3344 = vunpack.c.h.b16 %v2312
        %v3345 = vunpack.c.l.b16 %v2313
        %v3346 = vunpack.c.h.b16 %v2313
        %v3347 = vunpack.c.l.b16 %v2314
        %v3348 = vunpack.c.h.b16 %v2314
        %v3349 = vunpack.c.l.b16 %v2315
        %v3350 = vunpack.c.h.b16 %v2315
        %v3351 = vunpack.c.l.b16 %v2316
        %v3352 = vunpack.c.h.b16 %v2316
        %v3353 = vunpack.c.l.b16 %v2317
        %v3354 = vunpack.c.h.b16 %v2317
        %v3355 = vunpack.c.l.b16 %v2318
        %v3356 = vunpack.c.h.b16 %v2318
        %v3357 = vunpack.c.l.b16 %v2319
        %v3358 = vunpack.c.h.b16 %v2319
        %v3359 = vunpack.c.l.b16 %v2320
        %v3360 = vunpack.c.h.b16 %v2320
        %v3361 = vunpack.c.l.b16 %v2321
        %v3362 = vunpack.c.h.b16 %v2321
        %v3363 = vunpack.c.l.b16 %v2322
        %v3364 = vunpack.c.h.b16 %v2322
        %v3365 = vunpack.c.l.b16 %v2323
        %v3366 = vunpack.c.h.b16 %v2323
        %v3367 = vunpack.c.l.b16 %v2324
        %v3368 = vunpack.c.h.b16 %v2324
        %v3369 = vunpack.c.l.b16 %v2325
        %v3370 = vunpack.c.h.b16 %v2325
        %v3371 = vunpack.c.l.b16 %v2326
        %v3372 = vunpack.c.h.b16 %v2326
        %v3373 = vunpack.c.l.b16 %v2327
        %v3374 = vunpack.c.h.b16 %v2327
        %v3375 = vunpack.c.l.b16 %v2328
        %v3376 = vunpack.c.h.b16 %v2328
        %v3377 = vunpack.c.l.b16 %v2329
        %v3378 = vunpack.c.h.b16 %v2329
        %v3379 = vunpack.c.l.b16 %v2330
        %v3380 = vunpack.c.h.b16 %v2330
        %v3381 = vunpack.c.l.b16 %v2331
        %v3382 = vunpack.c.h.b16 %v2331
        %v3383 = vunpack.c.l.b16 %v2332
        %v3384 = vunpack.c.h.b16 %v2332
        %v3385 = vunpack.c.l.b16 %v2333
        %v3386 = vunpack.c.h.b16 %v2333
        %v3387 = vunpack.c.l.b16 %v2334
        %v3388 = vunpack.c.h.b16 %v2334
        %v3389 = vunpack.c.l.b16 %v2335
        %v3390 = vunpack.c.h.b16 %v2335
        %v3391 = vunpack.c.l.b16 %v2336
        %v3392 = vunpack.c.h.b16 %v2336
        %v3393 = vunpack.c.l.b16 %v2337
        %v3394 = vunpack.c.h.b16 %v2337
        %v3395 = vunpack.c.l.b16 %v2338
        %v3396 = vunpack.c.h.b16 %v2338
        %v3397 = vunpack.c.l.b16 %v2339
        %v3398 = vunpack.c.h.b16 %v2339
        %v3399 = vunpack.c.l.b16 %v2340
        %v3400 = vunpack.c.h.b16 %v2340
        %v3401 = vunpack.c.l.b16 %v2341
        %v3402 = vunpack.c.h.b16 %v2341
        %v3403 = vunpack.c.l.b16 %v2342
        %v3404 = vunpack.c.h.b16 %v2342
        %v3405 = vunpack.c.l.b16 %v2343
        %v3406 = vunpack.c.h.b16 %v2343
        %v3407 = vunpack.c.l.b16 %v2344
        %v3408 = vunpack.c.h.b16 %v2344
        %v3409 = vunpack.c.l.b16 %v2345
        %v3410 = vunpack.c.h.b16 %v2345
        %v3411 = vunpack.c.l.b16 %v2346
        %v3412 = vunpack.c.h.b16 %v2346
        %v3413 = vunpack.c.l.b16 %v2347
        %v3414 = vunpack.c.h.b16 %v2347
        %v3415 = vunpack.c.l.b16 %v2348
        %v3416 = vunpack.c.h.b16 %v2348
        %v3417 = vunpack.c.l.b16 %v2349
        %v3418 = vunpack.c.h.b16 %v2349
        %v3419 = vunpack.c.l.b16 %v2350
        %v3420 = vunpack.c.h.b16 %v2350
        %v3421 = vunpack.c.l.b16 %v2351
        %v3422 = vunpack.c.h.b16 %v2351
        %v3423 = vunpack.c.l.b16 %v2352
        %v3424 = vunpack.c.h.b16 %v2352
        %v3425 = vunpack.c.l.b16 %v2353
        %v3426 = vunpack.c.h.b16 %v2353
        %v3427 = vunpack.c.l.b16 %v2354
        %v3428 = vunpack.c.h.b16 %v2354
        %v3429 = vunpack.c.l.b16 %v2355
        %v3430 = vunpack.c.h.b16 %v2355
        %v3431 = vunpack.c.l.b16 %v2356
        %v3432 = vunpack.c.h.b16 %v2356
        %v3433 = vunpack.c.l.b16 %v2357
        %v3434 = vunpack.c.h.b16 %v2357
        %v3435 = vunpack.c.l.b16 %v2358
        %v3436 = vunpack.c.h.b16 %v2358
        %v3437 = vunpack.c.l.b16 %v2359
        %v3438 = vunpack.c.h.b16 %v2359
        %v3439 = vunpack.c.l.b16 %v2360
        %v3440 = vunpack.c.h.b16 %v2360
        %v3441 = vunpack.c.l.b16 %v2361
        %v3442 = vunpack.c.h.b16 %v2361
        %v3443 = vunpack.c.l.b16 %v2362
        %v3444 = vunpack.c.h.b16 %v2362
        %v3445 = vunpack.c.l.b16 %v2363
        %v3446 = vunpack.c.h.b16 %v2363
        %v3447 = vunpack.c.l.b16 %v2364
        %v3448 = vunpack.c.h.b16 %v2364
        %v3449 = vunpack.c.l.b16 %v2365
        %v3450 = vunpack.c.h.b16 %v2365
        %v3451 = vunpack.c.l.b16 %v2366
        %v3452 = vunpack.c.h.b16 %v2366
        %v3453 = vunpack.c.l.b16 %v2367
        %v3454 = vunpack.c.h.b16 %v2367
        %v3455 = vunpack.c.l.b16 %v2368
        %v3456 = vunpack.c.h.b16 %v2368
        %v3457 = vunpack.c.l.b16 %v2369
        %v3458 = vunpack.c.h.b16 %v2369
        %v3459 = vunpack.c.l.b16 %v2370
        %v3460 = vunpack.c.h.b16 %v2370
        %v3461 = vunpack.c.l.b16 %v2371
        %v3462 = vunpack.c.h.b16 %v2371
        %v3463 = vunpack.c.l.b16 %v2372
        %v3464 = vunpack.c.h.b16 %v2372
        %v3465 = vunpack.c.l.b16 %v2373
        %v3466 = vunpack.c.h.b16 %v2373
        %v3467 = vunpack.c.l.b16 %v2374
        %v3468 = vunpack.c.h.b16 %v2374
        %v3469 = vunpack.c.l.b16 %v2375
        %v3470 = vunpack.c.h.b16 %v2375
        %v3471 = vunpack.c.l.b16 %v2376
        %v3472 = vunpack.c.h.b16 %v2376
        %v3473 = vunpack.c.l.b16 %v2377
        %v3474 = vunpack.c.h.b16 %v2377
        %v3475 = vunpack.c.l.b16 %v2378
        %v3476 = vunpack.c.h.b16 %v2378
        %v3477 = vunpack.c.l.b16 %v2379
        %v3478 = vunpack.c.h.b16 %v2379
        %v3479 = vunpack.c.l.b16 %v2380
        %v3480 = vunpack.c.h.b16 %v2380
        %v3481 = vunpack.c.l.b16 %v2381
        %v3482 = vunpack.c.h.b16 %v2381
        %v3483 = vunpack.c.l.b16 %v2382
        %v3484 = vunpack.c.h.b16 %v2382
        %v3485 = vunpack.c.l.b16 %v2383
        %v3486 = vunpack.c.h.b16 %v2383
        %v3487 = vunpack.c.l.b16 %v2384
        %v3488 = vunpack.c.h.b16 %v2384
        %v3489 = vunpack.c.l.b16 %v2385
        %v3490 = vunpack.c.h.b16 %v2385
        %v3491 = vunpack.c.l.b16 %v2386
        %v3492 = vunpack.c.h.b16 %v2386
        %v3493 = vunpack.c.l.b16 %v2387
        %v3494 = vunpack.c.h.b16 %v2387
        %v3495 = vunpack.c.l.b16 %v2388
        %v3496 = vunpack.c.h.b16 %v2388
        %v3497 = vunpack.c.l.b16 %v2389
        %v3498 = vunpack.c.h.b16 %v2389
        %v3499 = vunpack.c.l.b16 %v2390
        %v3500 = vunpack.c.h.b16 %v2390
        %v3501 = vunpack.c.l.b16 %v2391
        %v3502 = vunpack.c.h.b16 %v2391
        %v3503 = vunpack.c.l.b16 %v2392
        %v3504 = vunpack.c.h.b16 %v2392
        %v3505 = vunpack.c.l.b16 %v2393
        %v3506 = vunpack.c.h.b16 %v2393
        %v3507 = vunpack.c.l.b16 %v2394
        %v3508 = vunpack.c.h.b16 %v2394
        %v3509 = vunpack.c.l.b16 %v2395
        %v3510 = vunpack.c.h.b16 %v2395
        %v3511 = vunpack.c.l.b16 %v2396
        %v3512 = vunpack.c.h.b16 %v2396
        %v3513 = vunpack.c.l.b16 %v2397
        %v3514 = vunpack.c.h.b16 %v2397
        %v3515 = vunpack.c.l.b16 %v2398
        %v3516 = vunpack.c.h.b16 %v2398
        %v3517 = vunpack.c.l.b16 %v2399
        %v3518 = vunpack.c.h.b16 %v2399
        %v3519 = vunpack.c.l.b16 %v2400
        %v3520 = vunpack.c.h.b16 %v2400
        %v3521 = vunpack.c.l.b16 %v2401
        %v3522 = vunpack.c.h.b16 %v2401
        %v3523 = vunpack.c.l.b16 %v2402
        %v3524 = vunpack.c.h.b16 %v2402
        %v3525 = vunpack.c.l.b16 %v2403
        %v3526 = vunpack.c.h.b16 %v2403
        %v3527 = vunpack.c.l.b16 %v2404
        %v3528 = vunpack.c.h.b16 %v2404
        %v3529 = vunpack.c.l.b16 %v2405
        %v3530 = vunpack.c.h.b16 %v2405
        %v3531 = vunpack.c.l.b16 %v2406
        %v3532 = vunpack.c.h.b16 %v2406
        %v3533 = vunpack.c.l.b16 %v2407
        %v3534 = vunpack.c.h.b16 %v2407
        %v3535 = vunpack.c.l.b16 %v2408
        %v3536 = vunpack.c.h.b16 %v2408
        %v3537 = vunpack.c.l.b16 %v2409
        %v3538 = vunpack.c.h.b16 %v2409
        %v3539 = vunpack.c.l.b16 %v2410
        %v3540 = vunpack.c.h.b16 %v2410
        %v3541 = vunpack.c.l.b16 %v2411
        %v3542 = vunpack.c.h.b16 %v2411
        %v3543 = vunpack.c.l.b16 %v2412
        %v3544 = vunpack.c.h.b16 %v2412
        %v3545 = vunpack.c.l.b16 %v2413
        %v3546 = vunpack.c.h.b16 %v2413
        %v3547 = vunpack.c.l.b16 %v2414
        %v3548 = vunpack.c.h.b16 %v2414
        %v3549 = vunpack.c.l.b16 %v2415
        %v3550 = vunpack.c.h.b16 %v2415
        %v3551 = vunpack.c.l.b16 %v2416
        %v3552 = vunpack.c.h.b16 %v2416
        %v3553 = vunpack.c.l.b16 %v2417
        %v3554 = vunpack.c.h.b16 %v2417
        %v3555 = vunpack.c.l.b16 %v2418
        %v3556 = vunpack.c.h.b16 %v2418
        %v3557 = vunpack.c.l.b16 %v2419
        %v3558 = vunpack.c.h.b16 %v2419
        %v3559 = vunpack.c.l.b16 %v2420
        %v3560 = vunpack.c.h.b16 %v2420
        %v3561 = vunpack.c.l.b16 %v2421
        %v3562 = vunpack.c.h.b16 %v2421
        %v3563 = vunpack.c.l.b16 %v2422
        %v3564 = vunpack.c.h.b16 %v2422
        %v3565 = vunpack.c.l.b16 %v2423
        %v3566 = vunpack.c.h.b16 %v2423
        %v3567 = vunpack.c.l.b16 %v2424
        %v3568 = vunpack.c.h.b16 %v2424
        %v3569 = vunpack.c.l.b16 %v2425
        %v3570 = vunpack.c.h.b16 %v2425
        %v3571 = vunpack.c.l.b16 %v2426
        %v3572 = vunpack.c.h.b16 %v2426
        %v3573 = vunpack.c.l.b16 %v2427
        %v3574 = vunpack.c.h.b16 %v2427
        %v3575 = vunpack.c.l.b16 %v2428
        %v3576 = vunpack.c.h.b16 %v2428
        %v3577 = vunpack.c.l.b16 %v2429
        %v3578 = vunpack.c.h.b16 %v2429
        %v3579 = vunpack.c.l.b16 %v2430
        %v3580 = vunpack.c.h.b16 %v2430
        %v3581 = vunpack.c.l.b16 %v2431
        %v3582 = vunpack.c.h.b16 %v2431
        %v3583 = vunpack.c.l.b16 %v2432
        %v3584 = vunpack.c.h.b16 %v2432
        %v3585 = vunpack.c.l.b16 %v2433
        %v3586 = vunpack.c.h.b16 %v2433
        %v3587 = vpack.c.b16 %v2823, %v2819
        %v3588 = vpack.c.b16 %v2824, %v2820
        %v3589 = vpack.c.b16 %v2825, %v2821
        %v3590 = vpack.c.b16 %v2826, %v2822
        %v3591 = vpack.c.b16 %v2831, %v2827
        %v3592 = vpack.c.b16 %v2832, %v2828
        %v3593 = vpack.c.b16 %v2833, %v2829
        %v3594 = vpack.c.b16 %v2834, %v2830
        %v3595 = vpack.c.b16 %v2839, %v2835
        %v3596 = vpack.c.b16 %v2840, %v2836
        %v3597 = vpack.c.b16 %v2841, %v2837
        %v3598 = vpack.c.b16 %v2842, %v2838
        %v3599 = vpack.c.b16 %v2847, %v2843
        %v3600 = vpack.c.b16 %v2848, %v2844
        %v3601 = vpack.c.b16 %v2849, %v2845
        %v3602 = vpack.c.b16 %v2850, %v2846
        %v3603 = vpack.c.b16 %v2855, %v2851
        %v3604 = vpack.c.b16 %v2856, %v2852
        %v3605 = vpack.c.b16 %v2857, %v2853
        %v3606 = vpack.c.b16 %v2858, %v2854
        %v3607 = vpack.c.b16 %v2863, %v2859
        %v3608 = vpack.c.b16 %v2864, %v2860
        %v3609 = vpack.c.b16 %v2865, %v2861
        %v3610 = vpack.c.b16 %v2866, %v2862
        %v3611 = vpack.c.b16 %v2871, %v2867
        %v3612 = vpack.c.b16 %v2872, %v2868
        %v3613 = vpack.c.b16 %v2873, %v2869
        %v3614 = vpack.c.b16 %v2874, %v2870
        %v3615 = vpack.c.b16 %v2879, %v2875
        %v3616 = vpack.c.b16 %v2880, %v2876
        %v3617 = vpack.c.b16 %v2881, %v2877
        %v3618 = vpack.c.b16 %v2882, %v2878
        %v3619 = vpack.c.b16 %v2887, %v2883
        %v3620 = vpack.c.b16 %v2888, %v2884
        %v3621 = vpack.c.b16 %v2889, %v2885
        %v3622 = vpack.c.b16 %v2890, %v2886
        %v3623 = vpack.c.b16 %v2895, %v2891
        %v3624 = vpack.c.b16 %v2896, %v2892
        %v3625 = vpack.c.b16 %v2897, %v2893
        %v3626 = vpack.c.b16 %v2898, %v2894
        %v3627 = vpack.c.b16 %v2903, %v2899
        %v3628 = vpack.c.b16 %v2904, %v2900
        %v3629 = vpack.c.b16 %v2905, %v2901
        %v3630 = vpack.c.b16 %v2906, %v2902
        %v3631 = vpack.c.b16 %v2911, %v2907
        %v3632 = vpack.c.b16 %v2912, %v2908
        %v3633 = vpack.c.b16 %v2913, %v2909
        %v3634 = vpack.c.b16 %v2914, %v2910
        %v3635 = vpack.c.b16 %v2919, %v2915
        %v3636 = vpack.c.b16 %v2920, %v2916
        %v3637 = vpack.c.b16 %v2921, %v2917
        %v3638 = vpack.c.b16 %v2922, %v2918
        %v3639 = vpack.c.b16 %v2927, %v2923
        %v3640 = vpack.c.b16 %v2928, %v2924
        %v3641 = vpack.c.b16 %v2929, %v2925
        %v3642 = vpack.c.b16 %v2930, %v2926
        %v3643 = vpack.c.b16 %v2935, %v2931
        %v3644 = vpack.c.b16 %v2936, %v2932
        %v3645 = vpack.c.b16 %v2937, %v2933
        %v3646 = vpack.c.b16 %v2938, %v2934
        %v3647 = vpack.c.b16 %v2943, %v2939
        %v3648 = vpack.c.b16 %v2944, %v2940
        %v3649 = vpack.c.b16 %v2945, %v2941
        %v3650 = vpack.c.b16 %v2946, %v2942
        %v3651 = vpack.c.b16 %v2951, %v2947
        %v3652 = vpack.c.b16 %v2952, %v2948
        %v3653 = vpack.c.b16 %v2953, %v2949
        %v3654 = vpack.c.b16 %v2954, %v2950
        %v3655 = vpack.c.b16 %v2959, %v2955
        %v3656 = vpack.c.b16 %v2960, %v2956
        %v3657 = vpack.c.b16 %v2961, %v2957
        %v3658 = vpack.c.b16 %v2962, %v2958
        %v3659 = vpack.c.b16 %v2967, %v2963
        %v3660 = vpack.c.b16 %v2968, %v2964
        %v3661 = vpack.c.b16 %v2969, %v2965
        %v3662 = vpack.c.b16 %v2970, %v2966
        %v3663 = vpack.c.b16 %v2975, %v2971
        %v3664 = vpack.c.b16 %v2976, %v2972
        %v3665 = vpack.c.b16 %v2977, %v2973
        %v3666 = vpack.c.b16 %v2978, %v2974
        %v3667 = vpack.c.b16 %v2983, %v2979
        %v3668 = vpack.c.b16 %v2984, %v2980
        %v3669 = vpack.c.b16 %v2985, %v2981
        %v3670 = vpack.c.b16 %v2986, %v2982
        %v3671 = vpack.c.b16 %v2991, %v2987
        %v3672 = vpack.c.b16 %v2992, %v2988
        %v3673 = vpack.c.b16 %v2993, %v2989
        %v3674 = vpack.c.b16 %v2994, %v2990
        %v3675 = vpack.c.b16 %v2999, %v2995
        %v3676 = vpack.c.b16 %v3000, %v2996
        %v3677 = vpack.c.b16 %v3001, %v2997
        %v3678 = vpack.c.b16 %v3002, %v2998
        %v3679 = vpack.c.b16 %v3007, %v3003
        %v3680 = vpack.c.b16 %v3008, %v3004
        %v3681 = vpack.c.b16 %v3009, %v3005
        %v3682 = vpack.c.b16 %v3010, %v3006
        %v3683 = vpack.c.b16 %v3015, %v3011
        %v3684 = vpack.c.b16 %v3016, %v3012
        %v3685 = vpack.c.b16 %v3017, %v3013
        %v3686 = vpack.c.b16 %v3018, %v3014
        %v3687 = vpack.c.b16 %v3023, %v3019
        %v3688 = vpack.c.b16 %v3024, %v3020
        %v3689 = vpack.c.b16 %v3025, %v3021
        %v3690 = vpack.c.b16 %v3026, %v3022
        %v3691 = vpack.c.b16 %v3031, %v3027
        %v3692 = vpack.c.b16 %v3032, %v3028
        %v3693 = vpack.c.b16 %v3033, %v3029
        %v3694 = vpack.c.b16 %v3034, %v3030
        %v3695 = vpack.c.b16 %v3039, %v3035
        %v3696 = vpack.c.b16 %v3040, %v3036
        %v3697 = vpack.c.b16 %v3041, %v3037
        %v3698 = vpack.c.b16 %v3042, %v3038
        %v3699 = vpack.c.b16 %v3047, %v3043
        %v3700 = vpack.c.b16 %v3048, %v3044
        %v3701 = vpack.c.b16 %v3049, %v3045
        %v3702 = vpack.c.b16 %v3050, %v3046
        %v3703 = vpack.c.b16 %v3055, %v3051
        %v3704 = vpack.c.b16 %v3056, %v3052
        %v3705 = vpack.c.b16 %v3057, %v3053
        %v3706 = vpack.c.b16 %v3058, %v3054
        %v3707 = vpack.c.b16 %v3063, %v3059
        %v3708 = vpack.c.b16 %v3064, %v3060
        %v3709 = vpack.c.b16 %v3065, %v3061
        %v3710 = vpack.c.b16 %v3066, %v3062
        %v3711 = vpack.c.b16 %v3071, %v3067
        %v3712 = vpack.c.b16 %v3072, %v3068
        %v3713 = vpack.c.b16 %v3073, %v3069
        %v3714 = vpack.c.b16 %v3074, %v3070
        %v3715 = vpack.c.b16 %v3079, %v3075
        %v3716 = vpack.c.b16 %v3080, %v3076
        %v3717 = vpack.c.b16 %v3081, %v3077
        %v3718 = vpack.c.b16 %v3082, %v3078
        %v3719 = vpack.c.b16 %v3087, %v3083
        %v3720 = vpack.c.b16 %v3088, %v3084
        %v3721 = vpack.c.b16 %v3089, %v3085
        %v3722 = vpack.c.b16 %v3090, %v3086
        %v3723 = vpack.c.b16 %v3095, %v3091
        %v3724 = vpack.c.b16 %v3096, %v3092
        %v3725 = vpack.c.b16 %v3097, %v3093
        %v3726 = vpack.c.b16 %v3098, %v3094
        %v3727 = vpack.c.b16 %v3103, %v3099
        %v3728 = vpack.c.b16 %v3104, %v3100
        %v3729 = vpack.c.b16 %v3105, %v3101
        %v3730 = vpack.c.b16 %v3106, %v3102
        %v3731 = vpack.c.b16 %v3111, %v3107
        %v3732 = vpack.c.b16 %v3112, %v3108
        %v3733 = vpack.c.b16 %v3113, %v3109
        %v3734 = vpack.c.b16 %v3114, %v3110
        %v3735 = vpack.c.b16 %v3119, %v3115
        %v3736 = vpack.c.b16 %v3120, %v3116
        %v3737 = vpack.c.b16 %v3121, %v3117
        %v3738 = vpack.c.b16 %v3122, %v3118
        %v3739 = vpack.c.b16 %v3127, %v3123
        %v3740 = vpack.c.b16 %v3128, %v3124
        %v3741 = vpack.c.b16 %v3129, %v3125
        %v3742 = vpack.c.b16 %v3130, %v3126
        %v3743 = vpack.c.b16 %v3135, %v3131
        %v3744 = vpack.c.b16 %v3136, %v3132
        %v3745 = vpack.c.b16 %v3137, %v3133
        %v3746 = vpack.c.b16 %v3138, %v3134
        %v3747 = vpack.c.b16 %v3143, %v3139
        %v3748 = vpack.c.b16 %v3144, %v3140
        %v3749 = vpack.c.b16 %v3145, %v3141
        %v3750 = vpack.c.b16 %v3146, %v3142
        %v3751 = vpack.c.b16 %v3151, %v3147
        %v3752 = vpack.c.b16 %v3152, %v3148
        %v3753 = vpack.c.b16 %v3153, %v3149
        %v3754 = vpack.c.b16 %v3154, %v3150
        %v3755 = vpack.c.b16 %v3159, %v3155
        %v3756 = vpack.c.b16 %v3160, %v3156
        %v3757 = vpack.c.b16 %v3161, %v3157
        %v3758 = vpack.c.b16 %v3162, %v3158
        %v3759 = vpack.c.b16 %v3167, %v3163
        %v3760 = vpack.c.b16 %v3168, %v3164
        %v3761 = vpack.c.b16 %v3169, %v3165
        %v3762 = vpack.c.b16 %v3170, %v3166
        %v3763 = vpack.c.b16 %v3175, %v3171
        %v3764 = vpack.c.b16 %v3176, %v3172
        %v3765 = vpack.c.b16 %v3177, %v3173
        %v3766 = vpack.c.b16 %v3178, %v3174
        %v3767 = vpack.c.b16 %v3183, %v3179
        %v3768 = vpack.c.b16 %v3184, %v3180
        %v3769 = vpack.c.b16 %v3185, %v3181
        %v3770 = vpack.c.b16 %v3186, %v3182
        %v3771 = vpack.c.b16 %v3191, %v3187
        %v3772 = vpack.c.b16 %v3192, %v3188
        %v3773 = vpack.c.b16 %v3193, %v3189
        %v3774 = vpack.c.b16 %v3194, %v3190
        %v3775 = vpack.c.b16 %v3199, %v3195
        %v3776 = vpack.c.b16 %v3200, %v3196
        %v3777 = vpack.c.b16 %v3201, %v3197
        %v3778 = vpack.c.b16 %v3202, %v3198
        %v3779 = vpack.c.b16 %v3207, %v3203
        %v3780 = vpack.c.b16 %v3208, %v3204
        %v3781 = vpack.c.b16 %v3209, %v3205
        %v3782 = vpack.c.b16 %v3210, %v3206
        %v3783 = vpack.c.b16 %v3215, %v3211
        %v3784 = vpack.c.b16 %v3216, %v3212
        %v3785 = vpack.c.b16 %v3217, %v3213
        %v3786 = vpack.c.b16 %v3218, %v3214
        %v3787 = vpack.c.b16 %v3223, %v3219
        %v3788 = vpack.c.b16 %v3224, %v3220
        %v3789 = vpack.c.b16 %v3225, %v3221
        %v3790 = vpack.c.b16 %v3226, %v3222
        %v3791 = vpack.c.b16 %v3231, %v3227
        %v3792 = vpack.c.b16 %v3232, %v3228
        %v3793 = vpack.c.b16 %v3233, %v3229
        %v3794 = vpack.c.b16 %v3234, %v3230
        %v3795 = vpack.c.b16 %v3239, %v3235
        %v3796 = vpack.c.b16 %v3240, %v3236
        %v3797 = vpack.c.b16 %v3241, %v3237
        %v3798 = vpack.c.b16 %v3242, %v3238
        %v3799 = vpack.c.b16 %v3247, %v3243
        %v3800 = vpack.c.b16 %v3248, %v3244
        %v3801 = vpack.c.b16 %v3249, %v3245
        %v3802 = vpack.c.b16 %v3250, %v3246
        %v3803 = vpack.c.b16 %v3255, %v3251
        %v3804 = vpack.c.b16 %v3256, %v3252
        %v3805 = vpack.c.b16 %v3257, %v3253
        %v3806 = vpack.c.b16 %v3258, %v3254
        %v3807 = vpack.c.b16 %v3263, %v3259
        %v3808 = vpack.c.b16 %v3264, %v3260
        %v3809 = vpack.c.b16 %v3265, %v3261
        %v3810 = vpack.c.b16 %v3266, %v3262
        %v3811 = vpack.c.b16 %v3271, %v3267
        %v3812 = vpack.c.b16 %v3272, %v3268
        %v3813 = vpack.c.b16 %v3273, %v3269
        %v3814 = vpack.c.b16 %v3274, %v3270
        %v3815 = vpack.c.b16 %v3279, %v3275
        %v3816 = vpack.c.b16 %v3280, %v3276
        %v3817 = vpack.c.b16 %v3281, %v3277
        %v3818 = vpack.c.b16 %v3282, %v3278
        %v3819 = vpack.c.b16 %v3287, %v3283
        %v3820 = vpack.c.b16 %v3288, %v3284
        %v3821 = vpack.c.b16 %v3289, %v3285
        %v3822 = vpack.c.b16 %v3290, %v3286
        %v3823 = vpack.c.b16 %v3295, %v3291
        %v3824 = vpack.c.b16 %v3296, %v3292
        %v3825 = vpack.c.b16 %v3297, %v3293
        %v3826 = vpack.c.b16 %v3298, %v3294
        %v3827 = vpack.c.b16 %v3303, %v3299
        %v3828 = vpack.c.b16 %v3304, %v3300
        %v3829 = vpack.c.b16 %v3305, %v3301
        %v3830 = vpack.c.b16 %v3306, %v3302
        %v3831 = vpack.c.b16 %v3311, %v3307
        %v3832 = vpack.c.b16 %v3312, %v3308
        %v3833 = vpack.c.b16 %v3313, %v3309
        %v3834 = vpack.c.b16 %v3314, %v3310
        %v3835 = vpack.c.b16 %v3319, %v3315
        %v3836 = vpack.c.b16 %v3320, %v3316
        %v3837 = vpack.c.b16 %v3321, %v3317
        %v3838 = vpack.c.b16 %v3322, %v3318
        %v3839 = vpack.c.b16 %v3327, %v3323
        %v3840 = vpack.c.b16 %v3328, %v3324
        %v3841 = vpack.c.b16 %v3329, %v3325
        %v3842 = vpack.c.b16 %v3330, %v3326
        %v3843 = vpack.c.b16 %v3335, %v3331
        %v3844 = vpack.c.b16 %v3336, %v3332
        %v3845 = vpack.c.b16 %v3337, %v3333
        %v3846 = vpack.c.b16 %v3338, %v3334
        %v3847 = vpack.c.b16 %v3343, %v3339
        %v3848 = vpack.c.b16 %v3344, %v3340
        %v3849 = vpack.c.b16 %v3345, %v3341
        %v3850 = vpack.c.b16 %v3346, %v3342
        %v3851 = vpack.c.b16 %v3351, %v3347
        %v3852 = vpack.c.b16 %v3352, %v3348
        %v3853 = vpack.c.b16 %v3353, %v3349
        %v3854 = vpack.c.b16 %v3354, %v3350
        %v3855 = vpack.c.b16 %v3359, %v3355
        %v3856 = vpack.c.b16 %v3360, %v3356
        %v3857 = vpack.c.b16 %v3361, %v3357
        %v3858 = vpack.c.b16 %v3362, %v3358
        %v3859 = vpack.c.b16 %v3367, %v3363
        %v3860 = vpack.c.b16 %v3368, %v3364
        %v3861 = vpack.c.b16 %v3369, %v3365
        %v3862 = vpack.c.b16 %v3370, %v3366
        %v3863 = vpack.c.b16 %v3375, %v3371
        %v3864 = vpack.c.b16 %v3376, %v3372
        %v3865 = vpack.c.b16 %v3377, %v3373
        %v3866 = vpack.c.b16 %v3378, %v3374
        %v3867 = vpack.c.b16 %v3383, %v3379
        %v3868 = vpack.c.b16 %v3384, %v3380
        %v3869 = vpack.c.b16 %v3385, %v3381
        %v3870 = vpack.c.b16 %v3386, %v3382
        %v3871 = vpack.c.b16 %v3391, %v3387
        %v3872 = vpack.c.b16 %v3392, %v3388
        %v3873 = vpack.c.b16 %v3393, %v3389
        %v3874 = vpack.c.b16 %v3394, %v3390
        %v3875 = vpack.c.b16 %v3399, %v3395
        %v3876 = vpack.c.b16 %v3400, %v3396
        %v3877 = vpack.c.b16 %v3401, %v3397
        %v3878 = vpack.c.b16 %v3402, %v3398
        %v3879 = vpack.c.b16 %v3407, %v3403
        %v3880 = vpack.c.b16 %v3408, %v3404
        %v3881 = vpack.c.b16 %v3409, %v3405
        %v3882 = vpack.c.b16 %v3410, %v3406
        %v3883 = vpack.c.b16 %v3415, %v3411
        %v3884 = vpack.c.b16 %v3416, %v3412
        %v3885 = vpack.c.b16 %v3417, %v3413
        %v3886 = vpack.c.b16 %v3418, %v3414
        %v3887 = vpack.c.b16 %v3423, %v3419
        %v3888 = vpack.c.b16 %v3424, %v3420
        %v3889 = vpack.c.b16 %v3425, %v3421
        %v3890 = vpack.c.b16 %v3426, %v3422
        %v3891 = vpack.c.b16 %v3431, %v3427
        %v3892 = vpack.c.b16 %v3432, %v3428
        %v3893 = vpack.c.b16 %v3433, %v3429
        %v3894 = vpack.c.b16 %v3434, %v3430
        %v3895 = vpack.c.b16 %v3439, %v3435
        %v3896 = vpack.c.b16 %v3440, %v3436
        %v3897 = vpack.c.b16 %v3441, %v3437
        %v3898 = vpack.c.b16 %v3442, %v3438
        %v3899 = vpack.c.b16 %v3447, %v3443
        %v3900 = vpack.c.b16 %v3448, %v3444
        %v3901 = vpack.c.b16 %v3449, %v3445
        %v3902 = vpack.c.b16 %v3450, %v3446
        %v3903 = vpack.c.b16 %v3455, %v3451
        %v3904 = vpack.c.b16 %v3456, %v3452
        %v3905 = vpack.c.b16 %v3457, %v3453
        %v3906 = vpack.c.b16 %v3458, %v3454
        %v3907 = vpack.c.b16 %v3463, %v3459
        %v3908 = vpack.c.b16 %v3464, %v3460
        %v3909 = vpack.c.b16 %v3465, %v3461
        %v3910 = vpack.c.b16 %v3466, %v3462
        %v3911 = vpack.c.b16 %v3471, %v3467
        %v3912 = vpack.c.b16 %v3472, %v3468
        %v3913 = vpack.c.b16 %v3473, %v3469
        %v3914 = vpack.c.b16 %v3474, %v3470
        %v3915 = vpack.c.b16 %v3479, %v3475
        %v3916 = vpack.c.b16 %v3480, %v3476
        %v3917 = vpack.c.b16 %v3481, %v3477
        %v3918 = vpack.c.b16 %v3482, %v3478
        %v3919 = vpack.c.b16 %v3487, %v3483
        %v3920 = vpack.c.b16 %v3488, %v3484
        %v3921 = vpack.c.b16 %v3489, %v3485
        %v3922 = vpack.c.b16 %v3490, %v3486
        %v3923 = vpack.c.b16 %v3495, %v3491
        %v3924 = vpack.c.b16 %v3496, %v3492
        %v3925 = vpack.c.b16 %v3497, %v3493
        %v3926 = vpack.c.b16 %v3498, %v3494
        %v3927 = vpack.c.b16 %v3503, %v3499
        %v3928 = vpack.c.b16 %v3504, %v3500
        %v3929 = vpack.c.b16 %v3505, %v3501
        %v3930 = vpack.c.b16 %v3506, %v3502
        %v3931 = vpack.c.b16 %v3511, %v3507
        %v3932 = vpack.c.b16 %v3512, %v3508
        %v3933 = vpack.c.b16 %v3513, %v3509
        %v3934 = vpack.c.b16 %v3514, %v3510
        %v3935 = vpack.c.b16 %v3519, %v3515
        %v3936 = vpack.c.b16 %v3520, %v3516
        %v3937 = vpack.c.b16 %v3521, %v3517
        %v3938 = vpack.c.b16 %v3522, %v3518
        %v3939 = vpack.c.b16 %v3527, %v3523
        %v3940 = vpack.c.b16 %v3528, %v3524
        %v3941 = vpack.c.b16 %v3529, %v3525
        %v3942 = vpack.c.b16 %v3530, %v3526
        %v3943 = vpack.c.b16 %v3535, %v3531
        %v3944 = vpack.c.b16 %v3536, %v3532
        %v3945 = vpack.c.b16 %v3537, %v3533
        %v3946 = vpack.c.b16 %v3538, %v3534
        %v3947 = vpack.c.b16 %v3543, %v3539
        %v3948 = vpack.c.b16 %v3544, %v3540
        %v3949 = vpack.c.b16 %v3545, %v3541
        %v3950 = vpack.c.b16 %v3546, %v3542
        %v3951 = vpack.c.b16 %v3551, %v3547
        %v3952 = vpack.c.b16 %v3552, %v3548
        %v3953 = vpack.c.b16 %v3553, %v3549
        %v3954 = vpack.c.b16 %v3554, %v3550
        %v3955 = vpack.c.b16 %v3559, %v3555
        %v3956 = vpack.c.b16 %v3560, %v3556
        %v3957 = vpack.c.b16 %v3561, %v3557
        %v3958 = vpack.c.b16 %v3562, %v3558
        %v3959 = vpack.c.b16 %v3567, %v3563
        %v3960 = vpack.c.b16 %v3568, %v3564
        %v3961 = vpack.c.b16 %v3569, %v3565
        %v3962 = vpack.c.b16 %v3570, %v3566
        %v3963 = vpack.c.b16 %v3575, %v3571
        %v3964 = vpack.c.b16 %v3576, %v3572
        %v3965 = vpack.c.b16 %v3577, %v3573
        %v3966 = vpack.c.b16 %v3578, %v3574
        %v3967 = vpack.c.b16 %v3583, %v3579
        %v3968 = vpack.c.b16 %v3584, %v3580
        %v3969 = vpack.c.b16 %v3585, %v3581
        %v3970 = vpack.c.b16 %v3586, %v3582
        %v4356 = vlaneseq
        %v4357 = vshrl.u32 %v4356, 7
        %v4358 = vsub.s32 0, %v4357
        %v4359 = vrot.slane %v2434, %v4358
        %v4360 = vlaneseq
        %v4361 = vshrl.u32 %v4360, 7
        %v4362 = vsub.s32 1, %v4361
        %v4363 = vrot.slane %v2434, %v4362
        %v4364 = vlaneseq
        %v4365 = vshrl.u32 %v4364, 7
        %v4366 = vsub.s32 2, %v4365
        %v4367 = vrot.slane %v2434, %v4366
        %v4368 = vlaneseq
        %v4369 = vshrl.u32 %v4368, 7
        %v4370 = vsub.s32 3, %v4369
        %v4371 = vrot.slane %v2434, %v4370
        %4376 = vmatprep.subr.bf16.mxu0 %v3616
        %4377 = vmatpush1.bf16.msra.mxu0 %v3615
        %4378 = vmatprep.subr.bf16.mxu0 %v3612
        %4379 = vmatpush1.bf16.msra.mxu0 %v3611
        %4380 = vmatprep.subr.bf16.mxu0 %v3608
        %4381 = vmatpush1.bf16.msra.mxu0 %v3607
        %4382 = vmatprep.subr.bf16.mxu0 %v3604
        %4383 = vmatpush1.bf16.msra.mxu0 %v3603
        %4384 = vmatprep.subr.bf16.mxu0 %v3600
        %4385 = vmatpush1.bf16.msra.mxu0 %v3599
        %4386 = vmatprep.subr.bf16.mxu0 %v3596
        %4387 = vmatpush1.bf16.msra.mxu0 %v3595
        %4388 = vmatprep.subr.bf16.mxu0 %v3592
        %4389 = vmatpush1.bf16.msra.mxu0 %v3591
        %4390 = vmatprep.subr.bf16.mxu0 %v3588
        %4391 = vmatpush1.bf16.msra.mxu0 %v3587
        %4392 = vmatprep.subr.bf16.mxu0 %v3648
        %4393 = vmatpush2.bf16.msra.mxu0 %v3647
        %4394 = vmatprep.subr.bf16.mxu0 %v3644
        %4395 = vmatpush2.bf16.msra.mxu0 %v3643
        %4396 = vmatprep.subr.bf16.mxu0 %v3640
        %4397 = vmatpush2.bf16.msra.mxu0 %v3639
        %4398 = vmatprep.subr.bf16.mxu0 %v3636
        %4399 = vmatpush2.bf16.msra.mxu0 %v3635
        %4400 = vmatprep.subr.bf16.mxu0 %v3632
        %4401 = vmatpush2.bf16.msra.mxu0 %v3631
        %4402 = vmatprep.subr.bf16.mxu0 %v3628
        %4403 = vmatpush2.bf16.msra.mxu0 %v3627
        %4404 = vmatprep.subr.bf16.mxu0 %v3624
        %4405 = vmatpush2.bf16.msra.mxu0 %v3623
        %4406 = vmatprep.subr.bf16.mxu0 %v3620
        %4407 = vmatpush2.bf16.msra.mxu0 %v3619
        %4408 = vmatprep.mubr.bf16.mxu0 %v2039
        %4409 = vmatmul.mubr.bf16.gmra.mxu0 %v2038
        %v4410 = vpop.f32.mrf.mxu0
        %v4411 = vadd.f32 %v4359, %v4410
        %v4412 = vpop.f32.mrf.mxu0
        %v4413 = vadd.f32 %v4363, %v4412
        %v4414 = vpop.f32.mrf.mxu0
        %v4415 = vpop.f32.mrf.mxu0
        %4416 = vdwg.mxu0
        %4417 = vmatprep.subr.bf16.mxu0 %v3680
        %4418 = vmatpush1.bf16.msra.mxu0 %v3679
        %4419 = vmatprep.subr.bf16.mxu0 %v3676
        %4420 = vmatpush1.bf16.msra.mxu0 %v3675
        %4421 = vmatprep.subr.bf16.mxu0 %v3672
        %4422 = vmatpush1.bf16.msra.mxu0 %v3671
        %4423 = vmatprep.subr.bf16.mxu0 %v3668
        %4424 = vmatpush1.bf16.msra.mxu0 %v3667
        %4425 = vmatprep.subr.bf16.mxu0 %v3664
        %4426 = vmatpush1.bf16.msra.mxu0 %v3663
        %4427 = vmatprep.subr.bf16.mxu0 %v3660
        %4428 = vmatpush1.bf16.msra.mxu0 %v3659
        %4429 = vmatprep.subr.bf16.mxu0 %v3656
        %4430 = vmatpush1.bf16.msra.mxu0 %v3655
        %4431 = vmatprep.subr.bf16.mxu0 %v3652
        %4432 = vmatpush1.bf16.msra.mxu0 %v3651
        %4433 = vmatprep.subr.bf16.mxu0 %v3712
        %4434 = vmatpush2.bf16.msra.mxu0 %v3711
        %4435 = vmatprep.subr.bf16.mxu0 %v3708
        %4436 = vmatpush2.bf16.msra.mxu0 %v3707
        %4437 = vmatprep.subr.bf16.mxu0 %v3704
        %4438 = vmatpush2.bf16.msra.mxu0 %v3703
        %4439 = vmatprep.subr.bf16.mxu0 %v3700
        %4440 = vmatpush2.bf16.msra.mxu0 %v3699
        %4441 = vmatprep.subr.bf16.mxu0 %v3696
        %4442 = vmatpush2.bf16.msra.mxu0 %v3695
        %4443 = vmatprep.subr.bf16.mxu0 %v3692
        %4444 = vmatpush2.bf16.msra.mxu0 %v3691
        %4445 = vmatprep.subr.bf16.mxu0 %v3688
        %4446 = vmatpush2.bf16.msra.mxu0 %v3687
        %4447 = vmatprep.subr.bf16.mxu0 %v3684
        %4448 = vmatpush2.bf16.msra.mxu0 %v3683
        %4449 = vmatprep.mubr.bf16.mxu0 %v2041
        %4450 = vmatmul.mubr.bf16.gmra.mxu0 %v2040
        %v4451 = vpop.f32.mrf.mxu0
        %v4452 = vadd.f32 %v4411, %v4451
        %v4453 = vpop.f32.mrf.mxu0
        %v4454 = vadd.f32 %v4413, %v4453
        %v4455 = vpop.f32.mrf.mxu0
        %v4456 = vpop.f32.mrf.mxu0
        %4457 = vdwg.mxu0
        %4458 = vmatprep.subr.bf16.mxu0 %v3744
        %4459 = vmatpush1.bf16.msra.mxu0 %v3743
        %4460 = vmatprep.subr.bf16.mxu0 %v3740
        %4461 = vmatpush1.bf16.msra.mxu0 %v3739
        %4462 = vmatprep.subr.bf16.mxu0 %v3736
        %4463 = vmatpush1.bf16.msra.mxu0 %v3735
        %4464 = vmatprep.subr.bf16.mxu0 %v3732
        %4465 = vmatpush1.bf16.msra.mxu0 %v3731
        %4466 = vmatprep.subr.bf16.mxu0 %v3728
        %4467 = vmatpush1.bf16.msra.mxu0 %v3727
        %4468 = vmatprep.subr.bf16.mxu0 %v3724
        %4469 = vmatpush1.bf16.msra.mxu0 %v3723
        %4470 = vmatprep.subr.bf16.mxu0 %v3720
        %4471 = vmatpush1.bf16.msra.mxu0 %v3719
        %4472 = vmatprep.subr.bf16.mxu0 %v3716
        %4473 = vmatpush1.bf16.msra.mxu0 %v3715
        %4474 = vmatprep.subr.bf16.mxu0 %v3776
        %4475 = vmatpush2.bf16.msra.mxu0 %v3775
        %4476 = vmatprep.subr.bf16.mxu0 %v3772
        %4477 = vmatpush2.bf16.msra.mxu0 %v3771
        %4478 = vmatprep.subr.bf16.mxu0 %v3768
        %4479 = vmatpush2.bf16.msra.mxu0 %v3767
        %4480 = vmatprep.subr.bf16.mxu0 %v3764
        %4481 = vmatpush2.bf16.msra.mxu0 %v3763
        %4482 = vmatprep.subr.bf16.mxu0 %v3760
        %4483 = vmatpush2.bf16.msra.mxu0 %v3759
        %4484 = vmatprep.subr.bf16.mxu0 %v3756
        %4485 = vmatpush2.bf16.msra.mxu0 %v3755
        %4486 = vmatprep.subr.bf16.mxu0 %v3752
        %4487 = vmatpush2.bf16.msra.mxu0 %v3751
        %4488 = vmatprep.subr.bf16.mxu0 %v3748
        %4489 = vmatpush2.bf16.msra.mxu0 %v3747
        %4490 = vmatprep.mubr.bf16.mxu0 %v2043
        %4491 = vmatmul.mubr.bf16.gmra.mxu0 %v2042
        %v4492 = vpop.f32.mrf.mxu0
        %v4493 = vadd.f32 %v4452, %v4492
        %v4494 = vpop.f32.mrf.mxu0
        %v4495 = vadd.f32 %v4454, %v4494
        %v4496 = vpop.f32.mrf.mxu0
        %v4497 = vpop.f32.mrf.mxu0
        %4498 = vdwg.mxu0
        %4499 = vmatprep.subr.bf16.mxu0 %v3808
        %4500 = vmatpush1.bf16.msra.mxu0 %v3807
        %4501 = vmatprep.subr.bf16.mxu0 %v3804
        %4502 = vmatpush1.bf16.msra.mxu0 %v3803
        %4503 = vmatprep.subr.bf16.mxu0 %v3800
        %4504 = vmatpush1.bf16.msra.mxu0 %v3799
        %4505 = vmatprep.subr.bf16.mxu0 %v3796
        %4506 = vmatpush1.bf16.msra.mxu0 %v3795
        %4507 = vmatprep.subr.bf16.mxu0 %v3792
        %4508 = vmatpush1.bf16.msra.mxu0 %v3791
        %4509 = vmatprep.subr.bf16.mxu0 %v3788
        %4510 = vmatpush1.bf16.msra.mxu0 %v3787
        %4511 = vmatprep.subr.bf16.mxu0 %v3784
        %4512 = vmatpush1.bf16.msra.mxu0 %v3783
        %4513 = vmatprep.subr.bf16.mxu0 %v3780
        %4514 = vmatpush1.bf16.msra.mxu0 %v3779
        %4515 = vmatprep.subr.bf16.mxu0 %v3840
        %4516 = vmatpush2.bf16.msra.mxu0 %v3839
        %4517 = vmatprep.subr.bf16.mxu0 %v3836
        %4518 = vmatpush2.bf16.msra.mxu0 %v3835
        %4519 = vmatprep.subr.bf16.mxu0 %v3832
        %4520 = vmatpush2.bf16.msra.mxu0 %v3831
        %4521 = vmatprep.subr.bf16.mxu0 %v3828
        %4522 = vmatpush2.bf16.msra.mxu0 %v3827
        %4523 = vmatprep.subr.bf16.mxu0 %v3824
        %4524 = vmatpush2.bf16.msra.mxu0 %v3823
        %4525 = vmatprep.subr.bf16.mxu0 %v3820
        %4526 = vmatpush2.bf16.msra.mxu0 %v3819
        %4527 = vmatprep.subr.bf16.mxu0 %v3816
        %4528 = vmatpush2.bf16.msra.mxu0 %v3815
        %4529 = vmatprep.subr.bf16.mxu0 %v3812
        %4530 = vmatpush2.bf16.msra.mxu0 %v3811
        %4531 = vmatprep.mubr.bf16.mxu0 %v2045
        %4532 = vmatmul.mubr.bf16.gmra.mxu0 %v2044
        %v4533 = vpop.f32.mrf.mxu0
        %v4534 = vadd.f32 %v4493, %v4533
        %v4535 = vpop.f32.mrf.mxu0
        %v4536 = vadd.f32 %v4495, %v4535
        %v4537 = vpop.f32.mrf.mxu0
        %v4538 = vpop.f32.mrf.mxu0
        %4539 = vdwg.mxu0
        %4540 = vmatprep.subr.bf16.mxu0 %v3872
        %4541 = vmatpush1.bf16.msra.mxu0 %v3871
        %4542 = vmatprep.subr.bf16.mxu0 %v3868
        %4543 = vmatpush1.bf16.msra.mxu0 %v3867
        %4544 = vmatprep.subr.bf16.mxu0 %v3864
        %4545 = vmatpush1.bf16.msra.mxu0 %v3863
        %4546 = vmatprep.subr.bf16.mxu0 %v3860
        %4547 = vmatpush1.bf16.msra.mxu0 %v3859
        %4548 = vmatprep.subr.bf16.mxu0 %v3856
        %4549 = vmatpush1.bf16.msra.mxu0 %v3855
        %4550 = vmatprep.subr.bf16.mxu0 %v3852
        %4551 = vmatpush1.bf16.msra.mxu0 %v3851
        %4552 = vmatprep.subr.bf16.mxu0 %v3848
        %4553 = vmatpush1.bf16.msra.mxu0 %v3847
        %4554 = vmatprep.subr.bf16.mxu0 %v3844
        %4555 = vmatpush1.bf16.msra.mxu0 %v3843
        %4556 = vmatprep.subr.bf16.mxu0 %v3904
        %4557 = vmatpush2.bf16.msra.mxu0 %v3903
        %4558 = vmatprep.subr.bf16.mxu0 %v3900
        %4559 = vmatpush2.bf16.msra.mxu0 %v3899
        %4560 = vmatprep.subr.bf16.mxu0 %v3896
        %4561 = vmatpush2.bf16.msra.mxu0 %v3895
        %4562 = vmatprep.subr.bf16.mxu0 %v3892
        %4563 = vmatpush2.bf16.msra.mxu0 %v3891
        %4564 = vmatprep.subr.bf16.mxu0 %v3888
        %4565 = vmatpush2.bf16.msra.mxu0 %v3887
        %4566 = vmatprep.subr.bf16.mxu0 %v3884
        %4567 = vmatpush2.bf16.msra.mxu0 %v3883
        %4568 = vmatprep.subr.bf16.mxu0 %v3880
        %4569 = vmatpush2.bf16.msra.mxu0 %v3879
        %4570 = vmatprep.subr.bf16.mxu0 %v3876
        %4571 = vmatpush2.bf16.msra.mxu0 %v3875
        %4572 = vmatprep.mubr.bf16.mxu0 %v2047
        %4573 = vmatmul.mubr.bf16.gmra.mxu0 %v2046
        %v4574 = vpop.f32.mrf.mxu0
        %v4575 = vadd.f32 %v4534, %v4574
        %v4576 = vpop.f32.mrf.mxu0
        %v4577 = vadd.f32 %v4536, %v4576
        %v4578 = vpop.f32.mrf.mxu0
        %v4579 = vpop.f32.mrf.mxu0
        %4580 = vdwg.mxu0
        %4581 = vmatprep.subr.bf16.mxu0 %v3936
        %4582 = vmatpush1.bf16.msra.mxu0 %v3935
        %4583 = vmatprep.subr.bf16.mxu0 %v3932
        %4584 = vmatpush1.bf16.msra.mxu0 %v3931
        %4585 = vmatprep.subr.bf16.mxu0 %v3928
        %4586 = vmatpush1.bf16.msra.mxu0 %v3927
        %4587 = vmatprep.subr.bf16.mxu0 %v3924
        %4588 = vmatpush1.bf16.msra.mxu0 %v3923
        %4589 = vmatprep.subr.bf16.mxu0 %v3920
        %4590 = vmatpush1.bf16.msra.mxu0 %v3919
        %4591 = vmatprep.subr.bf16.mxu0 %v3916
        %4592 = vmatpush1.bf16.msra.mxu0 %v3915
        %4593 = vmatprep.subr.bf16.mxu0 %v3912
        %4594 = vmatpush1.bf16.msra.mxu0 %v3911
        %4595 = vmatprep.subr.bf16.mxu0 %v3908
        %4596 = vmatpush1.bf16.msra.mxu0 %v3907
        %4597 = vmatprep.subr.bf16.mxu0 %v3968
        %4598 = vmatpush2.bf16.msra.mxu0 %v3967
        %4599 = vmatprep.subr.bf16.mxu0 %v3964
        %4600 = vmatpush2.bf16.msra.mxu0 %v3963
        %4601 = vmatprep.subr.bf16.mxu0 %v3960
        %4602 = vmatpush2.bf16.msra.mxu0 %v3959
        %4603 = vmatprep.subr.bf16.mxu0 %v3956
        %4604 = vmatpush2.bf16.msra.mxu0 %v3955
        %4605 = vmatprep.subr.bf16.mxu0 %v3952
        %4606 = vmatpush2.bf16.msra.mxu0 %v3951
        %4607 = vmatprep.subr.bf16.mxu0 %v3948
        %4608 = vmatpush2.bf16.msra.mxu0 %v3947
        %4609 = vmatprep.subr.bf16.mxu0 %v3944
        %4610 = vmatpush2.bf16.msra.mxu0 %v3943
        %4611 = vmatprep.subr.bf16.mxu0 %v3940
        %4612 = vmatpush2.bf16.msra.mxu0 %v3939
        %4613 = vmatprep.mubr.bf16.mxu0 %v2049
        %4614 = vmatmul.mubr.bf16.gmra.mxu0 %v2048
        %v4615 = vpop.f32.mrf.mxu0
        %v4616 = vadd.f32 %v4575, %v4615
        %v4617 = vpop.f32.mrf.mxu0
        %v4618 = vadd.f32 %v4577, %v4617
        %v4619 = vpop.f32.mrf.mxu0
        %v4620 = vpop.f32.mrf.mxu0
        %4621 = vdwg.mxu0
        %4622 = vmatprep.subr.bf16.mxu0 %v3618
        %4623 = vmatpush1.bf16.msra.mxu0 %v3617
        %4624 = vmatprep.subr.bf16.mxu0 %v3614
        %4625 = vmatpush1.bf16.msra.mxu0 %v3613
        %4626 = vmatprep.subr.bf16.mxu0 %v3610
        %4627 = vmatpush1.bf16.msra.mxu0 %v3609
        %4628 = vmatprep.subr.bf16.mxu0 %v3606
        %4629 = vmatpush1.bf16.msra.mxu0 %v3605
        %4630 = vmatprep.subr.bf16.mxu0 %v3602
        %4631 = vmatpush1.bf16.msra.mxu0 %v3601
        %4632 = vmatprep.subr.bf16.mxu0 %v3598
        %4633 = vmatpush1.bf16.msra.mxu0 %v3597
        %4634 = vmatprep.subr.bf16.mxu0 %v3594
        %4635 = vmatpush1.bf16.msra.mxu0 %v3593
        %4636 = vmatprep.subr.bf16.mxu0 %v3590
        %4637 = vmatpush1.bf16.msra.mxu0 %v3589
        %4638 = vmatprep.subr.bf16.mxu0 %v3650
        %4639 = vmatpush2.bf16.msra.mxu0 %v3649
        %4640 = vmatprep.subr.bf16.mxu0 %v3646
        %4641 = vmatpush2.bf16.msra.mxu0 %v3645
        %4642 = vmatprep.subr.bf16.mxu0 %v3642
        %4643 = vmatpush2.bf16.msra.mxu0 %v3641
        %4644 = vmatprep.subr.bf16.mxu0 %v3638
        %4645 = vmatpush2.bf16.msra.mxu0 %v3637
        %4646 = vmatprep.subr.bf16.mxu0 %v3634
        %4647 = vmatpush2.bf16.msra.mxu0 %v3633
        %4648 = vmatprep.subr.bf16.mxu0 %v3630
        %4649 = vmatpush2.bf16.msra.mxu0 %v3629
        %4650 = vmatprep.subr.bf16.mxu0 %v3626
        %4651 = vmatpush2.bf16.msra.mxu0 %v3625
        %4652 = vmatprep.subr.bf16.mxu0 %v3622
        %4653 = vmatpush2.bf16.msra.mxu0 %v3621
        %4654 = vmatprep.mubr.bf16.mxu0 %v2039
        %4655 = vmatmul.mubr.bf16.gmra.mxu0 %v2038
        %v4656 = vpop.f32.mrf.mxu0
        %v4657 = vadd.f32 %v4367, %v4656
        %v4658 = vpop.f32.mrf.mxu0
        %v4659 = vadd.f32 %v4371, %v4658
        %v4660 = vpop.f32.mrf.mxu0
        %v4661 = vpop.f32.mrf.mxu0
        %4662 = vdwg.mxu0
        %4663 = vmatprep.subr.bf16.mxu0 %v3682
        %4664 = vmatpush1.bf16.msra.mxu0 %v3681
        %4665 = vmatprep.subr.bf16.mxu0 %v3678
        %4666 = vmatpush1.bf16.msra.mxu0 %v3677
        %4667 = vmatprep.subr.bf16.mxu0 %v3674
        %4668 = vmatpush1.bf16.msra.mxu0 %v3673
        %4669 = vmatprep.subr.bf16.mxu0 %v3670
        %4670 = vmatpush1.bf16.msra.mxu0 %v3669
        %4671 = vmatprep.subr.bf16.mxu0 %v3666
        %4672 = vmatpush1.bf16.msra.mxu0 %v3665
        %4673 = vmatprep.subr.bf16.mxu0 %v3662
        %4674 = vmatpush1.bf16.msra.mxu0 %v3661
        %4675 = vmatprep.subr.bf16.mxu0 %v3658
        %4676 = vmatpush1.bf16.msra.mxu0 %v3657
        %4677 = vmatprep.subr.bf16.mxu0 %v3654
        %4678 = vmatpush1.bf16.msra.mxu0 %v3653
        %4679 = vmatprep.subr.bf16.mxu0 %v3714
        %4680 = vmatpush2.bf16.msra.mxu0 %v3713
        %4681 = vmatprep.subr.bf16.mxu0 %v3710
        %4682 = vmatpush2.bf16.msra.mxu0 %v3709
        %4683 = vmatprep.subr.bf16.mxu0 %v3706
        %4684 = vmatpush2.bf16.msra.mxu0 %v3705
        %4685 = vmatprep.subr.bf16.mxu0 %v3702
        %4686 = vmatpush2.bf16.msra.mxu0 %v3701
        %4687 = vmatprep.subr.bf16.mxu0 %v3698
        %4688 = vmatpush2.bf16.msra.mxu0 %v3697
        %4689 = vmatprep.subr.bf16.mxu0 %v3694
        %4690 = vmatpush2.bf16.msra.mxu0 %v3693
        %4691 = vmatprep.subr.bf16.mxu0 %v3690
        %4692 = vmatpush2.bf16.msra.mxu0 %v3689
        %4693 = vmatprep.subr.bf16.mxu0 %v3686
        %4694 = vmatpush2.bf16.msra.mxu0 %v3685
        %4695 = vmatprep.mubr.bf16.mxu0 %v2041
        %4696 = vmatmul.mubr.bf16.gmra.mxu0 %v2040
        %v4697 = vpop.f32.mrf.mxu0
        %v4698 = vadd.f32 %v4657, %v4697
        %v4699 = vpop.f32.mrf.mxu0
        %v4700 = vadd.f32 %v4659, %v4699
        %v4701 = vpop.f32.mrf.mxu0
        %v4702 = vpop.f32.mrf.mxu0
        %4703 = vdwg.mxu0
        %4704 = vmatprep.subr.bf16.mxu0 %v3746
        %4705 = vmatpush1.bf16.msra.mxu0 %v3745
        %4706 = vmatprep.subr.bf16.mxu0 %v3742
        %4707 = vmatpush1.bf16.msra.mxu0 %v3741
        %4708 = vmatprep.subr.bf16.mxu0 %v3738
        %4709 = vmatpush1.bf16.msra.mxu0 %v3737
        %4710 = vmatprep.subr.bf16.mxu0 %v3734
        %4711 = vmatpush1.bf16.msra.mxu0 %v3733
        %4712 = vmatprep.subr.bf16.mxu0 %v3730
        %4713 = vmatpush1.bf16.msra.mxu0 %v3729
        %4714 = vmatprep.subr.bf16.mxu0 %v3726
        %4715 = vmatpush1.bf16.msra.mxu0 %v3725
        %4716 = vmatprep.subr.bf16.mxu0 %v3722
        %4717 = vmatpush1.bf16.msra.mxu0 %v3721
        %4718 = vmatprep.subr.bf16.mxu0 %v3718
        %4719 = vmatpush1.bf16.msra.mxu0 %v3717
        %4720 = vmatprep.subr.bf16.mxu0 %v3778
        %4721 = vmatpush2.bf16.msra.mxu0 %v3777
        %4722 = vmatprep.subr.bf16.mxu0 %v3774
        %4723 = vmatpush2.bf16.msra.mxu0 %v3773
        %4724 = vmatprep.subr.bf16.mxu0 %v3770
        %4725 = vmatpush2.bf16.msra.mxu0 %v3769
        %4726 = vmatprep.subr.bf16.mxu0 %v3766
        %4727 = vmatpush2.bf16.msra.mxu0 %v3765
        %4728 = vmatprep.subr.bf16.mxu0 %v3762
        %4729 = vmatpush2.bf16.msra.mxu0 %v3761
        %4730 = vmatprep.subr.bf16.mxu0 %v3758
        %4731 = vmatpush2.bf16.msra.mxu0 %v3757
        %4732 = vmatprep.subr.bf16.mxu0 %v3754
        %4733 = vmatpush2.bf16.msra.mxu0 %v3753
        %4734 = vmatprep.subr.bf16.mxu0 %v3750
        %4735 = vmatpush2.bf16.msra.mxu0 %v3749
        %4736 = vmatprep.mubr.bf16.mxu0 %v2043
        %4737 = vmatmul.mubr.bf16.gmra.mxu0 %v2042
        %v4738 = vpop.f32.mrf.mxu0
        %v4739 = vadd.f32 %v4698, %v4738
        %v4740 = vpop.f32.mrf.mxu0
        %v4741 = vadd.f32 %v4700, %v4740
        %v4742 = vpop.f32.mrf.mxu0
        %v4743 = vpop.f32.mrf.mxu0
        %4744 = vdwg.mxu0
        %4745 = vmatprep.subr.bf16.mxu0 %v3810
        %4746 = vmatpush1.bf16.msra.mxu0 %v3809
        %4747 = vmatprep.subr.bf16.mxu0 %v3806
        %4748 = vmatpush1.bf16.msra.mxu0 %v3805
        %4749 = vmatprep.subr.bf16.mxu0 %v3802
        %4750 = vmatpush1.bf16.msra.mxu0 %v3801
        %4751 = vmatprep.subr.bf16.mxu0 %v3798
        %4752 = vmatpush1.bf16.msra.mxu0 %v3797
        %4753 = vmatprep.subr.bf16.mxu0 %v3794
        %4754 = vmatpush1.bf16.msra.mxu0 %v3793
        %4755 = vmatprep.subr.bf16.mxu0 %v3790
        %4756 = vmatpush1.bf16.msra.mxu0 %v3789
        %4757 = vmatprep.subr.bf16.mxu0 %v3786
        %4758 = vmatpush1.bf16.msra.mxu0 %v3785
        %4759 = vmatprep.subr.bf16.mxu0 %v3782
        %4760 = vmatpush1.bf16.msra.mxu0 %v3781
        %4761 = vmatprep.subr.bf16.mxu0 %v3842
        %4762 = vmatpush2.bf16.msra.mxu0 %v3841
        %4763 = vmatprep.subr.bf16.mxu0 %v3838
        %4764 = vmatpush2.bf16.msra.mxu0 %v3837
        %4765 = vmatprep.subr.bf16.mxu0 %v3834
        %4766 = vmatpush2.bf16.msra.mxu0 %v3833
        %4767 = vmatprep.subr.bf16.mxu0 %v3830
        %4768 = vmatpush2.bf16.msra.mxu0 %v3829
        %4769 = vmatprep.subr.bf16.mxu0 %v3826
        %4770 = vmatpush2.bf16.msra.mxu0 %v3825
        %4771 = vmatprep.subr.bf16.mxu0 %v3822
        %4772 = vmatpush2.bf16.msra.mxu0 %v3821
        %4773 = vmatprep.subr.bf16.mxu0 %v3818
        %4774 = vmatpush2.bf16.msra.mxu0 %v3817
        %4775 = vmatprep.subr.bf16.mxu0 %v3814
        %4776 = vmatpush2.bf16.msra.mxu0 %v3813
        %4777 = vmatprep.mubr.bf16.mxu0 %v2045
        %4778 = vmatmul.mubr.bf16.gmra.mxu0 %v2044
        %v4779 = vpop.f32.mrf.mxu0
        %v4780 = vadd.f32 %v4739, %v4779
        %v4781 = vpop.f32.mrf.mxu0
        %v4782 = vadd.f32 %v4741, %v4781
        %v4783 = vpop.f32.mrf.mxu0
        %v4784 = vpop.f32.mrf.mxu0
        %4785 = vdwg.mxu0
        %4786 = vmatprep.subr.bf16.mxu0 %v3874
        %4787 = vmatpush1.bf16.msra.mxu0 %v3873
        %4788 = vmatprep.subr.bf16.mxu0 %v3870
        %4789 = vmatpush1.bf16.msra.mxu0 %v3869
        %4790 = vmatprep.subr.bf16.mxu0 %v3866
        %4791 = vmatpush1.bf16.msra.mxu0 %v3865
        %4792 = vmatprep.subr.bf16.mxu0 %v3862
        %4793 = vmatpush1.bf16.msra.mxu0 %v3861
        %4794 = vmatprep.subr.bf16.mxu0 %v3858
        %4795 = vmatpush1.bf16.msra.mxu0 %v3857
        %4796 = vmatprep.subr.bf16.mxu0 %v3854
        %4797 = vmatpush1.bf16.msra.mxu0 %v3853
        %4798 = vmatprep.subr.bf16.mxu0 %v3850
        %4799 = vmatpush1.bf16.msra.mxu0 %v3849
        %4800 = vmatprep.subr.bf16.mxu0 %v3846
        %4801 = vmatpush1.bf16.msra.mxu0 %v3845
        %4802 = vmatprep.subr.bf16.mxu0 %v3906
        %4803 = vmatpush2.bf16.msra.mxu0 %v3905
        %4804 = vmatprep.subr.bf16.mxu0 %v3902
        %4805 = vmatpush2.bf16.msra.mxu0 %v3901
        %4806 = vmatprep.subr.bf16.mxu0 %v3898
        %4807 = vmatpush2.bf16.msra.mxu0 %v3897
        %4808 = vmatprep.subr.bf16.mxu0 %v3894
        %4809 = vmatpush2.bf16.msra.mxu0 %v3893
        %4810 = vmatprep.subr.bf16.mxu0 %v3890
        %4811 = vmatpush2.bf16.msra.mxu0 %v3889
        %4812 = vmatprep.subr.bf16.mxu0 %v3886
        %4813 = vmatpush2.bf16.msra.mxu0 %v3885
        %4814 = vmatprep.subr.bf16.mxu0 %v3882
        %4815 = vmatpush2.bf16.msra.mxu0 %v3881
        %4816 = vmatprep.subr.bf16.mxu0 %v3878
        %4817 = vmatpush2.bf16.msra.mxu0 %v3877
        %4818 = vmatprep.mubr.bf16.mxu0 %v2047
        %4819 = vmatmul.mubr.bf16.gmra.mxu0 %v2046
        %v4820 = vpop.f32.mrf.mxu0
        %v4821 = vadd.f32 %v4780, %v4820
        %v4822 = vpop.f32.mrf.mxu0
        %v4823 = vadd.f32 %v4782, %v4822
        %v4824 = vpop.f32.mrf.mxu0
        %v4825 = vpop.f32.mrf.mxu0
        %4826 = vdwg.mxu0
        %4827 = vmatprep.subr.bf16.mxu0 %v3938
        %4828 = vmatpush1.bf16.msra.mxu0 %v3937
        %4829 = vmatprep.subr.bf16.mxu0 %v3934
        %4830 = vmatpush1.bf16.msra.mxu0 %v3933
        %4831 = vmatprep.subr.bf16.mxu0 %v3930
        %4832 = vmatpush1.bf16.msra.mxu0 %v3929
        %4833 = vmatprep.subr.bf16.mxu0 %v3926
        %4834 = vmatpush1.bf16.msra.mxu0 %v3925
        %4835 = vmatprep.subr.bf16.mxu0 %v3922
        %4836 = vmatpush1.bf16.msra.mxu0 %v3921
        %4837 = vmatprep.subr.bf16.mxu0 %v3918
        %4838 = vmatpush1.bf16.msra.mxu0 %v3917
        %4839 = vmatprep.subr.bf16.mxu0 %v3914
        %4840 = vmatpush1.bf16.msra.mxu0 %v3913
        %4841 = vmatprep.subr.bf16.mxu0 %v3910
        %4842 = vmatpush1.bf16.msra.mxu0 %v3909
        %4843 = vmatprep.subr.bf16.mxu0 %v3970
        %4844 = vmatpush2.bf16.msra.mxu0 %v3969
        %4845 = vmatprep.subr.bf16.mxu0 %v3966
        %4846 = vmatpush2.bf16.msra.mxu0 %v3965
        %4847 = vmatprep.subr.bf16.mxu0 %v3962
        %4848 = vmatpush2.bf16.msra.mxu0 %v3961
        %4849 = vmatprep.subr.bf16.mxu0 %v3958
        %4850 = vmatpush2.bf16.msra.mxu0 %v3957
        %4851 = vmatprep.subr.bf16.mxu0 %v3954
        %4852 = vmatpush2.bf16.msra.mxu0 %v3953
        %4853 = vmatprep.subr.bf16.mxu0 %v3950
        %4854 = vmatpush2.bf16.msra.mxu0 %v3949
        %4855 = vmatprep.subr.bf16.mxu0 %v3946
        %4856 = vmatpush2.bf16.msra.mxu0 %v3945
        %4857 = vmatprep.subr.bf16.mxu0 %v3942
        %4858 = vmatpush2.bf16.msra.mxu0 %v3941
        %4859 = vmatprep.mubr.bf16.mxu0 %v2049
        %4860 = vmatmul.mubr.bf16.gmra.mxu0 %v2048
        %v4861 = vpop.f32.mrf.mxu0
        %v4862 = vadd.f32 %v4821, %v4861
        %v4863 = vpop.f32.mrf.mxu0
        %v4864 = vadd.f32 %v4823, %v4863
        %v4865 = vpop.f32.mrf.mxu0
        %v4866 = vpop.f32.mrf.mxu0
        %4867 = vdwg.mxu0
        %vm4868 = vcmp.gt.f32.partialorder %v4616, 0.0
        %vm4869 = vcmp.gt.f32.partialorder %v4618, 0.0
        %vm4870 = vcmp.gt.f32.partialorder %v4862, 0.0
        %vm4871 = vcmp.gt.f32.partialorder %v4864, 0.0
        %v4872 = vmul.f32 %v4616, 0.1
        %v4873 = vmul.f32 %v4618, 0.1
        %v4874 = vmul.f32 %v4862, 0.1
        %v4875 = vmul.f32 %v4864, 0.1
        %v4876 = vsel %vm4868, %v4616, %v4872
        %v4877 = vsel %vm4869, %v4618, %v4873
        %v4878 = vsel %vm4870, %v4862, %v4874
        %v4879 = vsel %vm4871, %v4864, %v4875
        %v4880 = vpack.c.bf16 %v4876, %v4876
        %v4881 = vpack.c.bf16 %v4877, %v4877
        %v4882 = vpack.c.bf16 %v4878, %v4878
        %v4883 = vpack.c.bf16 %v4879, %v4879
        %v4884 = vld [vmem:[%s7] sm:$0xff]
        %v4885 = vld [vmem:[%s7 + $0x8] sm:$0xff]
        %v4886 = vld [vmem:[%s7 + $0x10] sm:$0xff]
        %v4887 = vld [vmem:[%s7 + $0x18] sm:$0xff]
        %v4888 = vld [vmem:[%s7 + $0x20] sm:$0xff]
        %v4889 = vld [vmem:[%s7 + $0x28] sm:$0xff]
        %v4890 = vld [vmem:[%s7 + $0x30] sm:$0xff]
        %v4891 = vld [vmem:[%s7 + $0x38] sm:$0xff]
        %v4892 = vld [vmem:[%s7 + $0x40] sm:$0xff]
        %v4893 = vld [vmem:[%s7 + $0x48] sm:$0xff]
        %v4894 = vld [vmem:[%s7 + $0x50] sm:$0xff]
        %v4895 = vld [vmem:[%s7 + $0x58] sm:$0xff]
        %v4896 = vld [vmem:[%s7 + $0x60] sm:$0xff]
        %v4897 = vld [vmem:[%s7 + $0x68] sm:$0xff]
        %v4898 = vld [vmem:[%s7 + $0x70] sm:$0xff]
        %v4899 = vld [vmem:[%s7 + $0x78] sm:$0xff]
        %v4900 = vld [vmem:[%s7 + $0x80] sm:$0xff]
        %v4901 = vld [vmem:[%s7 + $0x88] sm:$0xff]
        %v4902 = vld [vmem:[%s7 + $0x90] sm:$0xff]
        %v4903 = vld [vmem:[%s7 + $0x98] sm:$0xff]
        %v4904 = vld [vmem:[%s7 + $0xa0] sm:$0xff]
        %v4905 = vld [vmem:[%s7 + $0xa8] sm:$0xff]
        %v4906 = vld [vmem:[%s7 + $0xb0] sm:$0xff]
        %v4907 = vld [vmem:[%s7 + $0xb8] sm:$0xff]
        %v4908 = vld [vmem:[%s7 + $0xc0] sm:$0xff]
        %v4909 = vld [vmem:[%s7 + $0xc8] sm:$0xff]
        %v4910 = vld [vmem:[%s7 + $0xd0] sm:$0xff]
        %v4911 = vld [vmem:[%s7 + $0xd8] sm:$0xff]
        %v4912 = vld [vmem:[%s7 + $0xe0] sm:$0xff]
        %v4913 = vld [vmem:[%s7 + $0xe8] sm:$0xff]
        %v4914 = vld [vmem:[%s7 + $0xf0] sm:$0xff]
        %v4915 = vld [vmem:[%s7 + $0xf8] sm:$0xff]
        %v4916 = vld [vmem:[%s7 + $0x100] sm:$0xff]
        %v4917 = vld [vmem:[%s7 + $0x108] sm:$0xff]
        %v4918 = vld [vmem:[%s7 + $0x110] sm:$0xff]
        %v4919 = vld [vmem:[%s7 + $0x118] sm:$0xff]
        %v4920 = vld [vmem:[%s7 + $0x120] sm:$0xff]
        %v4921 = vld [vmem:[%s7 + $0x128] sm:$0xff]
        %v4922 = vld [vmem:[%s7 + $0x130] sm:$0xff]
        %v4923 = vld [vmem:[%s7 + $0x138] sm:$0xff]
        %v4924 = vld [vmem:[%s7 + $0x140] sm:$0xff]
        %v4925 = vld [vmem:[%s7 + $0x148] sm:$0xff]
        %v4926 = vld [vmem:[%s7 + $0x150] sm:$0xff]
        %v4927 = vld [vmem:[%s7 + $0x158] sm:$0xff]
        %v4928 = vld [vmem:[%s7 + $0x160] sm:$0xff]
        %v4929 = vld [vmem:[%s7 + $0x168] sm:$0xff]
        %v4930 = vld [vmem:[%s7 + $0x170] sm:$0xff]
        %v4931 = vld [vmem:[%s7 + $0x178] sm:$0xff]
        %v4932 = vld [vmem:[%s7 + $0x180] sm:$0xff]
        %v4933 = vld [vmem:[%s7 + $0x188] sm:$0xff]
        %v4934 = vld [vmem:[%s7 + $0x190] sm:$0xff]
        %v4935 = vld [vmem:[%s7 + $0x198] sm:$0xff]
        %v4936 = vld [vmem:[%s7 + $0x1a0] sm:$0xff]
        %v4937 = vld [vmem:[%s7 + $0x1a8] sm:$0xff]
        %v4938 = vld [vmem:[%s7 + $0x1b0] sm:$0xff]
        %v4939 = vld [vmem:[%s7 + $0x1b8] sm:$0xff]
        %v4940 = vld [vmem:[%s7 + $0x1c0] sm:$0xff]
        %v4941 = vld [vmem:[%s7 + $0x1c8] sm:$0xff]
        %v4942 = vld [vmem:[%s7 + $0x1d0] sm:$0xff]
        %v4943 = vld [vmem:[%s7 + $0x1d8] sm:$0xff]
        %v4944 = vld [vmem:[%s7 + $0x1e0] sm:$0xff]
        %v4945 = vld [vmem:[%s7 + $0x1e8] sm:$0xff]
        %v4946 = vld [vmem:[%s7 + $0x1f0] sm:$0xff]
        %v4947 = vld [vmem:[%s7 + $0x1f8] sm:$0xff]
        %v4948 = vld [vmem:[%s8] sm:$0x3]
        %v5013 = vunpack.c.l.b16 %v4884
        %v5014 = vunpack.c.h.b16 %v4884
        %v5015 = vunpack.c.l.b16 %v4885
        %v5016 = vunpack.c.h.b16 %v4885
        %v5017 = vunpack.c.l.b16 %v4886
        %v5018 = vunpack.c.h.b16 %v4886
        %v5019 = vunpack.c.l.b16 %v4887
        %v5020 = vunpack.c.h.b16 %v4887
        %v5021 = vunpack.c.l.b16 %v4888
        %v5022 = vunpack.c.h.b16 %v4888
        %v5023 = vunpack.c.l.b16 %v4889
        %v5024 = vunpack.c.h.b16 %v4889
        %v5025 = vunpack.c.l.b16 %v4890
        %v5026 = vunpack.c.h.b16 %v4890
        %v5027 = vunpack.c.l.b16 %v4891
        %v5028 = vunpack.c.h.b16 %v4891
        %v5029 = vunpack.c.l.b16 %v4892
        %v5030 = vunpack.c.h.b16 %v4892
        %v5031 = vunpack.c.l.b16 %v4893
        %v5032 = vunpack.c.h.b16 %v4893
        %v5033 = vunpack.c.l.b16 %v4894
        %v5034 = vunpack.c.h.b16 %v4894
        %v5035 = vunpack.c.l.b16 %v4895
        %v5036 = vunpack.c.h.b16 %v4895
        %v5037 = vunpack.c.l.b16 %v4896
        %v5038 = vunpack.c.h.b16 %v4896
        %v5039 = vunpack.c.l.b16 %v4897
        %v5040 = vunpack.c.h.b16 %v4897
        %v5041 = vunpack.c.l.b16 %v4898
        %v5042 = vunpack.c.h.b16 %v4898
        %v5043 = vunpack.c.l.b16 %v4899
        %v5044 = vunpack.c.h.b16 %v4899
        %v5045 = vunpack.c.l.b16 %v4900
        %v5046 = vunpack.c.h.b16 %v4900
        %v5047 = vunpack.c.l.b16 %v4901
        %v5048 = vunpack.c.h.b16 %v4901
        %v5049 = vunpack.c.l.b16 %v4902
        %v5050 = vunpack.c.h.b16 %v4902
        %v5051 = vunpack.c.l.b16 %v4903
        %v5052 = vunpack.c.h.b16 %v4903
        %v5053 = vunpack.c.l.b16 %v4904
        %v5054 = vunpack.c.h.b16 %v4904
        %v5055 = vunpack.c.l.b16 %v4905
        %v5056 = vunpack.c.h.b16 %v4905
        %v5057 = vunpack.c.l.b16 %v4906
        %v5058 = vunpack.c.h.b16 %v4906
        %v5059 = vunpack.c.l.b16 %v4907
        %v5060 = vunpack.c.h.b16 %v4907
        %v5061 = vunpack.c.l.b16 %v4908
        %v5062 = vunpack.c.h.b16 %v4908
        %v5063 = vunpack.c.l.b16 %v4909
        %v5064 = vunpack.c.h.b16 %v4909
        %v5065 = vunpack.c.l.b16 %v4910
        %v5066 = vunpack.c.h.b16 %v4910
        %v5067 = vunpack.c.l.b16 %v4911
        %v5068 = vunpack.c.h.b16 %v4911
        %v5069 = vunpack.c.l.b16 %v4912
        %v5070 = vunpack.c.h.b16 %v4912
        %v5071 = vunpack.c.l.b16 %v4913
        %v5072 = vunpack.c.h.b16 %v4913
        %v5073 = vunpack.c.l.b16 %v4914
        %v5074 = vunpack.c.h.b16 %v4914
        %v5075 = vunpack.c.l.b16 %v4915
        %v5076 = vunpack.c.h.b16 %v4915
        %v5077 = vunpack.c.l.b16 %v4916
        %v5078 = vunpack.c.h.b16 %v4916
        %v5079 = vunpack.c.l.b16 %v4917
        %v5080 = vunpack.c.h.b16 %v4917
        %v5081 = vunpack.c.l.b16 %v4918
        %v5082 = vunpack.c.h.b16 %v4918
        %v5083 = vunpack.c.l.b16 %v4919
        %v5084 = vunpack.c.h.b16 %v4919
        %v5085 = vunpack.c.l.b16 %v4920
        %v5086 = vunpack.c.h.b16 %v4920
        %v5087 = vunpack.c.l.b16 %v4921
        %v5088 = vunpack.c.h.b16 %v4921
        %v5089 = vunpack.c.l.b16 %v4922
        %v5090 = vunpack.c.h.b16 %v4922
        %v5091 = vunpack.c.l.b16 %v4923
        %v5092 = vunpack.c.h.b16 %v4923
        %v5093 = vunpack.c.l.b16 %v4924
        %v5094 = vunpack.c.h.b16 %v4924
        %v5095 = vunpack.c.l.b16 %v4925
        %v5096 = vunpack.c.h.b16 %v4925
        %v5097 = vunpack.c.l.b16 %v4926
        %v5098 = vunpack.c.h.b16 %v4926
        %v5099 = vunpack.c.l.b16 %v4927
        %v5100 = vunpack.c.h.b16 %v4927
        %v5101 = vunpack.c.l.b16 %v4928
        %v5102 = vunpack.c.h.b16 %v4928
        %v5103 = vunpack.c.l.b16 %v4929
        %v5104 = vunpack.c.h.b16 %v4929
        %v5105 = vunpack.c.l.b16 %v4930
        %v5106 = vunpack.c.h.b16 %v4930
        %v5107 = vunpack.c.l.b16 %v4931
        %v5108 = vunpack.c.h.b16 %v4931
        %v5109 = vunpack.c.l.b16 %v4932
        %v5110 = vunpack.c.h.b16 %v4932
        %v5111 = vunpack.c.l.b16 %v4933
        %v5112 = vunpack.c.h.b16 %v4933
        %v5113 = vunpack.c.l.b16 %v4934
        %v5114 = vunpack.c.h.b16 %v4934
        %v5115 = vunpack.c.l.b16 %v4935
        %v5116 = vunpack.c.h.b16 %v4935
        %v5117 = vunpack.c.l.b16 %v4936
        %v5118 = vunpack.c.h.b16 %v4936
        %v5119 = vunpack.c.l.b16 %v4937
        %v5120 = vunpack.c.h.b16 %v4937
        %v5121 = vunpack.c.l.b16 %v4938
        %v5122 = vunpack.c.h.b16 %v4938
        %v5123 = vunpack.c.l.b16 %v4939
        %v5124 = vunpack.c.h.b16 %v4939
        %v5125 = vunpack.c.l.b16 %v4940
        %v5126 = vunpack.c.h.b16 %v4940
        %v5127 = vunpack.c.l.b16 %v4941
        %v5128 = vunpack.c.h.b16 %v4941
        %v5129 = vunpack.c.l.b16 %v4942
        %v5130 = vunpack.c.h.b16 %v4942
        %v5131 = vunpack.c.l.b16 %v4943
        %v5132 = vunpack.c.h.b16 %v4943
        %v5133 = vunpack.c.l.b16 %v4944
        %v5134 = vunpack.c.h.b16 %v4944
        %v5135 = vunpack.c.l.b16 %v4945
        %v5136 = vunpack.c.h.b16 %v4945
        %v5137 = vunpack.c.l.b16 %v4946
        %v5138 = vunpack.c.h.b16 %v4946
        %v5139 = vunpack.c.l.b16 %v4947
        %v5140 = vunpack.c.h.b16 %v4947
        %v5141 = vpack.c.b16 %v5015, %v5013
        %v5142 = vpack.c.b16 %v5016, %v5014
        %v5143 = vpack.c.b16 %v5019, %v5017
        %v5144 = vpack.c.b16 %v5020, %v5018
        %v5145 = vpack.c.b16 %v5023, %v5021
        %v5146 = vpack.c.b16 %v5024, %v5022
        %v5147 = vpack.c.b16 %v5027, %v5025
        %v5148 = vpack.c.b16 %v5028, %v5026
        %v5149 = vpack.c.b16 %v5031, %v5029
        %v5150 = vpack.c.b16 %v5032, %v5030
        %v5151 = vpack.c.b16 %v5035, %v5033
        %v5152 = vpack.c.b16 %v5036, %v5034
        %v5153 = vpack.c.b16 %v5039, %v5037
        %v5154 = vpack.c.b16 %v5040, %v5038
        %v5155 = vpack.c.b16 %v5043, %v5041
        %v5156 = vpack.c.b16 %v5044, %v5042
        %v5157 = vpack.c.b16 %v5047, %v5045
        %v5158 = vpack.c.b16 %v5048, %v5046
        %v5159 = vpack.c.b16 %v5051, %v5049
        %v5160 = vpack.c.b16 %v5052, %v5050
        %v5161 = vpack.c.b16 %v5055, %v5053
        %v5162 = vpack.c.b16 %v5056, %v5054
        %v5163 = vpack.c.b16 %v5059, %v5057
        %v5164 = vpack.c.b16 %v5060, %v5058
        %v5165 = vpack.c.b16 %v5063, %v5061
        %v5166 = vpack.c.b16 %v5064, %v5062
        %v5167 = vpack.c.b16 %v5067, %v5065
        %v5168 = vpack.c.b16 %v5068, %v5066
        %v5169 = vpack.c.b16 %v5071, %v5069
        %v5170 = vpack.c.b16 %v5072, %v5070
        %v5171 = vpack.c.b16 %v5075, %v5073
        %v5172 = vpack.c.b16 %v5076, %v5074
        %v5173 = vpack.c.b16 %v5079, %v5077
        %v5174 = vpack.c.b16 %v5080, %v5078
        %v5175 = vpack.c.b16 %v5083, %v5081
        %v5176 = vpack.c.b16 %v5084, %v5082
        %v5177 = vpack.c.b16 %v5087, %v5085
        %v5178 = vpack.c.b16 %v5088, %v5086
        %v5179 = vpack.c.b16 %v5091, %v5089
        %v5180 = vpack.c.b16 %v5092, %v5090
        %v5181 = vpack.c.b16 %v5095, %v5093
        %v5182 = vpack.c.b16 %v5096, %v5094
        %v5183 = vpack.c.b16 %v5099, %v5097
        %v5184 = vpack.c.b16 %v5100, %v5098
        %v5185 = vpack.c.b16 %v5103, %v5101
        %v5186 = vpack.c.b16 %v5104, %v5102
        %v5187 = vpack.c.b16 %v5107, %v5105
        %v5188 = vpack.c.b16 %v5108, %v5106
        %v5189 = vpack.c.b16 %v5111, %v5109
        %v5190 = vpack.c.b16 %v5112, %v5110
        %v5191 = vpack.c.b16 %v5115, %v5113
        %v5192 = vpack.c.b16 %v5116, %v5114
        %v5193 = vpack.c.b16 %v5119, %v5117
        %v5194 = vpack.c.b16 %v5120, %v5118
        %v5195 = vpack.c.b16 %v5123, %v5121
        %v5196 = vpack.c.b16 %v5124, %v5122
        %v5197 = vpack.c.b16 %v5127, %v5125
        %v5198 = vpack.c.b16 %v5128, %v5126
        %v5199 = vpack.c.b16 %v5131, %v5129
        %v5200 = vpack.c.b16 %v5132, %v5130
        %v5201 = vpack.c.b16 %v5135, %v5133
        %v5202 = vpack.c.b16 %v5136, %v5134
        %v5203 = vpack.c.b16 %v5139, %v5137
        %v5204 = vpack.c.b16 %v5140, %v5138
        %v5270 = vlaneseq
        %v5271 = vshrl.u32 %v5270, 7
        %v5272 = vsub.s32 0, %v5271
        %v5273 = vrot.slane %v4948, %v5272
        %v5274 = vlaneseq
        %v5275 = vshrl.u32 %v5274, 7
        %v5276 = vsub.s32 1, %v5275
        %v5277 = vrot.slane %v4948, %v5276
        %5280 = vmatprep.subr.bf16.mxu0 %v5156
        %5281 = vmatpush1.bf16.msra.mxu0 %v5155
        %5282 = vmatprep.subr.bf16.mxu0 %v5154
        %5283 = vmatpush1.bf16.msra.mxu0 %v5153
        %5284 = vmatprep.subr.bf16.mxu0 %v5152
        %5285 = vmatpush1.bf16.msra.mxu0 %v5151
        %5286 = vmatprep.subr.bf16.mxu0 %v5150
        %5287 = vmatpush1.bf16.msra.mxu0 %v5149
        %5288 = vmatprep.subr.bf16.mxu0 %v5148
        %5289 = vmatpush1.bf16.msra.mxu0 %v5147
        %5290 = vmatprep.subr.bf16.mxu0 %v5146
        %5291 = vmatpush1.bf16.msra.mxu0 %v5145
        %5292 = vmatprep.subr.bf16.mxu0 %v5144
        %5293 = vmatpush1.bf16.msra.mxu0 %v5143
        %5294 = vmatprep.subr.bf16.mxu0 %v5142
        %5295 = vmatpush1.bf16.msra.mxu0 %v5141
        %5296 = vmatprep.subr.bf16.mxu0 %v5172
        %5297 = vmatpush2.bf16.msra.mxu0 %v5171
        %5298 = vmatprep.subr.bf16.mxu0 %v5170
        %5299 = vmatpush2.bf16.msra.mxu0 %v5169
        %5300 = vmatprep.subr.bf16.mxu0 %v5168
        %5301 = vmatpush2.bf16.msra.mxu0 %v5167
        %5302 = vmatprep.subr.bf16.mxu0 %v5166
        %5303 = vmatpush2.bf16.msra.mxu0 %v5165
        %5304 = vmatprep.subr.bf16.mxu0 %v5164
        %5305 = vmatpush2.bf16.msra.mxu0 %v5163
        %5306 = vmatprep.subr.bf16.mxu0 %v5162
        %5307 = vmatpush2.bf16.msra.mxu0 %v5161
        %5308 = vmatprep.subr.bf16.mxu0 %v5160
        %5309 = vmatpush2.bf16.msra.mxu0 %v5159
        %5310 = vmatprep.subr.bf16.mxu0 %v5158
        %5311 = vmatpush2.bf16.msra.mxu0 %v5157
        %5312 = vmatprep.mubr.bf16.mxu0 %v4881
        %5313 = vmatmul.mubr.bf16.gmra.mxu0 %v4880
        %v5314 = vpop.f32.mrf.mxu0
        %v5315 = vadd.f32 %v5273, %v5314
        %v5316 = vpop.f32.mrf.mxu0
        %v5317 = vadd.f32 %v5277, %v5316
        %v5318 = vpop.f32.mrf.mxu0
        %v5319 = vpop.f32.mrf.mxu0
        %5320 = vdwg.mxu0
        %5321 = vmatprep.subr.bf16.mxu0 %v5188
        %5322 = vmatpush1.bf16.msra.mxu0 %v5187
        %5323 = vmatprep.subr.bf16.mxu0 %v5186
        %5324 = vmatpush1.bf16.msra.mxu0 %v5185
        %5325 = vmatprep.subr.bf16.mxu0 %v5184
        %5326 = vmatpush1.bf16.msra.mxu0 %v5183
        %5327 = vmatprep.subr.bf16.mxu0 %v5182
        %5328 = vmatpush1.bf16.msra.mxu0 %v5181
        %5329 = vmatprep.subr.bf16.mxu0 %v5180
        %5330 = vmatpush1.bf16.msra.mxu0 %v5179
        %5331 = vmatprep.subr.bf16.mxu0 %v5178
        %5332 = vmatpush1.bf16.msra.mxu0 %v5177
        %5333 = vmatprep.subr.bf16.mxu0 %v5176
        %5334 = vmatpush1.bf16.msra.mxu0 %v5175
        %5335 = vmatprep.subr.bf16.mxu0 %v5174
        %5336 = vmatpush1.bf16.msra.mxu0 %v5173
        %5337 = vmatprep.subr.bf16.mxu0 %v5204
        %5338 = vmatpush2.bf16.msra.mxu0 %v5203
        %5339 = vmatprep.subr.bf16.mxu0 %v5202
        %5340 = vmatpush2.bf16.msra.mxu0 %v5201
        %5341 = vmatprep.subr.bf16.mxu0 %v5200
        %5342 = vmatpush2.bf16.msra.mxu0 %v5199
        %5343 = vmatprep.subr.bf16.mxu0 %v5198
        %5344 = vmatpush2.bf16.msra.mxu0 %v5197
        %5345 = vmatprep.subr.bf16.mxu0 %v5196
        %5346 = vmatpush2.bf16.msra.mxu0 %v5195
        %5347 = vmatprep.subr.bf16.mxu0 %v5194
        %5348 = vmatpush2.bf16.msra.mxu0 %v5193
        %5349 = vmatprep.subr.bf16.mxu0 %v5192
        %5350 = vmatpush2.bf16.msra.mxu0 %v5191
        %5351 = vmatprep.subr.bf16.mxu0 %v5190
        %5352 = vmatpush2.bf16.msra.mxu0 %v5189
        %5353 = vmatprep.mubr.bf16.mxu0 %v4883
        %5354 = vmatmul.mubr.bf16.gmra.mxu0 %v4882
        %v5355 = vpop.f32.mrf.mxu0
        %v5356 = vadd.f32 %v5315, %v5355
        %v5357 = vpop.f32.mrf.mxu0
        %v5358 = vadd.f32 %v5317, %v5357
        %v5359 = vpop.f32.mrf.mxu0
        %v5360 = vpop.f32.mrf.mxu0
        %5361 = vdwg.mxu0
        %vm5362 = vcmp.gt.f32.partialorder %v5356, 0.0
        %vm5363 = vcmp.gt.f32.partialorder %v5358, 0.0
        %v5364 = vmul.f32 %v5356, 0.1
        %v5365 = vmul.f32 %v5358, 0.1
        %v5366 = vsel %vm5362, %v5356, %v5364
        %v5367 = vsel %vm5363, %v5358, %v5365
        %v5368 = vpack.c.bf16 %v5366, %v5366
        %v5369 = vpack.c.bf16 %v5367, %v5367
        %v5370 = vld [vmem:[%s9] sm:$0xf]
        %v5371 = vld [vmem:[%s9 + $0x4] sm:$0xf]
        %v5372 = vld [vmem:[%s9 + $0x8] sm:$0xf]
        %v5373 = vld [vmem:[%s9 + $0xc] sm:$0xf]
        %v5374 = vld [vmem:[%s9 + $0x10] sm:$0xf]
        %v5375 = vld [vmem:[%s9 + $0x14] sm:$0xf]
        %v5376 = vld [vmem:[%s9 + $0x18] sm:$0xf]
        %v5377 = vld [vmem:[%s9 + $0x1c] sm:$0xf]
        %v5378 = vld [vmem:[%s9 + $0x20] sm:$0xf]
        %v5379 = vld [vmem:[%s9 + $0x24] sm:$0xf]
        %v5380 = vld [vmem:[%s9 + $0x28] sm:$0xf]
        %v5381 = vld [vmem:[%s9 + $0x2c] sm:$0xf]
        %v5382 = vld [vmem:[%s9 + $0x30] sm:$0xf]
        %v5383 = vld [vmem:[%s9 + $0x34] sm:$0xf]
        %v5384 = vld [vmem:[%s9 + $0x38] sm:$0xf]
        %v5385 = vld [vmem:[%s9 + $0x3c] sm:$0xf]
        %v5386 = vld [vmem:[%s9 + $0x40] sm:$0xf]
        %v5387 = vld [vmem:[%s9 + $0x44] sm:$0xf]
        %v5388 = vld [vmem:[%s9 + $0x48] sm:$0xf]
        %v5389 = vld [vmem:[%s9 + $0x4c] sm:$0xf]
        %v5390 = vld [vmem:[%s9 + $0x50] sm:$0xf]
        %v5391 = vld [vmem:[%s9 + $0x54] sm:$0xf]
        %v5392 = vld [vmem:[%s9 + $0x58] sm:$0xf]
        %v5393 = vld [vmem:[%s9 + $0x5c] sm:$0xf]
        %v5394 = vld [vmem:[%s9 + $0x60] sm:$0xf]
        %v5395 = vld [vmem:[%s9 + $0x64] sm:$0xf]
        %v5396 = vld [vmem:[%s9 + $0x68] sm:$0xf]
        %v5397 = vld [vmem:[%s9 + $0x6c] sm:$0xf]
        %v5398 = vld [vmem:[%s9 + $0x70] sm:$0xf]
        %v5399 = vld [vmem:[%s9 + $0x74] sm:$0xf]
        %v5400 = vld [vmem:[%s9 + $0x78] sm:$0xf]
        %v5401 = vld [vmem:[%s9 + $0x7c] sm:$0xf]
        %v5402 = vld [vmem:[%s10] sm:$0x1]
        %v5435 = vunpack.c.l.b16 %v5370
        %v5436 = vunpack.c.l.b16 %v5371
        %v5437 = vunpack.c.l.b16 %v5372
        %v5438 = vunpack.c.l.b16 %v5373
        %v5439 = vunpack.c.l.b16 %v5374
        %v5440 = vunpack.c.l.b16 %v5375
        %v5441 = vunpack.c.l.b16 %v5376
        %v5442 = vunpack.c.l.b16 %v5377
        %v5443 = vunpack.c.l.b16 %v5378
        %v5444 = vunpack.c.l.b16 %v5379
        %v5445 = vunpack.c.l.b16 %v5380
        %v5446 = vunpack.c.l.b16 %v5381
        %v5447 = vunpack.c.l.b16 %v5382
        %v5448 = vunpack.c.l.b16 %v5383
        %v5449 = vunpack.c.l.b16 %v5384
        %v5450 = vunpack.c.l.b16 %v5385
        %v5451 = vunpack.c.l.b16 %v5386
        %v5452 = vunpack.c.l.b16 %v5387
        %v5453 = vunpack.c.l.b16 %v5388
        %v5454 = vunpack.c.l.b16 %v5389
        %v5455 = vunpack.c.l.b16 %v5390
        %v5456 = vunpack.c.l.b16 %v5391
        %v5457 = vunpack.c.l.b16 %v5392
        %v5458 = vunpack.c.l.b16 %v5393
        %v5459 = vunpack.c.l.b16 %v5394
        %v5460 = vunpack.c.l.b16 %v5395
        %v5461 = vunpack.c.l.b16 %v5396
        %v5462 = vunpack.c.l.b16 %v5397
        %v5463 = vunpack.c.l.b16 %v5398
        %v5464 = vunpack.c.l.b16 %v5399
        %v5465 = vunpack.c.l.b16 %v5400
        %v5466 = vunpack.c.l.b16 %v5401
        %v5467 = vpack.c.b16 %v5436, %v5435
        %v5468 = vpack.c.b16 %v5438, %v5437
        %v5469 = vpack.c.b16 %v5440, %v5439
        %v5470 = vpack.c.b16 %v5442, %v5441
        %v5471 = vpack.c.b16 %v5444, %v5443
        %v5472 = vpack.c.b16 %v5446, %v5445
        %v5473 = vpack.c.b16 %v5448, %v5447
        %v5474 = vpack.c.b16 %v5450, %v5449
        %v5475 = vpack.c.b16 %v5452, %v5451
        %v5476 = vpack.c.b16 %v5454, %v5453
        %v5477 = vpack.c.b16 %v5456, %v5455
        %v5478 = vpack.c.b16 %v5458, %v5457
        %v5479 = vpack.c.b16 %v5460, %v5459
        %v5480 = vpack.c.b16 %v5462, %v5461
        %v5481 = vpack.c.b16 %v5464, %v5463
        %v5482 = vpack.c.b16 %v5466, %v5465
        %5499 = vmatprep.subr.bf16.mxu0 0
        %5500 = vmatpush1.bf16.msra.mxu0 %v5474
        %5501 = vmatprep.subr.bf16.mxu0 0
        %5502 = vmatpush1.bf16.msra.mxu0 %v5473
        %5503 = vmatprep.subr.bf16.mxu0 0
        %5504 = vmatpush1.bf16.msra.mxu0 %v5472
        %5505 = vmatprep.subr.bf16.mxu0 0
        %5506 = vmatpush1.bf16.msra.mxu0 %v5471
        %5507 = vmatprep.subr.bf16.mxu0 0
        %5508 = vmatpush1.bf16.msra.mxu0 %v5470
        %5509 = vmatprep.subr.bf16.mxu0 0
        %5510 = vmatpush1.bf16.msra.mxu0 %v5469
        %5511 = vmatprep.subr.bf16.mxu0 0
        %5512 = vmatpush1.bf16.msra.mxu0 %v5468
        %5513 = vmatprep.subr.bf16.mxu0 0
        %5514 = vmatpush1.bf16.msra.mxu0 %v5467
        %5515 = vmatprep.subr.bf16.mxu0 0
        %5516 = vmatpush2.bf16.msra.mxu0 %v5482
        %5517 = vmatprep.subr.bf16.mxu0 0
        %5518 = vmatpush2.bf16.msra.mxu0 %v5481
        %5519 = vmatprep.subr.bf16.mxu0 0
        %5520 = vmatpush2.bf16.msra.mxu0 %v5480
        %5521 = vmatprep.subr.bf16.mxu0 0
        %5522 = vmatpush2.bf16.msra.mxu0 %v5479
        %5523 = vmatprep.subr.bf16.mxu0 0
        %5524 = vmatpush2.bf16.msra.mxu0 %v5478
        %5525 = vmatprep.subr.bf16.mxu0 0
        %5526 = vmatpush2.bf16.msra.mxu0 %v5477
        %5527 = vmatprep.subr.bf16.mxu0 0
        %5528 = vmatpush2.bf16.msra.mxu0 %v5476
        %5529 = vmatprep.subr.bf16.mxu0 0
        %5530 = vmatpush2.bf16.msra.mxu0 %v5475
        %5531 = vmatprep.mubr.bf16.mxu0 %v5369
        %5532 = vmatmul.mubr.bf16.gmra.mxu0 %v5368
        %v5533 = vpop.f32.mrf.mxu0
        %v5534 = vadd.f32 %v5402, %v5533
        %v5535 = vpop.f32.mrf.mxu0
        %v5536 = vpop.f32.mrf.mxu0
        %v5537 = vpop.f32.mrf.mxu0
        %5538 = vdwg.mxu0
        %5539 = vst [vmem:[%s410] sm:$0x1] %v5534
      $region72: #{_deepfake_detector_forward.1} parent=63 // pred_fallthru
        _
      %p5540 = scmp.lt.s32.totalorder %s26, 1
      %s5541 = scalar_select %p5540, %s26, 1
      %s5542 = scalar_lea.vmem %s11, %s5541
      // Predicated region
      $region73: #{_deepfake_detector_forward.1} parent=63 // pred_check
        %p5543 = pneg %p290
      $region74: #{_deepfake_detector_forward.1} parent=63 // pred_check_branch
        %5545 = sbr.rel (%p5543) target = $region76
      $region75: #{_deepfake_detector_forward.1} parent=63 // pred_region
        _
      $region76: #{_deepfake_detector_forward.1} parent=63 // pred_fallthru
        _
    $region64: #{_deepfake_detector_forward.1} parent=5 // pred_fallthru
      _
    %p5546 = scmp.le.s32.totalorder 2, %s17
    // Predicated region
    $region77: #{_deepfake_detector_forward.1} parent=5 // pred_check
      %p5547 = pneg %p5546
    $region78: #{_deepfake_detector_forward.1} parent=5 // pred_check_branch
      %5549 = sbr.rel (%p5547) target = $region80
    $region79: #{_deepfake_detector_forward.1} parent=5 // pred_region
      %s5550 = ssub.s32 %s17, 2
      // Predicated region
      $region81: #{_deepfake_detector_forward.1} parent=79 // pred_check
        %p5551 = pneg %p296
      $region82: #{_deepfake_detector_forward.1} parent=79 // pred_check_branch
        %5553 = sbr.rel (%p5551) target = $region84
      $region83: #{_deepfake_detector_forward.1} parent=79 // pred_region
        %p5554 = scmp.lt.s32.totalorder %s28, 1
        %s5555 = scalar_select %p5554, %s28, 1
        %s5556 = scalar_lea.vmem %s11, %s5555
      $region84: #{_deepfake_detector_forward.1} parent=79 // pred_fallthru
        _
    $region80: #{_deepfake_detector_forward.1} parent=5 // pred_fallthru
      _
  $region6: #{_deepfake_detector_forward.1} parent=0 // loop_footer
    %s21 = sadd.s32 1, %s17
  $region7: #{_deepfake_detector_forward.1} parent=0 // loop_footer_branch
    %16 = sbr.rel target = $region3
  $region8: #{_deepfake_detector_forward.1} parent=0 // loop_exit
    _

</llo_original>
